<compile_context>
chip_gen: v7x
topology: tpu7x:2x2x1
jax: 0.10.0
libtpu: 0.0.40
codegen_flags: <defaults>
</compile_context>

<pallas_src>
import functools
import numpy as np

import jax
import jax.numpy as jnp
from jax.experimental import pallas as pl
from jax.experimental.pallas import tpu as pltpu


def _round_up(x, m):
    return (x + m - 1) // m * m


# ---------------------------------------------------------------------------
# Connection structure (matches HierarchicalRingTopK.form_connections)
# ---------------------------------------------------------------------------
def form_connection_matrices(atoms_per_level, connectivity=4):
    """Binary matrices C[i] of shape (atoms_i, atoms_{i+1}): parent -> children."""
    mats = []
    for i, atoms in enumerate(atoms_per_level[:-1]):
        nxt = atoms_per_level[i + 1]
        m = np.zeros((atoms, nxt), np.float32)
        for j in range(atoms):
            for kk in range(j * 2, j * 2 + connectivity):
                m[j, kk % nxt] = 1.0
        mats.append(m)
    return mats


# ---------------------------------------------------------------------------
# Pallas kernel: per-level conv-as-matmul + OR-gating + channel top-k
# ---------------------------------------------------------------------------
def _hier_ring_topk_kernel(atoms_per_level, ks, patches_ref, *refs):
    n_lvl = len(atoms_per_level)
    w_refs = refs[:n_lvl]
    b_refs = refs[n_lvl:2 * n_lvl]
    conn_refs = refs[2 * n_lvl:3 * n_lvl - 1]
    out_ref = refs[3 * n_lvl - 1]

    patches = patches_ref[...]                          # (tile_n, K) bf16
    prev_mask = None
    sels = []
    for lvl, (c_i, k) in enumerate(zip(atoms_per_level, ks)):
        # Dictionary response for this level: bf16 MXU operands, f32 accum.
        a = (jnp.dot(patches, w_refs[lvl][...],
                     preferred_element_type=jnp.float32)
             + b_refs[lvl][...])

        if prev_mask is not None:
            # OR-gate over connected parents == (prev_mask @ conn) > 0.
            # Both operands hold exact {0,1} values, so bf16 is lossless.
            gating = jnp.dot(prev_mask, conn_refs[lvl - 1][...],
                             preferred_element_type=jnp.float32)
            a = jnp.where(gating > 0.0, a, 0.0)

        # Channel top-k by |value|: iterative max extraction gives the k-th
        # largest |a| per row.  NOTE: exact ties at the k-th |value| are all
        # kept (torch.topk keeps exactly k, breaking ties by index); with
        # continuous float data this only matters at exact zeros, where the
        # stored value (0) and the descending mask are unaffected.
        abs_a = jnp.abs(a)
        work = abs_a
        kth = jnp.max(work, axis=1, keepdims=True)
        for _ in range(k - 1):
            work = jnp.where(work >= kth, -1.0, work)
            kth = jnp.max(work, axis=1, keepdims=True)
        sel = jnp.where(abs_a >= kth, a, 0.0)

        sels.append(sel)
        prev_mask = (sel != 0.0).astype(jnp.bfloat16)   # descending_mask

    # Single packed store of the real channels of this row tile (no per-level
    # 128-lane padding in HBM).
    out_ref[...] = jnp.concatenate(sels, axis=1).astype(out_ref.dtype)


# ---------------------------------------------------------------------------
# Generation-aware VMEM / tile sizing
# ---------------------------------------------------------------------------
def _vmem_limit_bytes():
    phys = 64 * 1024 * 1024          # conservative default (v7x per-TC VMEM)
    try:
        info = pltpu.get_tpu_info()
        for name in ("vmem_capacity_bytes", "vmem_size_bytes", "vmem_bytes"):
            v = getattr(info, name, None)
            if v:
                phys = int(v)
                break
    except Exception:
        pass
    # Leave headroom for compiler-internal scratch; never request > 100 MiB.
    return int(np.clip(phys - 16 * 1024 * 1024,
                       32 * 1024 * 1024, 100 * 1024 * 1024))


def _pick_tile_n(n_rows, vmem_limit, requested=None):
    # Per-row VMEM estimate (lanes pad to 128 in VMEM): double-buffered bf16
    # patches + double-buffered output + ~8 live f32 vreg-wide temporaries.
    per_row = 2 * 128 * 2 + 2 * 128 * 4 + 8 * 128 * 4
    tile = requested if requested is not None else (vmem_limit // 2) // per_row
    tile = int(max(8, min(tile, 4096)))
    # Keep >= 2 balanced grid steps whenever rows allow, so v7x megacore's
    # 'parallel' row axis actually shards across both TensorCores.
    if n_rows > 8:
        tile = min(tile, _round_up((n_rows + 1) // 2, 8))
    tile = max(8, _round_up(min(tile, _round_up(n_rows, 8)), 8))
    return tile


# ---------------------------------------------------------------------------
# Wrapper: bf16 im2col + row-tiled pallas_call + reshape to NCHW
# ---------------------------------------------------------------------------
def hierarchical_ring_topk(x_nchw, weight, bias, conn_mats, atoms_per_level, ks,
                           *, tile_n=None, out_dtype=jnp.float32,
                           channels_last=False):
    B, Cin, H, W = x_nchw.shape
    kh = kw = 3
    Ho, Wo = H - kh + 1, W - kw + 1
    n_rows = B * Ho * Wo
    k_dim = Cin * kh * kw
    n_lvl = len(atoms_per_level)
    c_total = int(np.sum(atoms_per_level))
    assert len(ks) == n_lvl and len(conn_mats) == n_lvl - 1

    vmem_limit = _vmem_limit_bytes()
    tile = _pick_tile_n(n_rows, vmem_limit, tile_n)
    n_pad = _round_up(n_rows, tile)
    n_tiles = n_pad // tile

    # --- im2col directly in NHWC patch order (bf16): one fused concat, no
    #     extra HBM transpose of the 9x-expanded array.  Patch-K ordering is
    #     dh*kw*Cin + dw*Cin + ic, matching the (kh,kw,in,out) weight reshape.
    # TODO(synk): fold the 9 conv taps into the kernel (halo'd manual DMA of
    # raw NHWC rows) to drop this materialization entirely; with tiny Cin the
    # required lane<->sublane relayout of the tap slabs adds XLU work to the
    # already XLU-bound top-k path, so it is deferred in this revision.
    x_nhwc = jnp.transpose(x_nchw, (0, 2, 3, 1)).astype(jnp.bfloat16)
    taps = [x_nhwc[:, dh:dh + Ho, dw:dw + Wo, :]
            for dh in range(kh) for dw in range(kw)]
    patches = jnp.concatenate(taps, axis=-1).reshape(n_rows, k_dim)
    if n_pad != n_rows:
        patches = jnp.pad(patches, ((0, n_pad - n_rows), (0, 0)))

    # --- per-level narrow weights / biases / connection matrices -------------
    w_t = jnp.transpose(weight, (2, 3, 1, 0)).reshape(k_dim, c_total)
    w_lvls, b_lvls = [], []
    idx = 0
    for c_i in atoms_per_level:
        w_lvls.append(w_t[:, idx:idx + c_i].astype(jnp.bfloat16))
        b_lvls.append(bias[idx:idx + c_i].astype(jnp.float32).reshape(1, c_i))
        idx += c_i
    conn_lvls = [jnp.asarray(cm, jnp.bfloat16) for cm in conn_mats]

    kernel = functools.partial(
        _hier_ring_topk_kernel, tuple(atoms_per_level), tuple(ks))

    # Grid-invariant operands (weights/bias/conn) total well under 0.1 MiB at
    # these widths, so default double-buffering is free; pl.Buffered(1) is
    # unnecessary now that the old wide zero-padded weight slab is gone.
    in_specs = [pl.BlockSpec((tile, k_dim), lambda i: (i, 0))]        # patches
    in_specs += [pl.BlockSpec((k_dim, c_i), lambda i: (0, 0))
                 for c_i in atoms_per_level]                          # weights
    in_specs += [pl.BlockSpec((1, c_i), lambda i: (0, 0))
                 for c_i in atoms_per_level]                          # biases
    in_specs += [pl.BlockSpec((atoms_per_level[l], atoms_per_level[l + 1]),
                              lambda i: (0, 0))
                 for l in range(n_lvl - 1)]                           # conn
    out_specs = pl.BlockSpec((tile, c_total), lambda i: (i, 0))

    flops = 0
    for lvl, c_i in enumerate(atoms_per_level):
        flops += 2 * n_pad * k_dim * c_i
        if lvl:
            flops += 2 * n_pad * atoms_per_level[lvl - 1] * c_i
    out_bytes = np.dtype(out_dtype).itemsize
    bytes_accessed = (
        n_pad * k_dim * 2                                  # patches (bf16)
        + n_pad * c_total * out_bytes                      # packed output
        + k_dim * c_total * 2 + c_total * 4                # weights + bias
        + sum(atoms_per_level[l] * atoms_per_level[l + 1] * 2
              for l in range(n_lvl - 1)))                  # conn (bf16)

    out_flat = pl.pallas_call(
        kernel,
        out_shape=jax.ShapeDtypeStruct((n_pad, c_total), out_dtype),
        grid_spec=pltpu.PrefetchScalarGridSpec(
            num_scalar_prefetch=0,
            grid=(n_tiles,),
            in_specs=in_specs,
            out_specs=out_specs,
        ),
        compiler_params=pltpu.CompilerParams(
            dimension_semantics=("parallel",),
            vmem_limit_bytes=vmem_limit,
        ),
        cost_estimate=pl.CostEstimate(
            flops=int(flops), transcendentals=0,
            bytes_accessed=int(bytes_accessed)),
    )(patches, *w_lvls, *b_lvls, *conn_lvls)

    out = out_flat[:n_rows].reshape(B, Ho, Wo, c_total)
    if channels_last:
        return out
    return jnp.transpose(out, (0, 3, 1, 2))               # PyTorch NCHW


# ---------------------------------------------------------------------------
# Pure numpy reference (mirrors the PyTorch forward semantics)
# ---------------------------------------------------------------------------
def reference_forward(x, weight, bias, conn_mats, atoms_per_level, ks):
    x = np.asarray(x, np.float64)
    w = np.asarray(weight, np.float64)
    b = np.asarray(bias, np.float64)
    B, Cin, H, W = x.shape
    Ho, Wo = H - 2, W - 2
    c_total = w.shape[0]

    acts = np.zeros((B, c_total, Ho, Wo))
    for dh in range(3):
        for dw in range(3):
            acts += np.einsum(
                "bchw,oc->bohw", x[:, :, dh: dh + Ho, dw: dw + Wo], w[:, :, dh, dw]
            )
    acts += b[None, :, None, None]

    out_levels, prev_mask, idx = [], None, 0
    for i, (c_i, k) in enumerate(zip(atoms_per_level, ks)):
        a = acts[:, idx: idx + c_i]
        if prev_mask is not None:
            gating = np.einsum("bphw,pc->bchw", prev_mask,
                               np.asarray(conn_mats[i - 1], np.float64))
            a = a * (gating > 0)
        abs_a = np.abs(a)
        order = np.argsort(-abs_a, axis=1, kind="stable")[:, :k]
        mask = np.zeros_like(a, dtype=bool)
        np.put_along_axis(mask, order, True, axis=1)
        sel = a * mask
        out_levels.append(sel)
        prev_mask = (sel != 0).astype(np.float64)
        idx += c_i
    return np.concatenate(out_levels, axis=1)


# ---------------------------------------------------------------------------
if __name__ == "__main__":
    key = jax.random.PRNGKey(0)

    in_ch, levels = 4, 3
    ks = (2, 4, 6)
    atoms_per_level = [8]
    for _ in range(levels - 1):
        atoms_per_level.append(atoms_per_level[-1] * 2)        # [8, 16, 32]
    total_atoms = int(np.sum(atoms_per_level))                 # 56

    k1, k2, k3 = jax.random.split(key, 3)
    x = jax.random.normal(k1, (2, in_ch, 16, 16), jnp.float32)

    # Deterministic dictionary init (orthonormalize_init stand-in: row-normalised
    # gaussian filters), small bias.
    w = jax.random.normal(k2, (total_atoms, in_ch, 3, 3), jnp.float32)
    w = w / jnp.sqrt(jnp.sum(w * w, axis=(1, 2, 3), keepdims=True))
    b = 0.01 * jax.random.normal(k3, (total_atoms,), jnp.float32)

    # Quantize x / w through bf16 once so the kernel (bf16 MXU operands) and
    # the float64 reference see numerically identical inputs.
    x_q = x.astype(jnp.bfloat16).astype(jnp.float32)
    w_q = w.astype(jnp.bfloat16).astype(jnp.float32)

    conn_np = form_connection_matrices(atoms_per_level, connectivity=4)
    conn_mats = [jnp.asarray(m) for m in conn_np]

    # Auto tile / VMEM selection (two balanced row tiles at this toy size).
    out = hierarchical_ring_topk(x_q, w_q, b, conn_mats, atoms_per_level, ks)
    out = jax.block_until_ready(out)

    assert out.shape == (2, total_atoms, 14, 14), out.shape
    assert bool(jnp.all(jnp.isfinite(out)))

    ref = reference_forward(np.asarray(x_q), np.asarray(w_q), np.asarray(b),
                            conn_np, atoms_per_level, ks)
    mism = ~np.isclose(np.asarray(out), ref, rtol=1e-3, atol=1e-3)
    # Near-degenerate top-k thresholds can flip selection between MXU and
    # float64 reference arithmetic; tolerate a tiny mismatch fraction.
    assert mism.mean() < 0.01, f"mismatch fraction {mism.mean():.4f}"

    print("KERNEL_OK")
</pallas_src>

<mosaic_0001>
module attributes {stable_mosaic.version = 11 : i64} {
  func.func @_hier_ring_topk_kernel(%arg0: i32, %arg1: memref<200x36xbf16, #tpu.memory_space<vmem>>, %arg2: memref<36x8xbf16, #tpu.memory_space<vmem>>, %arg3: memref<36x16xbf16, #tpu.memory_space<vmem>>, %arg4: memref<36x32xbf16, #tpu.memory_space<vmem>>, %arg5: memref<1x8xf32, #tpu.memory_space<vmem>>, %arg6: memref<1x16xf32, #tpu.memory_space<vmem>>, %arg7: memref<1x32xf32, #tpu.memory_space<vmem>>, %arg8: memref<8x16xbf16, #tpu.memory_space<vmem>>, %arg9: memref<16x32xbf16, #tpu.memory_space<vmem>>, %arg10: memref<200x56xf32, #tpu.memory_space<vmem>>) attributes {dimension_semantics = [#tpu.dimension_semantics<parallel>], iteration_bounds = array<i64: 2>, scalar_prefetch = 0 : i64, scratch_operands = 0 : i64, tpu.core_type = #tpu.core_type<tc>, window_params = [{transform_indices = @transform_0, window_bounds = array<i64: 200, 36>}, {pipeline_mode = #tpu.pipeline_mode<synchronous>, transform_indices = @transform_1, window_bounds = array<i64: 36, 8>}, {pipeline_mode = #tpu.pipeline_mode<synchronous>, transform_indices = @transform_2, window_bounds = array<i64: 36, 16>}, {pipeline_mode = #tpu.pipeline_mode<synchronous>, transform_indices = @transform_3, window_bounds = array<i64: 36, 32>}, {pipeline_mode = #tpu.pipeline_mode<synchronous>, transform_indices = @transform_4, window_bounds = array<i64: 1, 8>}, {pipeline_mode = #tpu.pipeline_mode<synchronous>, transform_indices = @transform_5, window_bounds = array<i64: 1, 16>}, {pipeline_mode = #tpu.pipeline_mode<synchronous>, transform_indices = @transform_6, window_bounds = array<i64: 1, 32>}, {pipeline_mode = #tpu.pipeline_mode<synchronous>, transform_indices = @transform_7, window_bounds = array<i64: 8, 16>}, {pipeline_mode = #tpu.pipeline_mode<synchronous>, transform_indices = @transform_8, window_bounds = array<i64: 16, 32>}, {transform_indices = @transform_9, window_bounds = array<i64: 200, 56>}]} {
    %c0 = arith.constant 0 : index
    %c0_0 = arith.constant 0 : index
    %0 = vector.load %arg1[%c0, %c0_0] : memref<200x36xbf16, #tpu.memory_space<vmem>>, vector<200x36xbf16>
    %c0_1 = arith.constant 0 : index
    %c0_2 = arith.constant 0 : index
    %1 = vector.load %arg2[%c0_1, %c0_2] : memref<36x8xbf16, #tpu.memory_space<vmem>>, vector<36x8xbf16>
    %cst = arith.constant dense<0.000000e+00> : vector<200x8xf32>
    %2 = tpu.matmul %0, %1, %cst {dimension_numbers = #tpu.dot_dimension_numbers<[1], [0], [0], [1], [0, 0, 1, 1], [], []>} : vector<200x36xbf16>, vector<36x8xbf16>, vector<200x8xf32> -> vector<200x8xf32>
    %c0_3 = arith.constant 0 : index
    %c0_4 = arith.constant 0 : index
    %3 = vector.load %arg5[%c0_3, %c0_4] : memref<1x8xf32, #tpu.memory_space<vmem>>, vector<1x8xf32>
    %4 = vector.broadcast %3 : vector<1x8xf32> to vector<200x8xf32>
    %5 = arith.addf %2, %4 : vector<200x8xf32>
    %6 = math.absf %5 : vector<200x8xf32>
    %cst_5 = arith.constant dense<0xFF800000> : vector<200xf32>
    %7 = vector.multi_reduction <maximumf>, %6, %cst_5 [1] : vector<200x8xf32> to vector<200xf32>
    %8 = vector.shape_cast %7 : vector<200xf32> to vector<200x1xf32>
    %9 = vector.broadcast %8 : vector<200x1xf32> to vector<200x8xf32>
    %10 = arith.cmpf oge, %6, %9 : vector<200x8xf32>
    %cst_6 = arith.constant -1.000000e+00 : f32
    %11 = vector.broadcast %cst_6 : f32 to vector<200x8xf32>
    %12 = arith.select %10, %11, %6 : vector<200x8xi1>, vector<200x8xf32>
    %cst_7 = arith.constant dense<0xFF800000> : vector<200xf32>
    %13 = vector.multi_reduction <maximumf>, %12, %cst_7 [1] : vector<200x8xf32> to vector<200xf32>
    %14 = vector.shape_cast %13 : vector<200xf32> to vector<200x1xf32>
    %15 = vector.broadcast %14 : vector<200x1xf32> to vector<200x8xf32>
    %16 = arith.cmpf oge, %6, %15 : vector<200x8xf32>
    %cst_8 = arith.constant 0.000000e+00 : f32
    %17 = vector.broadcast %cst_8 : f32 to vector<200x8xf32>
    %18 = arith.select %16, %5, %17 : vector<200x8xi1>, vector<200x8xf32>
    %cst_9 = arith.constant 0.000000e+00 : f32
    %19 = vector.broadcast %cst_9 : f32 to vector<200x8xf32>
    %20 = arith.cmpf one, %18, %19 : vector<200x8xf32>
    %21 = arith.extui %20 : vector<200x8xi1> to vector<200x8xi32>
    %22 = arith.sitofp %21 : vector<200x8xi32> to vector<200x8xf32>
    %23 = arith.truncf %22 : vector<200x8xf32> to vector<200x8xbf16>
    %c0_10 = arith.constant 0 : index
    %c0_11 = arith.constant 0 : index
    %24 = vector.load %arg3[%c0_10, %c0_11] : memref<36x16xbf16, #tpu.memory_space<vmem>>, vector<36x16xbf16>
    %cst_12 = arith.constant dense<0.000000e+00> : vector<200x16xf32>
    %25 = tpu.matmul %0, %24, %cst_12 {dimension_numbers = #tpu.dot_dimension_numbers<[1], [0], [0], [1], [0, 0, 1, 1], [], []>} : vector<200x36xbf16>, vector<36x16xbf16>, vector<200x16xf32> -> vector<200x16xf32>
    %c0_13 = arith.constant 0 : index
    %c0_14 = arith.constant 0 : index
    %26 = vector.load %arg6[%c0_13, %c0_14] : memref<1x16xf32, #tpu.memory_space<vmem>>, vector<1x16xf32>
    %27 = vector.broadcast %26 : vector<1x16xf32> to vector<200x16xf32>
    %28 = arith.addf %25, %27 : vector<200x16xf32>
    %c0_15 = arith.constant 0 : index
    %c0_16 = arith.constant 0 : index
    %29 = vector.load %arg8[%c0_15, %c0_16] : memref<8x16xbf16, #tpu.memory_space<vmem>>, vector<8x16xbf16>
    %cst_17 = arith.constant dense<0.000000e+00> : vector<200x16xf32>
    %30 = tpu.matmul %23, %29, %cst_17 {dimension_numbers = #tpu.dot_dimension_numbers<[1], [0], [0], [1], [0, 0, 1, 1], [], []>} : vector<200x8xbf16>, vector<8x16xbf16>, vector<200x16xf32> -> vector<200x16xf32>
    %cst_18 = arith.constant 0.000000e+00 : f32
    %31 = vector.broadcast %cst_18 : f32 to vector<200x16xf32>
    %32 = arith.cmpf ogt, %30, %31 : vector<200x16xf32>
    %cst_19 = arith.constant 0.000000e+00 : f32
    %33 = vector.broadcast %cst_19 : f32 to vector<200x16xf32>
    %34 = arith.select %32, %28, %33 : vector<200x16xi1>, vector<200x16xf32>
    %35 = math.absf %34 : vector<200x16xf32>
    %cst_20 = arith.constant dense<0xFF800000> : vector<200xf32>
    %36 = vector.multi_reduction <maximumf>, %35, %cst_20 [1] : vector<200x16xf32> to vector<200xf32>
    %37 = vector.shape_cast %36 : vector<200xf32> to vector<200x1xf32>
    %38 = vector.broadcast %37 : vector<200x1xf32> to vector<200x16xf32>
    %39 = arith.cmpf oge, %35, %38 : vector<200x16xf32>
    %cst_21 = arith.constant -1.000000e+00 : f32
    %40 = vector.broadcast %cst_21 : f32 to vector<200x16xf32>
    %41 = arith.select %39, %40, %35 : vector<200x16xi1>, vector<200x16xf32>
    %cst_22 = arith.constant dense<0xFF800000> : vector<200xf32>
    %42 = vector.multi_reduction <maximumf>, %41, %cst_22 [1] : vector<200x16xf32> to vector<200xf32>
    %43 = vector.shape_cast %42 : vector<200xf32> to vector<200x1xf32>
    %44 = vector.broadcast %43 : vector<200x1xf32> to vector<200x16xf32>
    %45 = arith.cmpf oge, %41, %44 : vector<200x16xf32>
    %cst_23 = arith.constant -1.000000e+00 : f32
    %46 = vector.broadcast %cst_23 : f32 to vector<200x16xf32>
    %47 = arith.select %45, %46, %41 : vector<200x16xi1>, vector<200x16xf32>
    %cst_24 = arith.constant dense<0xFF800000> : vector<200xf32>
    %48 = vector.multi_reduction <maximumf>, %47, %cst_24 [1] : vector<200x16xf32> to vector<200xf32>
    %49 = vector.shape_cast %48 : vector<200xf32> to vector<200x1xf32>
    %50 = vector.broadcast %49 : vector<200x1xf32> to vector<200x16xf32>
    %51 = arith.cmpf oge, %47, %50 : vector<200x16xf32>
    %cst_25 = arith.constant -1.000000e+00 : f32
    %52 = vector.broadcast %cst_25 : f32 to vector<200x16xf32>
    %53 = arith.select %51, %52, %47 : vector<200x16xi1>, vector<200x16xf32>
    %cst_26 = arith.constant dense<0xFF800000> : vector<200xf32>
    %54 = vector.multi_reduction <maximumf>, %53, %cst_26 [1] : vector<200x16xf32> to vector<200xf32>
    %55 = vector.shape_cast %54 : vector<200xf32> to vector<200x1xf32>
    %56 = vector.broadcast %55 : vector<200x1xf32> to vector<200x16xf32>
    %57 = arith.cmpf oge, %35, %56 : vector<200x16xf32>
    %cst_27 = arith.constant 0.000000e+00 : f32
    %58 = vector.broadcast %cst_27 : f32 to vector<200x16xf32>
    %59 = arith.select %57, %34, %58 : vector<200x16xi1>, vector<200x16xf32>
    %cst_28 = arith.constant 0.000000e+00 : f32
    %60 = vector.broadcast %cst_28 : f32 to vector<200x16xf32>
    %61 = arith.cmpf one, %59, %60 : vector<200x16xf32>
    %62 = arith.extui %61 : vector<200x16xi1> to vector<200x16xi32>
    %63 = arith.sitofp %62 : vector<200x16xi32> to vector<200x16xf32>
    %64 = arith.truncf %63 : vector<200x16xf32> to vector<200x16xbf16>
    %c0_29 = arith.constant 0 : index
    %c0_30 = arith.constant 0 : index
    %65 = vector.load %arg4[%c0_29, %c0_30] : memref<36x32xbf16, #tpu.memory_space<vmem>>, vector<36x32xbf16>
    %cst_31 = arith.constant dense<0.000000e+00> : vector<200x32xf32>
    %66 = tpu.matmul %0, %65, %cst_31 {dimension_numbers = #tpu.dot_dimension_numbers<[1], [0], [0], [1], [0, 0, 1, 1], [], []>} : vector<200x36xbf16>, vector<36x32xbf16>, vector<200x32xf32> -> vector<200x32xf32>
    %c0_32 = arith.constant 0 : index
    %c0_33 = arith.constant 0 : index
    %67 = vector.load %arg7[%c0_32, %c0_33] : memref<1x32xf32, #tpu.memory_space<vmem>>, vector<1x32xf32>
    %68 = vector.broadcast %67 : vector<1x32xf32> to vector<200x32xf32>
    %69 = arith.addf %66, %68 : vector<200x32xf32>
    %c0_34 = arith.constant 0 : index
    %c0_35 = arith.constant 0 : index
    %70 = vector.load %arg9[%c0_34, %c0_35] : memref<16x32xbf16, #tpu.memory_space<vmem>>, vector<16x32xbf16>
    %cst_36 = arith.constant dense<0.000000e+00> : vector<200x32xf32>
    %71 = tpu.matmul %64, %70, %cst_36 {dimension_numbers = #tpu.dot_dimension_numbers<[1], [0], [0], [1], [0, 0, 1, 1], [], []>} : vector<200x16xbf16>, vector<16x32xbf16>, vector<200x32xf32> -> vector<200x32xf32>
    %cst_37 = arith.constant 0.000000e+00 : f32
    %72 = vector.broadcast %cst_37 : f32 to vector<200x32xf32>
    %73 = arith.cmpf ogt, %71, %72 : vector<200x32xf32>
    %cst_38 = arith.constant 0.000000e+00 : f32
    %74 = vector.broadcast %cst_38 : f32 to vector<200x32xf32>
    %75 = arith.select %73, %69, %74 : vector<200x32xi1>, vector<200x32xf32>
    %76 = math.absf %75 : vector<200x32xf32>
    %cst_39 = arith.constant dense<0xFF800000> : vector<200xf32>
    %77 = vector.multi_reduction <maximumf>, %76, %cst_39 [1] : vector<200x32xf32> to vector<200xf32>
    %78 = vector.shape_cast %77 : vector<200xf32> to vector<200x1xf32>
    %79 = vector.broadcast %78 : vector<200x1xf32> to vector<200x32xf32>
    %80 = arith.cmpf oge, %76, %79 : vector<200x32xf32>
    %cst_40 = arith.constant -1.000000e+00 : f32
    %81 = vector.broadcast %cst_40 : f32 to vector<200x32xf32>
    %82 = arith.select %80, %81, %76 : vector<200x32xi1>, vector<200x32xf32>
    %cst_41 = arith.constant dense<0xFF800000> : vector<200xf32>
    %83 = vector.multi_reduction <maximumf>, %82, %cst_41 [1] : vector<200x32xf32> to vector<200xf32>
    %84 = vector.shape_cast %83 : vector<200xf32> to vector<200x1xf32>
    %85 = vector.broadcast %84 : vector<200x1xf32> to vector<200x32xf32>
    %86 = arith.cmpf oge, %82, %85 : vector<200x32xf32>
    %cst_42 = arith.constant -1.000000e+00 : f32
    %87 = vector.broadcast %cst_42 : f32 to vector<200x32xf32>
    %88 = arith.select %86, %87, %82 : vector<200x32xi1>, vector<200x32xf32>
    %cst_43 = arith.constant dense<0xFF800000> : vector<200xf32>
    %89 = vector.multi_reduction <maximumf>, %88, %cst_43 [1] : vector<200x32xf32> to vector<200xf32>
    %90 = vector.shape_cast %89 : vector<200xf32> to vector<200x1xf32>
    %91 = vector.broadcast %90 : vector<200x1xf32> to vector<200x32xf32>
    %92 = arith.cmpf oge, %88, %91 : vector<200x32xf32>
    %cst_44 = arith.constant -1.000000e+00 : f32
    %93 = vector.broadcast %cst_44 : f32 to vector<200x32xf32>
    %94 = arith.select %92, %93, %88 : vector<200x32xi1>, vector<200x32xf32>
    %cst_45 = arith.constant dense<0xFF800000> : vector<200xf32>
    %95 = vector.multi_reduction <maximumf>, %94, %cst_45 [1] : vector<200x32xf32> to vector<200xf32>
    %96 = vector.shape_cast %95 : vector<200xf32> to vector<200x1xf32>
    %97 = vector.broadcast %96 : vector<200x1xf32> to vector<200x32xf32>
    %98 = arith.cmpf oge, %94, %97 : vector<200x32xf32>
    %cst_46 = arith.constant -1.000000e+00 : f32
    %99 = vector.broadcast %cst_46 : f32 to vector<200x32xf32>
    %100 = arith.select %98, %99, %94 : vector<200x32xi1>, vector<200x32xf32>
    %cst_47 = arith.constant dense<0xFF800000> : vector<200xf32>
    %101 = vector.multi_reduction <maximumf>, %100, %cst_47 [1] : vector<200x32xf32> to vector<200xf32>
    %102 = vector.shape_cast %101 : vector<200xf32> to vector<200x1xf32>
    %103 = vector.broadcast %102 : vector<200x1xf32> to vector<200x32xf32>
    %104 = arith.cmpf oge, %100, %103 : vector<200x32xf32>
    %cst_48 = arith.constant -1.000000e+00 : f32
    %105 = vector.broadcast %cst_48 : f32 to vector<200x32xf32>
    %106 = arith.select %104, %105, %100 : vector<200x32xi1>, vector<200x32xf32>
    %cst_49 = arith.constant dense<0xFF800000> : vector<200xf32>
    %107 = vector.multi_reduction <maximumf>, %106, %cst_49 [1] : vector<200x32xf32> to vector<200xf32>
    %108 = vector.shape_cast %107 : vector<200xf32> to vector<200x1xf32>
    %109 = vector.broadcast %108 : vector<200x1xf32> to vector<200x32xf32>
    %110 = arith.cmpf oge, %76, %109 : vector<200x32xf32>
    %cst_50 = arith.constant 0.000000e+00 : f32
    %111 = vector.broadcast %cst_50 : f32 to vector<200x32xf32>
    %112 = arith.select %110, %75, %111 : vector<200x32xi1>, vector<200x32xf32>
    %113 = tpu.concatenate %18, %59, %112 in 1 : vector<200x8xf32>, vector<200x16xf32>, vector<200x32xf32> -> vector<200x56xf32>
    %c0_51 = arith.constant 0 : index
    %c0_52 = arith.constant 0 : index
    %114 = vector.load %arg10[%c0_51, %c0_52] : memref<200x56xf32, #tpu.memory_space<vmem>>, vector<200x56xf32>
    tpu.vector_store %arg10[%c0_51, %c0_52], %113 {strides = array<i32>} : memref<200x56xf32, #tpu.memory_space<vmem>>, vector<200x56xf32>,
    return
  }
  func.func @transform_0(%arg0: i32) -> (i32, i32) {
    %c0_i32 = arith.constant 0 : i32
    %c0_i32_0 = arith.constant 0 : i32
    return %arg0, %c0_i32 : i32, i32
  }
  func.func @transform_1(%arg0: i32) -> (i32, i32) {
    %c0_i32 = arith.constant 0 : i32
    %c0_i32_0 = arith.constant 0 : i32
    %c0_i32_1 = arith.constant 0 : i32
    return %c0_i32, %c0_i32_0 : i32, i32
  }
  func.func @transform_2(%arg0: i32) -> (i32, i32) {
    %c0_i32 = arith.constant 0 : i32
    %c0_i32_0 = arith.constant 0 : i32
    %c0_i32_1 = arith.constant 0 : i32
    return %c0_i32, %c0_i32_0 : i32, i32
  }
  func.func @transform_3(%arg0: i32) -> (i32, i32) {
    %c0_i32 = arith.constant 0 : i32
    %c0_i32_0 = arith.constant 0 : i32
    %c0_i32_1 = arith.constant 0 : i32
    return %c0_i32, %c0_i32_0 : i32, i32
  }
  func.func @transform_4(%arg0: i32) -> (i32, i32) {
    %c0_i32 = arith.constant 0 : i32
    %c0_i32_0 = arith.constant 0 : i32
    %c0_i32_1 = arith.constant 0 : i32
    return %c0_i32, %c0_i32_0 : i32, i32
  }
  func.func @transform_5(%arg0: i32) -> (i32, i32) {
    %c0_i32 = arith.constant 0 : i32
    %c0_i32_0 = arith.constant 0 : i32
    %c0_i32_1 = arith.constant 0 : i32
    return %c0_i32, %c0_i32_0 : i32, i32
  }
  func.func @transform_6(%arg0: i32) -> (i32, i32) {
    %c0_i32 = arith.constant 0 : i32
    %c0_i32_0 = arith.constant 0 : i32
    %c0_i32_1 = arith.constant 0 : i32
    return %c0_i32, %c0_i32_0 : i32, i32
  }
  func.func @transform_7(%arg0: i32) -> (i32, i32) {
    %c0_i32 = arith.constant 0 : i32
    %c0_i32_0 = arith.constant 0 : i32
    %c0_i32_1 = arith.constant 0 : i32
    return %c0_i32, %c0_i32_0 : i32, i32
  }
  func.func @transform_8(%arg0: i32) -> (i32, i32) {
    %c0_i32 = arith.constant 0 : i32
    %c0_i32_0 = arith.constant 0 : i32
    %c0_i32_1 = arith.constant 0 : i32
    return %c0_i32, %c0_i32_0 : i32, i32
  }
  func.func @transform_9(%arg0: i32) -> (i32, i32) {
    %c0_i32 = arith.constant 0 : i32
    %c0_i32_0 = arith.constant 0 : i32
    return %arg0, %c0_i32 : i32, i32
  }
}

</mosaic_0001>

<llo_original>
// kernel: tpu_custom_call.1
$region0: #{tpu_custom_call.1}
  #allocation0 [shape = 'u32[]', space=smem, size = 0x4, offset = 0x4, fixed_abs, tag = 'smem constant byte address 0x4 - core index']
  #allocation1 [shape = 'u32[144,128]{1,0:T(1,128)}', space=vmem, size = 0x12000, scoped, tag = 'internal scratch']
  %s0 = inlined_call_operand.vmem [shape: bf16[400,36], index: 0, kind: input, shape index: {}]
  %s1 = inlined_call_operand.vmem [shape: bf16[36,8], index: 1, kind: input, shape index: {}]
  %s2 = inlined_call_operand.vmem [shape: bf16[36,16], index: 2, kind: input, shape index: {}]
  %s3 = inlined_call_operand.vmem [shape: bf16[36,32], index: 3, kind: input, shape index: {}]
  %s4 = inlined_call_operand.vmem [shape: f32[1,8], index: 4, kind: input, shape index: {}]
  %s5 = inlined_call_operand.vmem [shape: f32[1,16], index: 5, kind: input, shape index: {}]
  %s6 = inlined_call_operand.vmem [shape: f32[1,32], index: 6, kind: input, shape index: {}]
  %s7 = inlined_call_operand.vmem [shape: bf16[8,16], index: 7, kind: input, shape index: {}]
  %s8 = inlined_call_operand.vmem [shape: bf16[16,32], index: 8, kind: input, shape index: {}]
  %s9 = inlined_call_operand.vmem [shape: f32[400,56], index: 9, kind: output, shape index: {}]
  %s10 = sld [smem:[#allocation0]]
  $region69: #{tpu_custom_call.1} parent=0
    _
  %s12 = ssub.s32 1, %s10
  %s13 = scalar_select 0, %s12, %s10
  loop: start=0, step=1, limit=4
  $region2: #{tpu_custom_call.1} parent=0 // loop_pre_header
    _
  $region3: #{tpu_custom_call.1} parent=0 // loop_header
    %s15 = sphi 0, %s19
    %p16 = scmp.ge.s32.totalorder %s15, 4
    %s25 = sphi 0, %s27
    %s28 = sphi 0, %s25
    %s29 = sphi 0, %s28
    %s45 = sphi 0, %s29
    %s49 = sphi 0, %s49
    %s51 = sphi 0, %s49
    %s52 = sphi 0, %s51
    %s66 = sphi 0, %s52
    %s70 = sphi 0, %s70
    %s72 = sphi 0, %s70
    %s73 = sphi 0, %s72
    %s87 = sphi 0, %s73
    %s91 = sphi 0, %s91
    %s93 = sphi 0, %s91
    %s94 = sphi 0, %s93
    %s108 = sphi 0, %s94
    %s112 = sphi 0, %s112
    %s114 = sphi 0, %s112
    %s115 = sphi 0, %s114
    %s129 = sphi 0, %s115
    %s133 = sphi 0, %s133
    %s135 = sphi 0, %s133
    %s136 = sphi 0, %s135
    %s150 = sphi 0, %s136
    %s154 = sphi 0, %s154
    %s156 = sphi 0, %s154
    %s157 = sphi 0, %s156
    %s171 = sphi 0, %s157
    %s175 = sphi 0, %s175
    %s177 = sphi 0, %s175
    %s178 = sphi 0, %s177
    %s192 = sphi 0, %s178
    %s196 = sphi 0, %s196
    %s198 = sphi 0, %s196
    %s199 = sphi 0, %s198
    %s213 = sphi 0, %s199
    %s219 = sphi 0, %s221
    %s222 = sphi 0, %s219
    %s223 = sphi 0, %s222
    %s239 = sphi 0, %s223
  $region4: #{tpu_custom_call.1} parent=0 // loop_header_branch
    %18 = sbr.rel (%p16) target = $region8
  $region5: #{tpu_custom_call.1} parent=0 // loop_body
    %s20 = ssub.s32 %s15, 1
    %s21 = ssub.s32 %s15, 2
    %s22 = sadd.s32 %s15, 1
    %s23 = ssub.s32 %s15, %s22
    %p24 = scmp.eq.s32.totalorder %s23, 0
    %s26 = sadd.s32 %s25, 1
    %s27 = scalar_select %p24, %s25, %s26
    %p30 = pneg %p24
    %p31 = scmp.eq.s32.totalorder %s15, 1
    %p32 = por %p30, %p31
    %p33 = scmp.ne.s32.totalorder %s25, %s28
    %p34 = scmp.eq.s32.totalorder %s15, 0
    %p35 = por %p33, %p34
    %p36 = scmp.ne.s32.totalorder %s25, %s28
    %p37 = scmp.eq.s32.totalorder %s20, 1
    %p38 = por %p36, %p37
    %p39 = scmp.ne.s32.totalorder %s28, %s29
    %p40 = scmp.eq.s32.totalorder %s20, 0
    %p41 = por %p39, %p40
    %p42 = scmp.ne.s32.totalorder %s28, %s29
    %p43 = scmp.eq.s32.totalorder %s21, 1
    %p44 = por %p42, %p43
    %p46 = scmp.ne.s32.totalorder %s29, %s45
    %p47 = scmp.eq.s32.totalorder %s21, 0
    %p48 = por %p46, %p47
    %s50 = sadd.s32 %s49, 1
    %p53 = scmp.eq.s32.totalorder %s15, 1
    %p54 = scmp.ne.s32.totalorder %s49, %s51
    %p55 = scmp.eq.s32.totalorder %s15, 0
    %p56 = por %p54, %p55
    %p57 = scmp.ne.s32.totalorder %s49, %s51
    %p58 = scmp.eq.s32.totalorder %s20, 1
    %p59 = por %p57, %p58
    %p60 = scmp.ne.s32.totalorder %s51, %s52
    %p61 = scmp.eq.s32.totalorder %s20, 0
    %p62 = por %p60, %p61
    %p63 = scmp.ne.s32.totalorder %s51, %s52
    %p64 = scmp.eq.s32.totalorder %s21, 1
    %p65 = por %p63, %p64
    %p67 = scmp.ne.s32.totalorder %s52, %s66
    %p68 = scmp.eq.s32.totalorder %s21, 0
    %p69 = por %p67, %p68
    %s71 = sadd.s32 %s70, 1
    %p74 = scmp.eq.s32.totalorder %s15, 1
    %p75 = scmp.ne.s32.totalorder %s70, %s72
    %p76 = scmp.eq.s32.totalorder %s15, 0
    %p77 = por %p75, %p76
    %p78 = scmp.ne.s32.totalorder %s70, %s72
    %p79 = scmp.eq.s32.totalorder %s20, 1
    %p80 = por %p78, %p79
    %p81 = scmp.ne.s32.totalorder %s72, %s73
    %p82 = scmp.eq.s32.totalorder %s20, 0
    %p83 = por %p81, %p82
    %p84 = scmp.ne.s32.totalorder %s72, %s73
    %p85 = scmp.eq.s32.totalorder %s21, 1
    %p86 = por %p84, %p85
    %p88 = scmp.ne.s32.totalorder %s73, %s87
    %p89 = scmp.eq.s32.totalorder %s21, 0
    %p90 = por %p88, %p89
    %s92 = sadd.s32 %s91, 1
    %p95 = scmp.eq.s32.totalorder %s15, 1
    %p96 = scmp.ne.s32.totalorder %s91, %s93
    %p97 = scmp.eq.s32.totalorder %s15, 0
    %p98 = por %p96, %p97
    %p99 = scmp.ne.s32.totalorder %s91, %s93
    %p100 = scmp.eq.s32.totalorder %s20, 1
    %p101 = por %p99, %p100
    %p102 = scmp.ne.s32.totalorder %s93, %s94
    %p103 = scmp.eq.s32.totalorder %s20, 0
    %p104 = por %p102, %p103
    %p105 = scmp.ne.s32.totalorder %s93, %s94
    %p106 = scmp.eq.s32.totalorder %s21, 1
    %p107 = por %p105, %p106
    %p109 = scmp.ne.s32.totalorder %s94, %s108
    %p110 = scmp.eq.s32.totalorder %s21, 0
    %p111 = por %p109, %p110
    %s113 = sadd.s32 %s112, 1
    %p116 = scmp.eq.s32.totalorder %s15, 1
    %p117 = scmp.ne.s32.totalorder %s112, %s114
    %p118 = scmp.eq.s32.totalorder %s15, 0
    %p119 = por %p117, %p118
    %p120 = scmp.ne.s32.totalorder %s112, %s114
    %p121 = scmp.eq.s32.totalorder %s20, 1
    %p122 = por %p120, %p121
    %p123 = scmp.ne.s32.totalorder %s114, %s115
    %p124 = scmp.eq.s32.totalorder %s20, 0
    %p125 = por %p123, %p124
    %p126 = scmp.ne.s32.totalorder %s114, %s115
    %p127 = scmp.eq.s32.totalorder %s21, 1
    %p128 = por %p126, %p127
    %p130 = scmp.ne.s32.totalorder %s115, %s129
    %p131 = scmp.eq.s32.totalorder %s21, 0
    %p132 = por %p130, %p131
    %s134 = sadd.s32 %s133, 1
    %p137 = scmp.eq.s32.totalorder %s15, 1
    %p138 = scmp.ne.s32.totalorder %s133, %s135
    %p139 = scmp.eq.s32.totalorder %s15, 0
    %p140 = por %p138, %p139
    %p141 = scmp.ne.s32.totalorder %s133, %s135
    %p142 = scmp.eq.s32.totalorder %s20, 1
    %p143 = por %p141, %p142
    %p144 = scmp.ne.s32.totalorder %s135, %s136
    %p145 = scmp.eq.s32.totalorder %s20, 0
    %p146 = por %p144, %p145
    %p147 = scmp.ne.s32.totalorder %s135, %s136
    %p148 = scmp.eq.s32.totalorder %s21, 1
    %p149 = por %p147, %p148
    %p151 = scmp.ne.s32.totalorder %s136, %s150
    %p152 = scmp.eq.s32.totalorder %s21, 0
    %p153 = por %p151, %p152
    %s155 = sadd.s32 %s154, 1
    %p158 = scmp.eq.s32.totalorder %s15, 1
    %p159 = scmp.ne.s32.totalorder %s154, %s156
    %p160 = scmp.eq.s32.totalorder %s15, 0
    %p161 = por %p159, %p160
    %p162 = scmp.ne.s32.totalorder %s154, %s156
    %p163 = scmp.eq.s32.totalorder %s20, 1
    %p164 = por %p162, %p163
    %p165 = scmp.ne.s32.totalorder %s156, %s157
    %p166 = scmp.eq.s32.totalorder %s20, 0
    %p167 = por %p165, %p166
    %p168 = scmp.ne.s32.totalorder %s156, %s157
    %p169 = scmp.eq.s32.totalorder %s21, 1
    %p170 = por %p168, %p169
    %p172 = scmp.ne.s32.totalorder %s157, %s171
    %p173 = scmp.eq.s32.totalorder %s21, 0
    %p174 = por %p172, %p173
    %s176 = sadd.s32 %s175, 1
    %p179 = scmp.eq.s32.totalorder %s15, 1
    %p180 = scmp.ne.s32.totalorder %s175, %s177
    %p181 = scmp.eq.s32.totalorder %s15, 0
    %p182 = por %p180, %p181
    %p183 = scmp.ne.s32.totalorder %s175, %s177
    %p184 = scmp.eq.s32.totalorder %s20, 1
    %p185 = por %p183, %p184
    %p186 = scmp.ne.s32.totalorder %s177, %s178
    %p187 = scmp.eq.s32.totalorder %s20, 0
    %p188 = por %p186, %p187
    %p189 = scmp.ne.s32.totalorder %s177, %s178
    %p190 = scmp.eq.s32.totalorder %s21, 1
    %p191 = por %p189, %p190
    %p193 = scmp.ne.s32.totalorder %s178, %s192
    %p194 = scmp.eq.s32.totalorder %s21, 0
    %p195 = por %p193, %p194
    %s197 = sadd.s32 %s196, 1
    %p200 = scmp.eq.s32.totalorder %s15, 1
    %p201 = scmp.ne.s32.totalorder %s196, %s198
    %p202 = scmp.eq.s32.totalorder %s15, 0
    %p203 = por %p201, %p202
    %p204 = scmp.ne.s32.totalorder %s196, %s198
    %p205 = scmp.eq.s32.totalorder %s20, 1
    %p206 = por %p204, %p205
    %p207 = scmp.ne.s32.totalorder %s198, %s199
    %p208 = scmp.eq.s32.totalorder %s20, 0
    %p209 = por %p207, %p208
    %p210 = scmp.ne.s32.totalorder %s198, %s199
    %p211 = scmp.eq.s32.totalorder %s21, 1
    %p212 = por %p210, %p211
    %p214 = scmp.ne.s32.totalorder %s199, %s213
    %p215 = scmp.eq.s32.totalorder %s21, 0
    %p216 = por %p214, %p215
    %s217 = ssub.s32 %s15, %s22
    %p218 = scmp.eq.s32.totalorder %s217, 0
    %s220 = sadd.s32 %s219, 1
    %s221 = scalar_select %p218, %s219, %s220
    %p224 = pneg %p218
    %p225 = scmp.eq.s32.totalorder %s15, 1
    %p226 = por %p224, %p225
    %p227 = scmp.ne.s32.totalorder %s219, %s222
    %p228 = scmp.eq.s32.totalorder %s15, 0
    %p229 = por %p227, %p228
    %p230 = scmp.ne.s32.totalorder %s219, %s222
    %p231 = scmp.eq.s32.totalorder %s20, 1
    %p232 = por %p230, %p231
    %p233 = scmp.ne.s32.totalorder %s222, %s223
    %p234 = scmp.eq.s32.totalorder %s20, 0
    %p235 = por %p233, %p234
    %p236 = scmp.ne.s32.totalorder %s222, %s223
    %p237 = scmp.eq.s32.totalorder %s21, 1
    %p238 = por %p236, %p237
    %p240 = scmp.ne.s32.totalorder %s223, %s239
    %p241 = scmp.eq.s32.totalorder %s21, 0
    %p242 = por %p240, %p241
    %p243 = scmp.le.s32.totalorder 1, %s15
    %p244 = scmp.lt.s32.totalorder %s15, 3
    %p245 = pnand %p243, %p244
    %p246 = pneg %p245
    // Predicated region
    $region9: #{tpu_custom_call.1} parent=5 // pred_check
      _
    $region10: #{tpu_custom_call.1} parent=5 // pred_check_branch
      %248 = sbr.rel (%p245) target = $region12
    $region11: #{tpu_custom_call.1} parent=5 // pred_region
      %s249 = ssub.s32 %s15, 1
      // Predicated region
      $region13: #{tpu_custom_call.1} parent=11 // pred_check
        %p250 = pneg %p62
      $region14: #{tpu_custom_call.1} parent=11 // pred_check_branch
        %252 = sbr.rel (%p250) target = $region16
      $region15: #{tpu_custom_call.1} parent=11 // pred_region
        _
      $region16: #{tpu_custom_call.1} parent=11 // pred_fallthru
        _
      // Predicated region
      $region17: #{tpu_custom_call.1} parent=11 // pred_check
        %p253 = pneg %p83
      $region18: #{tpu_custom_call.1} parent=11 // pred_check_branch
        %255 = sbr.rel (%p253) target = $region20
      $region19: #{tpu_custom_call.1} parent=11 // pred_region
        _
      $region20: #{tpu_custom_call.1} parent=11 // pred_fallthru
        _
      // Predicated region
      $region21: #{tpu_custom_call.1} parent=11 // pred_check
        %p256 = pneg %p104
      $region22: #{tpu_custom_call.1} parent=11 // pred_check_branch
        %258 = sbr.rel (%p256) target = $region24
      $region23: #{tpu_custom_call.1} parent=11 // pred_region
        _
      $region24: #{tpu_custom_call.1} parent=11 // pred_fallthru
        _
      // Predicated region
      $region25: #{tpu_custom_call.1} parent=11 // pred_check
        %p259 = pneg %p125
      $region26: #{tpu_custom_call.1} parent=11 // pred_check_branch
        %261 = sbr.rel (%p259) target = $region28
      $region27: #{tpu_custom_call.1} parent=11 // pred_region
        _
      $region28: #{tpu_custom_call.1} parent=11 // pred_fallthru
        _
      // Predicated region
      $region29: #{tpu_custom_call.1} parent=11 // pred_check
        %p262 = pneg %p146
      $region30: #{tpu_custom_call.1} parent=11 // pred_check_branch
        %264 = sbr.rel (%p262) target = $region32
      $region31: #{tpu_custom_call.1} parent=11 // pred_region
        _
      $region32: #{tpu_custom_call.1} parent=11 // pred_fallthru
        _
      // Predicated region
      $region33: #{tpu_custom_call.1} parent=11 // pred_check
        %p265 = pneg %p167
      $region34: #{tpu_custom_call.1} parent=11 // pred_check_branch
        %267 = sbr.rel (%p265) target = $region36
      $region35: #{tpu_custom_call.1} parent=11 // pred_region
        _
      $region36: #{tpu_custom_call.1} parent=11 // pred_fallthru
        _
      // Predicated region
      $region37: #{tpu_custom_call.1} parent=11 // pred_check
        %p268 = pneg %p188
      $region38: #{tpu_custom_call.1} parent=11 // pred_check_branch
        %270 = sbr.rel (%p268) target = $region40
      $region39: #{tpu_custom_call.1} parent=11 // pred_region
        _
      $region40: #{tpu_custom_call.1} parent=11 // pred_fallthru
        _
      // Predicated region
      $region41: #{tpu_custom_call.1} parent=11 // pred_check
        %p271 = pneg %p209
      $region42: #{tpu_custom_call.1} parent=11 // pred_check_branch
        %273 = sbr.rel (%p271) target = $region44
      $region43: #{tpu_custom_call.1} parent=11 // pred_region
        _
      $region44: #{tpu_custom_call.1} parent=11 // pred_fallthru
        _
    $region12: #{tpu_custom_call.1} parent=5 // pred_fallthru
      _
    %p274 = scmp.lt.s32.totalorder %s15, 2
    // Predicated region
    $region45: #{tpu_custom_call.1} parent=5 // pred_check
      %p275 = pneg %p274
    $region46: #{tpu_custom_call.1} parent=5 // pred_check_branch
      %277 = sbr.rel (%p275) target = $region48
    $region47: #{tpu_custom_call.1} parent=5 // pred_region
      // Predicated region
      $region49: #{tpu_custom_call.1} parent=47 // pred_check
        %p278 = pneg %p35
      $region50: #{tpu_custom_call.1} parent=47 // pred_check_branch
        %280 = sbr.rel (%p278) target = $region52
      $region51: #{tpu_custom_call.1} parent=47 // pred_region
        %s281 = smul.u32 25, %s15
        %p282 = scmp.lt.s32.totalorder %s281, 49
        %s283 = scalar_select %p282, %s281, 49
        %s284 = smul.addr %s283, 4
        %s285 = scalar_lea.vmem %s0, %s284
        %s286 = smul.u32 25, %s15
      $region52: #{tpu_custom_call.1} parent=47 // pred_fallthru
        _
    $region48: #{tpu_custom_call.1} parent=5 // pred_fallthru
      _
    %p287 = scmp.le.s32.totalorder 1, %s15
    %p288 = scmp.lt.s32.totalorder %s15, 3
    %p289 = pnand %p287, %p288
    %p290 = pneg %p289
    // Predicated region
    $region53: #{tpu_custom_call.1} parent=5 // pred_check
      _
    $region54: #{tpu_custom_call.1} parent=5 // pred_check_branch
      %292 = sbr.rel (%p289) target = $region56
    $region55: #{tpu_custom_call.1} parent=5 // pred_region
      %s293 = ssub.s32 %s15, 1
      %s294 = smul.u32 25, %s20
      %p295 = scmp.lt.s32.totalorder %s294, 49
      %s296 = scalar_select %p295, %s294, 49
      %s297 = smul.addr %s296, 4
      %s298 = scalar_lea.vmem %s0, %s297
      %p299 = pneg %p41
      %p300 = pneg %p38
      %p301 = pneg %p62
      %p302 = pneg %p59
      %p303 = pneg %p83
      %p304 = pneg %p80
      %p305 = pneg %p104
      %p306 = pneg %p101
      %p307 = pneg %p125
      %p308 = pneg %p122
      %p309 = pneg %p146
      %p310 = pneg %p143
      %p311 = pneg %p167
      %p312 = pneg %p164
      %p313 = pneg %p188
      %p314 = pneg %p185
      %p315 = pneg %p209
      %p316 = pneg %p206
      %p317 = pneg %p235
      %p318 = pneg %p232
      %s319 = smul.u32 25, %s20
      %p320 = scmp.lt.s32.totalorder %s319, 49
      %s321 = scalar_select %p320, %s319, 49
      %s322 = smul.addr %s321, 8
      %s323 = scalar_lea.vmem %s9, %s322
      %s324 = smul.u32 25, %s20
      %p325 = scmp.lt.s32.totalorder %s324, 49
      %s326 = scalar_select %p325, %s324, 49
      %s327 = smul.addr %s326, 4
      %s328 = scalar_lea.vmem %s0, %s327
      %s329 = smul.u32 25, %s20
      %s330 = smul.u32 25, %s20
      %p331 = scmp.lt.s32.totalorder %s330, 49
      %s332 = scalar_select %p331, %s330, 49
      %s333 = smul.addr %s332, 8
      %s334 = scalar_lea.vmem %s9, %s333
      %s335 = smul.u32 25, %s20
      %v337 = vld [vmem:[%s328] sm:$0xf]
      %v338 = vld [vmem:[%s328 + $0x4] sm:$0xf]
      %v339 = vld [vmem:[%s328 + $0x8] sm:$0xf]
      %v340 = vld [vmem:[%s328 + $0xc] sm:$0xf]
      %v341 = vld [vmem:[%s328 + $0x10] sm:$0xf]
      %v342 = vld [vmem:[%s328 + $0x14] sm:$0xf]
      %v343 = vld [vmem:[%s328 + $0x18] sm:$0xf]
      %v344 = vld [vmem:[%s328 + $0x1c] sm:$0xf]
      %v345 = vld [vmem:[%s328 + $0x20] sm:$0xf]
      %v346 = vld [vmem:[%s328 + $0x24] sm:$0xf]
      %v347 = vld [vmem:[%s328 + $0x28] sm:$0xf]
      %v348 = vld [vmem:[%s328 + $0x2c] sm:$0xf]
      %v349 = vld [vmem:[%s328 + $0x30] sm:$0xf]
      %v350 = vld [vmem:[%s328 + $0x34] sm:$0xf]
      %v351 = vld [vmem:[%s328 + $0x38] sm:$0xf]
      %v352 = vld [vmem:[%s328 + $0x3c] sm:$0xf]
      %v353 = vld [vmem:[%s328 + $0x40] sm:$0xf]
      %v354 = vld [vmem:[%s328 + $0x44] sm:$0xf]
      %v355 = vld [vmem:[%s328 + $0x48] sm:$0xf]
      %v356 = vld [vmem:[%s328 + $0x4c] sm:$0xf]
      %v357 = vld [vmem:[%s328 + $0x50] sm:$0xf]
      %v358 = vld [vmem:[%s328 + $0x54] sm:$0xf]
      %v359 = vld [vmem:[%s328 + $0x58] sm:$0xf]
      %v360 = vld [vmem:[%s328 + $0x5c] sm:$0xf]
      %v361 = vld [vmem:[%s328 + $0x60] sm:$0xf]
      %v362 = vld [vmem:[%s1] sm:$0xf]
      %v363 = vld [vmem:[%s1 + $0x4] sm:$0xf]
      %v364 = vld [vmem:[%s1 + $0x8] sm:$0xf]
      %v365 = vld [vmem:[%s1 + $0xc] sm:$0xf]
      %v366 = vld [vmem:[%s1 + $0x10] sm:$0x3]
      %v367 = vld [vmem:[%s4] sm:$0x1]
      %v369 = vlaneseq
      %v370 = vshrl.u32 %v369, 7
      %v371 = vsub.s32 0, %v370
      %v372 = vrot.slane %v367, %v371
      %v399 = vunpack.c.l.b16 %v337
      %v400 = vunpack.c.l.b16 %v338
      %v401 = vunpack.c.l.b16 %v339
      %v402 = vunpack.c.l.b16 %v340
      %v403 = vunpack.c.l.b16 %v341
      %v404 = vunpack.c.l.b16 %v342
      %v405 = vunpack.c.l.b16 %v343
      %v406 = vunpack.c.l.b16 %v344
      %v407 = vunpack.c.l.b16 %v345
      %v408 = vunpack.c.l.b16 %v346
      %v409 = vunpack.c.l.b16 %v347
      %v410 = vunpack.c.l.b16 %v348
      %v411 = vunpack.c.l.b16 %v349
      %v412 = vunpack.c.l.b16 %v350
      %v413 = vunpack.c.l.b16 %v351
      %v414 = vunpack.c.l.b16 %v352
      %v415 = vunpack.c.l.b16 %v353
      %v416 = vunpack.c.l.b16 %v354
      %v417 = vunpack.c.l.b16 %v355
      %v418 = vunpack.c.l.b16 %v356
      %v419 = vunpack.c.l.b16 %v357
      %v420 = vunpack.c.l.b16 %v358
      %v421 = vunpack.c.l.b16 %v359
      %v422 = vunpack.c.l.b16 %v360
      %v423 = vunpack.c.l.b16 %v361
      %v424 = vpack.c.b16 %v400, %v399
      %v425 = vpack.c.b16 %v402, %v401
      %v426 = vpack.c.b16 %v404, %v403
      %v427 = vpack.c.b16 %v406, %v405
      %v428 = vpack.c.b16 %v408, %v407
      %v429 = vpack.c.b16 %v410, %v409
      %v430 = vpack.c.b16 %v412, %v411
      %v431 = vpack.c.b16 %v414, %v413
      %v432 = vpack.c.b16 %v416, %v415
      %v433 = vpack.c.b16 %v418, %v417
      %v434 = vpack.c.b16 %v420, %v419
      %v435 = vpack.c.b16 %v422, %v421
      %v436 = vpack.c.b16 %v423, %v423
      %v442 = vunpack.c.l.b16 %v362
      %v443 = vunpack.c.l.b16 %v363
      %v444 = vunpack.c.l.b16 %v364
      %v445 = vunpack.c.l.b16 %v365
      %v446 = vunpack.c.l.b16 %v366
      %v447 = vpack.c.b16 %v443, %v442
      %v448 = vpack.c.b16 %v445, %v444
      %v449 = vpack.c.b16 %v446, %v446
      %vm452 = vcmask 293888
      %v454 = vsel %vm452, %v424, 0
      %v457 = vsel %vm452, %v425, 0
      %v460 = vsel %vm452, %v426, 0
      %v463 = vsel %vm452, %v427, 0
      %v466 = vsel %vm452, %v428, 0
      %v469 = vsel %vm452, %v429, 0
      %v472 = vsel %vm452, %v430, 0
      %v475 = vsel %vm452, %v431, 0
      %v478 = vsel %vm452, %v432, 0
      %v481 = vsel %vm452, %v433, 0
      %v484 = vsel %vm452, %v434, 0
      %v487 = vsel %vm452, %v435, 0
      %v490 = vsel %vm452, %v436, 0
      %vm492 = vcmask 1041408
      %v494 = vsel %vm492, %v449, 0
      %496 = vmatprep.subr.bf16.mxu0 0
      %497 = vmatpush1.bf16.msra.mxu0 %v447
      %498 = vmatprep.subr.bf16.mxu0 0
      %499 = vmatpush1.bf16.msra.mxu0 %v448
      %500 = vmatprep.subr.bf16.mxu0 0
      %501 = vmatpush1.bf16.msra.mxu0 %v494
      %502 = vmatprep.subr.bf16.mxu0 0
      %503 = vmatpush1.bf16.msra.mxu0 0
      %504 = vmatprep.subr.bf16.mxu0 0
      %505 = vmatpush1.bf16.msra.mxu0 0
      %506 = vmatprep.subr.bf16.mxu0 0
      %507 = vmatpush1.bf16.msra.mxu0 0
      %508 = vmatprep.subr.bf16.mxu0 0
      %509 = vmatpush1.bf16.msra.mxu0 0
      %510 = vmatprep.subr.bf16.mxu0 0
      %511 = vmatpush1.bf16.msra.mxu0 0
      %512 = vmatprep.subr.bf16.mxu0 0
      %513 = vmatpush1.bf16.msra.mxu0 0
      %514 = vmatprep.subr.bf16.mxu0 0
      %515 = vmatpush1.bf16.msra.mxu0 0
      %516 = vmatprep.subr.bf16.mxu0 0
      %517 = vmatpush1.bf16.msra.mxu0 0
      %518 = vmatprep.subr.bf16.mxu0 0
      %519 = vmatpush1.bf16.msra.mxu0 0
      %520 = vmatprep.subr.bf16.mxu0 0
      %521 = vmatpush1.bf16.msra.mxu0 0
      %522 = vmatprep.subr.bf16.mxu0 0
      %523 = vmatpush1.bf16.msra.mxu0 0
      %524 = vmatprep.subr.bf16.mxu0 0
      %525 = vmatpush1.bf16.msra.mxu0 0
      %526 = vmatprep.subr.bf16.mxu0 0
      %527 = vmatpush1.bf16.msra.mxu0 0
      %528 = vmatprep.mubr.bf16.mxu0 0
      %529 = vmatmul.mubr.bf16.gmra.mrb[0].mxu0 %v454
      %v530 = vpop.f32.mrb[0].mxu0
      %v531 = vadd.f32 %v372, %v530
      %v532 = vpop.f32.mrb[0].mxu0
      %v533 = vpop.f32.mrb[0].mxu0
      %v534 = vadd.f32 %v372, %v533
      %v535 = vpop.f32.mrb[0].mxu0
      %536 = vmatprep.mubr.bf16.mxu0 0
      %537 = vmatmul.mubr.bf16.gmra.mrb[0].mxu0 %v457
      %v538 = vpop.f32.mrb[0].mxu0
      %v539 = vadd.f32 %v372, %v538
      %v540 = vpop.f32.mrb[0].mxu0
      %v541 = vpop.f32.mrb[0].mxu0
      %v542 = vadd.f32 %v372, %v541
      %v543 = vpop.f32.mrb[0].mxu0
      %544 = vmatprep.mubr.bf16.mxu0 0
      %545 = vmatmul.mubr.bf16.gmra.mrb[0].mxu0 %v460
      %v546 = vpop.f32.mrb[0].mxu0
      %v547 = vadd.f32 %v372, %v546
      %v548 = vpop.f32.mrb[0].mxu0
      %v549 = vpop.f32.mrb[0].mxu0
      %v550 = vadd.f32 %v372, %v549
      %v551 = vpop.f32.mrb[0].mxu0
      %552 = vmatprep.mubr.bf16.mxu0 0
      %553 = vmatmul.mubr.bf16.gmra.mrb[0].mxu0 %v463
      %v554 = vpop.f32.mrb[0].mxu0
      %v555 = vadd.f32 %v372, %v554
      %v556 = vpop.f32.mrb[0].mxu0
      %v557 = vpop.f32.mrb[0].mxu0
      %v558 = vadd.f32 %v372, %v557
      %v559 = vpop.f32.mrb[0].mxu0
      %560 = vmatprep.mubr.bf16.mxu0 0
      %561 = vmatmul.mubr.bf16.gmra.mrb[0].mxu0 %v466
      %v562 = vpop.f32.mrb[0].mxu0
      %v563 = vadd.f32 %v372, %v562
      %v564 = vpop.f32.mrb[0].mxu0
      %v565 = vpop.f32.mrb[0].mxu0
      %v566 = vadd.f32 %v372, %v565
      %v567 = vpop.f32.mrb[0].mxu0
      %568 = vmatprep.mubr.bf16.mxu0 0
      %569 = vmatmul.mubr.bf16.gmra.mrb[0].mxu0 %v469
      %v570 = vpop.f32.mrb[0].mxu0
      %v571 = vadd.f32 %v372, %v570
      %v572 = vpop.f32.mrb[0].mxu0
      %v573 = vpop.f32.mrb[0].mxu0
      %v574 = vadd.f32 %v372, %v573
      %v575 = vpop.f32.mrb[0].mxu0
      %576 = vmatprep.mubr.bf16.mxu0 0
      %577 = vmatmul.mubr.bf16.gmra.mrb[0].mxu0 %v472
      %v578 = vpop.f32.mrb[0].mxu0
      %v579 = vadd.f32 %v372, %v578
      %v580 = vpop.f32.mrb[0].mxu0
      %v581 = vpop.f32.mrb[0].mxu0
      %v582 = vadd.f32 %v372, %v581
      %v583 = vpop.f32.mrb[0].mxu0
      %584 = vmatprep.mubr.bf16.mxu0 0
      %585 = vmatmul.mubr.bf16.gmra.mrb[0].mxu0 %v475
      %v586 = vpop.f32.mrb[0].mxu0
      %v587 = vadd.f32 %v372, %v586
      %v588 = vpop.f32.mrb[0].mxu0
      %v589 = vpop.f32.mrb[0].mxu0
      %v590 = vadd.f32 %v372, %v589
      %v591 = vpop.f32.mrb[0].mxu0
      %592 = vmatprep.mubr.bf16.mxu0 0
      %593 = vmatmul.mubr.bf16.gmra.mrb[0].mxu0 %v478
      %v594 = vpop.f32.mrb[0].mxu0
      %v595 = vadd.f32 %v372, %v594
      %v596 = vpop.f32.mrb[0].mxu0
      %v597 = vpop.f32.mrb[0].mxu0
      %v598 = vadd.f32 %v372, %v597
      %v599 = vpop.f32.mrb[0].mxu0
      %600 = vmatprep.mubr.bf16.mxu0 0
      %601 = vmatmul.mubr.bf16.gmra.mrb[0].mxu0 %v481
      %v602 = vpop.f32.mrb[0].mxu0
      %v603 = vadd.f32 %v372, %v602
      %v604 = vpop.f32.mrb[0].mxu0
      %v605 = vpop.f32.mrb[0].mxu0
      %v606 = vadd.f32 %v372, %v605
      %v607 = vpop.f32.mrb[0].mxu0
      %608 = vmatprep.mubr.bf16.mxu0 0
      %609 = vmatmul.mubr.bf16.gmra.mrb[0].mxu0 %v484
      %v610 = vpop.f32.mrb[0].mxu0
      %v611 = vadd.f32 %v372, %v610
      %v612 = vpop.f32.mrb[0].mxu0
      %v613 = vpop.f32.mrb[0].mxu0
      %v614 = vadd.f32 %v372, %v613
      %v615 = vpop.f32.mrb[0].mxu0
      %616 = vmatprep.mubr.bf16.mxu0 0
      %617 = vmatmul.mubr.bf16.gmra.mrb[0].mxu0 %v487
      %v618 = vpop.f32.mrb[0].mxu0
      %v619 = vadd.f32 %v372, %v618
      %v620 = vpop.f32.mrb[0].mxu0
      %v621 = vpop.f32.mrb[0].mxu0
      %v622 = vadd.f32 %v372, %v621
      %v623 = vpop.f32.mrb[0].mxu0
      %624 = vmatprep.mubr.bf16.mxu0 0
      %625 = vmatmul.mubr.bf16.gmra.mrb[0].mxu0 %v490
      %v626 = vpop.f32.mrb[0].mxu0
      %v627 = vadd.f32 %v372, %v626
      %v628 = vpop.f32.mrb[0].mxu0
      %v629 = vpop.f32.mrb[0].mxu0
      %v630 = vpop.f32.mrb[0].mxu0
      %631 = vdwg.mxu0
      %v632 = vand.u32 2147483647, %v531
      %v633 = vand.u32 2147483647, %v534
      %v634 = vand.u32 2147483647, %v539
      %v635 = vand.u32 2147483647, %v542
      %v636 = vand.u32 2147483647, %v547
      %v637 = vand.u32 2147483647, %v550
      %v638 = vand.u32 2147483647, %v555
      %v639 = vand.u32 2147483647, %v558
      %v640 = vand.u32 2147483647, %v563
      %v641 = vand.u32 2147483647, %v566
      %v642 = vand.u32 2147483647, %v571
      %v643 = vand.u32 2147483647, %v574
      %v644 = vand.u32 2147483647, %v579
      %v645 = vand.u32 2147483647, %v582
      %v646 = vand.u32 2147483647, %v587
      %v647 = vand.u32 2147483647, %v590
      %v648 = vand.u32 2147483647, %v595
      %v649 = vand.u32 2147483647, %v598
      %v650 = vand.u32 2147483647, %v603
      %v651 = vand.u32 2147483647, %v606
      %v652 = vand.u32 2147483647, %v611
      %v653 = vand.u32 2147483647, %v614
      %v654 = vand.u32 2147483647, %v619
      %v655 = vand.u32 2147483647, %v622
      %v656 = vand.u32 2147483647, %v627
      %vm657 = vcmask 64512
      %v658 = vsel %vm657, %v632, -inf
      %659 = vmax.xlane.f32.xlu0 %v658
      %v660 = vpop.xlane.xlu0 %659
      %v661 = vsel %vm657, %v633, -inf
      %662 = vmax.xlane.f32.xlu0 %v661
      %v663 = vpop.xlane.xlu0 %662
      %v664 = vsel %vm657, %v634, -inf
      %665 = vmax.xlane.f32.xlu0 %v664
      %v666 = vpop.xlane.xlu0 %665
      %v667 = vsel %vm657, %v635, -inf
      %668 = vmax.xlane.f32.xlu0 %v667
      %v669 = vpop.xlane.xlu0 %668
      %v670 = vsel %vm657, %v636, -inf
      %671 = vmax.xlane.f32.xlu0 %v670
      %v672 = vpop.xlane.xlu0 %671
      %v673 = vsel %vm657, %v637, -inf
      %674 = vmax.xlane.f32.xlu0 %v673
      %v675 = vpop.xlane.xlu0 %674
      %v676 = vsel %vm657, %v638, -inf
      %677 = vmax.xlane.f32.xlu0 %v676
      %v678 = vpop.xlane.xlu0 %677
      %v679 = vsel %vm657, %v639, -inf
      %680 = vmax.xlane.f32.xlu0 %v679
      %v681 = vpop.xlane.xlu0 %680
      %v682 = vsel %vm657, %v640, -inf
      %683 = vmax.xlane.f32.xlu0 %v682
      %v684 = vpop.xlane.xlu0 %683
      %v685 = vsel %vm657, %v641, -inf
      %686 = vmax.xlane.f32.xlu0 %v685
      %v687 = vpop.xlane.xlu0 %686
      %v688 = vsel %vm657, %v642, -inf
      %689 = vmax.xlane.f32.xlu0 %v688
      %v690 = vpop.xlane.xlu0 %689
      %v691 = vsel %vm657, %v643, -inf
      %692 = vmax.xlane.f32.xlu0 %v691
      %v693 = vpop.xlane.xlu0 %692
      %v694 = vsel %vm657, %v644, -inf
      %695 = vmax.xlane.f32.xlu0 %v694
      %v696 = vpop.xlane.xlu0 %695
      %v697 = vsel %vm657, %v645, -inf
      %698 = vmax.xlane.f32.xlu0 %v697
      %v699 = vpop.xlane.xlu0 %698
      %v700 = vsel %vm657, %v646, -inf
      %701 = vmax.xlane.f32.xlu0 %v700
      %v702 = vpop.xlane.xlu0 %701
      %v703 = vsel %vm657, %v647, -inf
      %704 = vmax.xlane.f32.xlu0 %v703
      %v705 = vpop.xlane.xlu0 %704
      %v706 = vsel %vm657, %v648, -inf
      %707 = vmax.xlane.f32.xlu0 %v706
      %v708 = vpop.xlane.xlu0 %707
      %v709 = vsel %vm657, %v649, -inf
      %710 = vmax.xlane.f32.xlu0 %v709
      %v711 = vpop.xlane.xlu0 %710
      %v712 = vsel %vm657, %v650, -inf
      %713 = vmax.xlane.f32.xlu0 %v712
      %v714 = vpop.xlane.xlu0 %713
      %v715 = vsel %vm657, %v651, -inf
      %716 = vmax.xlane.f32.xlu0 %v715
      %v717 = vpop.xlane.xlu0 %716
      %v718 = vsel %vm657, %v652, -inf
      %719 = vmax.xlane.f32.xlu0 %v718
      %v720 = vpop.xlane.xlu0 %719
      %v721 = vsel %vm657, %v653, -inf
      %722 = vmax.xlane.f32.xlu0 %v721
      %v723 = vpop.xlane.xlu0 %722
      %v724 = vsel %vm657, %v654, -inf
      %725 = vmax.xlane.f32.xlu0 %v724
      %v726 = vpop.xlane.xlu0 %725
      %v727 = vsel %vm657, %v655, -inf
      %728 = vmax.xlane.f32.xlu0 %v727
      %v729 = vpop.xlane.xlu0 %728
      %v730 = vsel %vm657, %v656, -inf
      %731 = vmax.xlane.f32.xlu0 %v730
      %v732 = vpop.xlane.xlu0 %731
      %vm733 = vcmp.ge.f32.partialorder %v632, %v660
      %vm734 = vcmp.ge.f32.partialorder %v633, %v663
      %vm735 = vcmp.ge.f32.partialorder %v634, %v666
      %vm736 = vcmp.ge.f32.partialorder %v635, %v669
      %vm737 = vcmp.ge.f32.partialorder %v636, %v672
      %vm738 = vcmp.ge.f32.partialorder %v637, %v675
      %vm739 = vcmp.ge.f32.partialorder %v638, %v678
      %vm740 = vcmp.ge.f32.partialorder %v639, %v681
      %vm741 = vcmp.ge.f32.partialorder %v640, %v684
      %vm742 = vcmp.ge.f32.partialorder %v641, %v687
      %vm743 = vcmp.ge.f32.partialorder %v642, %v690
      %vm744 = vcmp.ge.f32.partialorder %v643, %v693
      %vm745 = vcmp.ge.f32.partialorder %v644, %v696
      %vm746 = vcmp.ge.f32.partialorder %v645, %v699
      %vm747 = vcmp.ge.f32.partialorder %v646, %v702
      %vm748 = vcmp.ge.f32.partialorder %v647, %v705
      %vm749 = vcmp.ge.f32.partialorder %v648, %v708
      %vm750 = vcmp.ge.f32.partialorder %v649, %v711
      %vm751 = vcmp.ge.f32.partialorder %v650, %v714
      %vm752 = vcmp.ge.f32.partialorder %v651, %v717
      %vm753 = vcmp.ge.f32.partialorder %v652, %v720
      %vm754 = vcmp.ge.f32.partialorder %v653, %v723
      %vm755 = vcmp.ge.f32.partialorder %v654, %v726
      %vm756 = vcmp.ge.f32.partialorder %v655, %v729
      %vm757 = vcmp.ge.f32.partialorder %v656, %v732
      %v758 = vsel %vm733, -1.0, %v632
      %v759 = vsel %vm734, -1.0, %v633
      %v760 = vsel %vm735, -1.0, %v634
      %v761 = vsel %vm736, -1.0, %v635
      %v762 = vsel %vm737, -1.0, %v636
      %v763 = vsel %vm738, -1.0, %v637
      %v764 = vsel %vm739, -1.0, %v638
      %v765 = vsel %vm740, -1.0, %v639
      %v766 = vsel %vm741, -1.0, %v640
      %v767 = vsel %vm742, -1.0, %v641
      %v768 = vsel %vm743, -1.0, %v642
      %v769 = vsel %vm744, -1.0, %v643
      %v770 = vsel %vm745, -1.0, %v644
      %v771 = vsel %vm746, -1.0, %v645
      %v772 = vsel %vm747, -1.0, %v646
      %v773 = vsel %vm748, -1.0, %v647
      %v774 = vsel %vm749, -1.0, %v648
      %v775 = vsel %vm750, -1.0, %v649
      %v776 = vsel %vm751, -1.0, %v650
      %v777 = vsel %vm752, -1.0, %v651
      %v778 = vsel %vm753, -1.0, %v652
      %v779 = vsel %vm754, -1.0, %v653
      %v780 = vsel %vm755, -1.0, %v654
      %v781 = vsel %vm756, -1.0, %v655
      %v782 = vsel %vm757, -1.0, %v656
      %v783 = vsel %vm657, %v758, -inf
      %784 = vmax.xlane.f32.xlu0 %v783
      %v785 = vpop.xlane.xlu0 %784
      %v786 = vsel %vm657, %v759, -inf
      %787 = vmax.xlane.f32.xlu0 %v786
      %v788 = vpop.xlane.xlu0 %787
      %v789 = vsel %vm657, %v760, -inf
      %790 = vmax.xlane.f32.xlu0 %v789
      %v791 = vpop.xlane.xlu0 %790
      %v792 = vsel %vm657, %v761, -inf
      %793 = vmax.xlane.f32.xlu0 %v792
      %v794 = vpop.xlane.xlu0 %793
      %v795 = vsel %vm657, %v762, -inf
      %796 = vmax.xlane.f32.xlu0 %v795
      %v797 = vpop.xlane.xlu0 %796
      %v798 = vsel %vm657, %v763, -inf
      %799 = vmax.xlane.f32.xlu0 %v798
      %v800 = vpop.xlane.xlu0 %799
      %v801 = vsel %vm657, %v764, -inf
      %802 = vmax.xlane.f32.xlu0 %v801
      %v803 = vpop.xlane.xlu0 %802
      %v804 = vsel %vm657, %v765, -inf
      %805 = vmax.xlane.f32.xlu0 %v804
      %v806 = vpop.xlane.xlu0 %805
      %v807 = vsel %vm657, %v766, -inf
      %808 = vmax.xlane.f32.xlu0 %v807
      %v809 = vpop.xlane.xlu0 %808
      %v810 = vsel %vm657, %v767, -inf
      %811 = vmax.xlane.f32.xlu0 %v810
      %v812 = vpop.xlane.xlu0 %811
      %v813 = vsel %vm657, %v768, -inf
      %814 = vmax.xlane.f32.xlu0 %v813
      %v815 = vpop.xlane.xlu0 %814
      %v816 = vsel %vm657, %v769, -inf
      %817 = vmax.xlane.f32.xlu0 %v816
      %v818 = vpop.xlane.xlu0 %817
      %v819 = vsel %vm657, %v770, -inf
      %820 = vmax.xlane.f32.xlu0 %v819
      %v821 = vpop.xlane.xlu0 %820
      %v822 = vsel %vm657, %v771, -inf
      %823 = vmax.xlane.f32.xlu0 %v822
      %v824 = vpop.xlane.xlu0 %823
      %v825 = vsel %vm657, %v772, -inf
      %826 = vmax.xlane.f32.xlu0 %v825
      %v827 = vpop.xlane.xlu0 %826
      %v828 = vsel %vm657, %v773, -inf
      %829 = vmax.xlane.f32.xlu0 %v828
      %v830 = vpop.xlane.xlu0 %829
      %v831 = vsel %vm657, %v774, -inf
      %832 = vmax.xlane.f32.xlu0 %v831
      %v833 = vpop.xlane.xlu0 %832
      %v834 = vsel %vm657, %v775, -inf
      %835 = vmax.xlane.f32.xlu0 %v834
      %v836 = vpop.xlane.xlu0 %835
      %v837 = vsel %vm657, %v776, -inf
      %838 = vmax.xlane.f32.xlu0 %v837
      %v839 = vpop.xlane.xlu0 %838
      %v840 = vsel %vm657, %v777, -inf
      %841 = vmax.xlane.f32.xlu0 %v840
      %v842 = vpop.xlane.xlu0 %841
      %v843 = vsel %vm657, %v778, -inf
      %844 = vmax.xlane.f32.xlu0 %v843
      %v845 = vpop.xlane.xlu0 %844
      %v846 = vsel %vm657, %v779, -inf
      %847 = vmax.xlane.f32.xlu0 %v846
      %v848 = vpop.xlane.xlu0 %847
      %v849 = vsel %vm657, %v780, -inf
      %850 = vmax.xlane.f32.xlu0 %v849
      %v851 = vpop.xlane.xlu0 %850
      %v852 = vsel %vm657, %v781, -inf
      %853 = vmax.xlane.f32.xlu0 %v852
      %v854 = vpop.xlane.xlu0 %853
      %v855 = vsel %vm657, %v782, -inf
      %856 = vmax.xlane.f32.xlu0 %v855
      %v857 = vpop.xlane.xlu0 %856
      %vm858 = vcmp.ge.f32.partialorder %v632, %v785
      %vm859 = vcmp.ge.f32.partialorder %v633, %v788
      %vm860 = vcmp.ge.f32.partialorder %v634, %v791
      %vm861 = vcmp.ge.f32.partialorder %v635, %v794
      %vm862 = vcmp.ge.f32.partialorder %v636, %v797
      %vm863 = vcmp.ge.f32.partialorder %v637, %v800
      %vm864 = vcmp.ge.f32.partialorder %v638, %v803
      %vm865 = vcmp.ge.f32.partialorder %v639, %v806
      %vm866 = vcmp.ge.f32.partialorder %v640, %v809
      %vm867 = vcmp.ge.f32.partialorder %v641, %v812
      %vm868 = vcmp.ge.f32.partialorder %v642, %v815
      %vm869 = vcmp.ge.f32.partialorder %v643, %v818
      %vm870 = vcmp.ge.f32.partialorder %v644, %v821
      %vm871 = vcmp.ge.f32.partialorder %v645, %v824
      %vm872 = vcmp.ge.f32.partialorder %v646, %v827
      %vm873 = vcmp.ge.f32.partialorder %v647, %v830
      %vm874 = vcmp.ge.f32.partialorder %v648, %v833
      %vm875 = vcmp.ge.f32.partialorder %v649, %v836
      %vm876 = vcmp.ge.f32.partialorder %v650, %v839
      %vm877 = vcmp.ge.f32.partialorder %v651, %v842
      %vm878 = vcmp.ge.f32.partialorder %v652, %v845
      %vm879 = vcmp.ge.f32.partialorder %v653, %v848
      %vm880 = vcmp.ge.f32.partialorder %v654, %v851
      %vm881 = vcmp.ge.f32.partialorder %v655, %v854
      %vm882 = vcmp.ge.f32.partialorder %v656, %v857
      %v883 = vsel %vm858, %v531, 0.0
      %v884 = vsel %vm859, %v534, 0.0
      %v885 = vsel %vm860, %v539, 0.0
      %v886 = vsel %vm861, %v542, 0.0
      %v887 = vsel %vm862, %v547, 0.0
      %v888 = vsel %vm863, %v550, 0.0
      %v889 = vsel %vm864, %v555, 0.0
      %v890 = vsel %vm865, %v558, 0.0
      %v891 = vsel %vm866, %v563, 0.0
      %v892 = vsel %vm867, %v566, 0.0
      %v893 = vsel %vm868, %v571, 0.0
      %v894 = vsel %vm869, %v574, 0.0
      %v895 = vsel %vm870, %v579, 0.0
      %v896 = vsel %vm871, %v582, 0.0
      %v897 = vsel %vm872, %v587, 0.0
      %v898 = vsel %vm873, %v590, 0.0
      %v899 = vsel %vm874, %v595, 0.0
      %v900 = vsel %vm875, %v598, 0.0
      %v901 = vsel %vm876, %v603, 0.0
      %v902 = vsel %vm877, %v606, 0.0
      %v903 = vsel %vm878, %v611, 0.0
      %v904 = vsel %vm879, %v614, 0.0
      %v905 = vsel %vm880, %v619, 0.0
      %v906 = vsel %vm881, %v622, 0.0
      %v907 = vsel %vm882, %v627, 0.0
      %vm908 = vcmp.ne.f32.partialorder %v883, 0.0
      %vm909 = vcmp.ne.f32.partialorder %v884, 0.0
      %vm910 = vcmp.ne.f32.partialorder %v885, 0.0
      %vm911 = vcmp.ne.f32.partialorder %v886, 0.0
      %vm912 = vcmp.ne.f32.partialorder %v887, 0.0
      %vm913 = vcmp.ne.f32.partialorder %v888, 0.0
      %vm914 = vcmp.ne.f32.partialorder %v889, 0.0
      %vm915 = vcmp.ne.f32.partialorder %v890, 0.0
      %vm916 = vcmp.ne.f32.partialorder %v891, 0.0
      %vm917 = vcmp.ne.f32.partialorder %v892, 0.0
      %vm918 = vcmp.ne.f32.partialorder %v893, 0.0
      %vm919 = vcmp.ne.f32.partialorder %v894, 0.0
      %vm920 = vcmp.ne.f32.partialorder %v895, 0.0
      %vm921 = vcmp.ne.f32.partialorder %v896, 0.0
      %vm922 = vcmp.ne.f32.partialorder %v897, 0.0
      %vm923 = vcmp.ne.f32.partialorder %v898, 0.0
      %vm924 = vcmp.ne.f32.partialorder %v899, 0.0
      %vm925 = vcmp.ne.f32.partialorder %v900, 0.0
      %vm926 = vcmp.ne.f32.partialorder %v901, 0.0
      %vm927 = vcmp.ne.f32.partialorder %v902, 0.0
      %vm928 = vcmp.ne.f32.partialorder %v903, 0.0
      %vm929 = vcmp.ne.f32.partialorder %v904, 0.0
      %vm930 = vcmp.ne.f32.partialorder %v905, 0.0
      %vm931 = vcmp.ne.f32.partialorder %v906, 0.0
      %vm932 = vcmp.ne.f32.partialorder %v907, 0.0
      %v933 = vsel %vm908, 1, 0
      %v934 = vsel %vm909, 1, 0
      %v935 = vsel %vm910, 1, 0
      %v936 = vsel %vm911, 1, 0
      %v937 = vsel %vm912, 1, 0
      %v938 = vsel %vm913, 1, 0
      %v939 = vsel %vm914, 1, 0
      %v940 = vsel %vm915, 1, 0
      %v941 = vsel %vm916, 1, 0
      %v942 = vsel %vm917, 1, 0
      %v943 = vsel %vm918, 1, 0
      %v944 = vsel %vm919, 1, 0
      %v945 = vsel %vm920, 1, 0
      %v946 = vsel %vm921, 1, 0
      %v947 = vsel %vm922, 1, 0
      %v948 = vsel %vm923, 1, 0
      %v949 = vsel %vm924, 1, 0
      %v950 = vsel %vm925, 1, 0
      %v951 = vsel %vm926, 1, 0
      %v952 = vsel %vm927, 1, 0
      %v953 = vsel %vm928, 1, 0
      %v954 = vsel %vm929, 1, 0
      %v955 = vsel %vm930, 1, 0
      %v956 = vsel %vm931, 1, 0
      %v957 = vsel %vm932, 1, 0
      %v958 = vcvt.s32.f32 %v933
      %v959 = vcvt.s32.f32 %v934
      %v960 = vcvt.s32.f32 %v935
      %v961 = vcvt.s32.f32 %v936
      %v962 = vcvt.s32.f32 %v937
      %v963 = vcvt.s32.f32 %v938
      %v964 = vcvt.s32.f32 %v939
      %v965 = vcvt.s32.f32 %v940
      %v966 = vcvt.s32.f32 %v941
      %v967 = vcvt.s32.f32 %v942
      %v968 = vcvt.s32.f32 %v943
      %v969 = vcvt.s32.f32 %v944
      %v970 = vcvt.s32.f32 %v945
      %v971 = vcvt.s32.f32 %v946
      %v972 = vcvt.s32.f32 %v947
      %v973 = vcvt.s32.f32 %v948
      %v974 = vcvt.s32.f32 %v949
      %v975 = vcvt.s32.f32 %v950
      %v976 = vcvt.s32.f32 %v951
      %v977 = vcvt.s32.f32 %v952
      %v978 = vcvt.s32.f32 %v953
      %v979 = vcvt.s32.f32 %v954
      %v980 = vcvt.s32.f32 %v955
      %v981 = vcvt.s32.f32 %v956
      %v982 = vcvt.s32.f32 %v957
      %v983 = vpack.c.bf16 %v959, %v958
      %v984 = vpack.c.bf16 %v961, %v960
      %v985 = vpack.c.bf16 %v963, %v962
      %v986 = vpack.c.bf16 %v965, %v964
      %v987 = vpack.c.bf16 %v967, %v966
      %v988 = vpack.c.bf16 %v969, %v968
      %v989 = vpack.c.bf16 %v971, %v970
      %v990 = vpack.c.bf16 %v973, %v972
      %v991 = vpack.c.bf16 %v975, %v974
      %v992 = vpack.c.bf16 %v977, %v976
      %v993 = vpack.c.bf16 %v979, %v978
      %v994 = vpack.c.bf16 %v981, %v980
      %v995 = vpack.c.bf16 %v982, %v982
      %v996 = vld [vmem:[%s2] sm:$0xf]
      %v997 = vld [vmem:[%s2 + $0x4] sm:$0xf]
      %v998 = vld [vmem:[%s2 + $0x8] sm:$0xf]
      %v999 = vld [vmem:[%s2 + $0xc] sm:$0xf]
      %v1000 = vld [vmem:[%s2 + $0x10] sm:$0x3]
      %v1001 = vld [vmem:[%s5] sm:$0x1]
      %v1003 = vlaneseq
      %v1004 = vshrl.u32 %v1003, 7
      %v1005 = vsub.s32 0, %v1004
      %v1006 = vrot.slane %v1001, %v1005
      %v1013 = vunpack.c.l.b16 %v996
      %v1014 = vunpack.c.l.b16 %v997
      %v1015 = vunpack.c.l.b16 %v998
      %v1016 = vunpack.c.l.b16 %v999
      %v1017 = vunpack.c.l.b16 %v1000
      %v1018 = vpack.c.b16 %v1014, %v1013
      %v1019 = vpack.c.b16 %v1016, %v1015
      %v1020 = vpack.c.b16 %v1017, %v1017
      %v1024 = vsel %vm492, %v1020, 0
      %1026 = vmatprep.subr.bf16.mxu0 0
      %1027 = vmatpush1.bf16.msra.mxu0 %v1018
      %1028 = vmatprep.subr.bf16.mxu0 0
      %1029 = vmatpush1.bf16.msra.mxu0 %v1019
      %1030 = vmatprep.subr.bf16.mxu0 0
      %1031 = vmatpush1.bf16.msra.mxu0 %v1024
      %1032 = vmatprep.subr.bf16.mxu0 0
      %1033 = vmatpush1.bf16.msra.mxu0 0
      %1034 = vmatprep.subr.bf16.mxu0 0
      %1035 = vmatpush1.bf16.msra.mxu0 0
      %1036 = vmatprep.subr.bf16.mxu0 0
      %1037 = vmatpush1.bf16.msra.mxu0 0
      %1038 = vmatprep.subr.bf16.mxu0 0
      %1039 = vmatpush1.bf16.msra.mxu0 0
      %1040 = vmatprep.subr.bf16.mxu0 0
      %1041 = vmatpush1.bf16.msra.mxu0 0
      %1042 = vmatprep.subr.bf16.mxu0 0
      %1043 = vmatpush1.bf16.msra.mxu0 0
      %1044 = vmatprep.subr.bf16.mxu0 0
      %1045 = vmatpush1.bf16.msra.mxu0 0
      %1046 = vmatprep.subr.bf16.mxu0 0
      %1047 = vmatpush1.bf16.msra.mxu0 0
      %1048 = vmatprep.subr.bf16.mxu0 0
      %1049 = vmatpush1.bf16.msra.mxu0 0
      %1050 = vmatprep.subr.bf16.mxu0 0
      %1051 = vmatpush1.bf16.msra.mxu0 0
      %1052 = vmatprep.subr.bf16.mxu0 0
      %1053 = vmatpush1.bf16.msra.mxu0 0
      %1054 = vmatprep.subr.bf16.mxu0 0
      %1055 = vmatpush1.bf16.msra.mxu0 0
      %1056 = vmatprep.subr.bf16.mxu0 0
      %1057 = vmatpush1.bf16.msra.mxu0 0
      %1058 = vmatprep.mubr.bf16.mxu0 0
      %1059 = vmatmul.mubr.bf16.gmra.mrb[0].mxu0 %v454
      %v1060 = vpop.f32.mrb[0].mxu0
      %v1061 = vadd.f32 %v1006, %v1060
      %v1062 = vpop.f32.mrb[0].mxu0
      %v1063 = vpop.f32.mrb[0].mxu0
      %v1064 = vadd.f32 %v1006, %v1063
      %v1065 = vpop.f32.mrb[0].mxu0
      %1066 = vmatprep.mubr.bf16.mxu0 0
      %1067 = vmatmul.mubr.bf16.gmra.mrb[0].mxu0 %v457
      %v1068 = vpop.f32.mrb[0].mxu0
      %v1069 = vadd.f32 %v1006, %v1068
      %v1070 = vpop.f32.mrb[0].mxu0
      %v1071 = vpop.f32.mrb[0].mxu0
      %v1072 = vadd.f32 %v1006, %v1071
      %v1073 = vpop.f32.mrb[0].mxu0
      %1074 = vmatprep.mubr.bf16.mxu0 0
      %1075 = vmatmul.mubr.bf16.gmra.mrb[0].mxu0 %v460
      %v1076 = vpop.f32.mrb[0].mxu0
      %v1077 = vadd.f32 %v1006, %v1076
      %v1078 = vpop.f32.mrb[0].mxu0
      %v1079 = vpop.f32.mrb[0].mxu0
      %v1080 = vadd.f32 %v1006, %v1079
      %v1081 = vpop.f32.mrb[0].mxu0
      %1082 = vmatprep.mubr.bf16.mxu0 0
      %1083 = vmatmul.mubr.bf16.gmra.mrb[0].mxu0 %v463
      %v1084 = vpop.f32.mrb[0].mxu0
      %v1085 = vadd.f32 %v1006, %v1084
      %v1086 = vpop.f32.mrb[0].mxu0
      %v1087 = vpop.f32.mrb[0].mxu0
      %v1088 = vadd.f32 %v1006, %v1087
      %v1089 = vpop.f32.mrb[0].mxu0
      %1090 = vmatprep.mubr.bf16.mxu0 0
      %1091 = vmatmul.mubr.bf16.gmra.mrb[0].mxu0 %v466
      %v1092 = vpop.f32.mrb[0].mxu0
      %v1093 = vadd.f32 %v1006, %v1092
      %v1094 = vpop.f32.mrb[0].mxu0
      %v1095 = vpop.f32.mrb[0].mxu0
      %v1096 = vadd.f32 %v1006, %v1095
      %v1097 = vpop.f32.mrb[0].mxu0
      %1098 = vmatprep.mubr.bf16.mxu0 0
      %1099 = vmatmul.mubr.bf16.gmra.mrb[0].mxu0 %v469
      %v1100 = vpop.f32.mrb[0].mxu0
      %v1101 = vadd.f32 %v1006, %v1100
      %v1102 = vpop.f32.mrb[0].mxu0
      %v1103 = vpop.f32.mrb[0].mxu0
      %v1104 = vadd.f32 %v1006, %v1103
      %v1105 = vpop.f32.mrb[0].mxu0
      %1106 = vmatprep.mubr.bf16.mxu0 0
      %1107 = vmatmul.mubr.bf16.gmra.mrb[0].mxu0 %v472
      %v1108 = vpop.f32.mrb[0].mxu0
      %v1109 = vadd.f32 %v1006, %v1108
      %v1110 = vpop.f32.mrb[0].mxu0
      %v1111 = vpop.f32.mrb[0].mxu0
      %v1112 = vadd.f32 %v1006, %v1111
      %v1113 = vpop.f32.mrb[0].mxu0
      %1114 = vmatprep.mubr.bf16.mxu0 0
      %1115 = vmatmul.mubr.bf16.gmra.mrb[0].mxu0 %v475
      %v1116 = vpop.f32.mrb[0].mxu0
      %v1117 = vadd.f32 %v1006, %v1116
      %v1118 = vpop.f32.mrb[0].mxu0
      %v1119 = vpop.f32.mrb[0].mxu0
      %v1120 = vadd.f32 %v1006, %v1119
      %v1121 = vpop.f32.mrb[0].mxu0
      %1122 = vmatprep.mubr.bf16.mxu0 0
      %1123 = vmatmul.mubr.bf16.gmra.mrb[0].mxu0 %v478
      %v1124 = vpop.f32.mrb[0].mxu0
      %v1125 = vadd.f32 %v1006, %v1124
      %v1126 = vpop.f32.mrb[0].mxu0
      %v1127 = vpop.f32.mrb[0].mxu0
      %v1128 = vadd.f32 %v1006, %v1127
      %v1129 = vpop.f32.mrb[0].mxu0
      %1130 = vmatprep.mubr.bf16.mxu0 0
      %1131 = vmatmul.mubr.bf16.gmra.mrb[0].mxu0 %v481
      %v1132 = vpop.f32.mrb[0].mxu0
      %v1133 = vadd.f32 %v1006, %v1132
      %v1134 = vpop.f32.mrb[0].mxu0
      %v1135 = vpop.f32.mrb[0].mxu0
      %v1136 = vadd.f32 %v1006, %v1135
      %v1137 = vpop.f32.mrb[0].mxu0
      %1138 = vmatprep.mubr.bf16.mxu0 0
      %1139 = vmatmul.mubr.bf16.gmra.mrb[0].mxu0 %v484
      %v1140 = vpop.f32.mrb[0].mxu0
      %v1141 = vadd.f32 %v1006, %v1140
      %v1142 = vpop.f32.mrb[0].mxu0
      %v1143 = vpop.f32.mrb[0].mxu0
      %v1144 = vadd.f32 %v1006, %v1143
      %v1145 = vpop.f32.mrb[0].mxu0
      %1146 = vmatprep.mubr.bf16.mxu0 0
      %1147 = vmatmul.mubr.bf16.gmra.mrb[0].mxu0 %v487
      %v1148 = vpop.f32.mrb[0].mxu0
      %v1149 = vadd.f32 %v1006, %v1148
      %v1150 = vpop.f32.mrb[0].mxu0
      %v1151 = vpop.f32.mrb[0].mxu0
      %v1152 = vadd.f32 %v1006, %v1151
      %v1153 = vpop.f32.mrb[0].mxu0
      %1154 = vmatprep.mubr.bf16.mxu0 0
      %1155 = vmatmul.mubr.bf16.gmra.mrb[0].mxu0 %v490
      %v1156 = vpop.f32.mrb[0].mxu0
      %v1157 = vadd.f32 %v1006, %v1156
      %v1158 = vpop.f32.mrb[0].mxu0
      %v1159 = vpop.f32.mrb[0].mxu0
      %v1160 = vpop.f32.mrb[0].mxu0
      %1161 = vdwg.mxu0
      %v1162 = vld [vmem:[%s7] sm:$0xf]
      %v1164 = vsel %vm657, %v983, 0
      %v1167 = vsel %vm657, %v984, 0
      %v1170 = vsel %vm657, %v985, 0
      %v1173 = vsel %vm657, %v986, 0
      %v1176 = vsel %vm657, %v987, 0
      %v1179 = vsel %vm657, %v988, 0
      %v1182 = vsel %vm657, %v989, 0
      %v1185 = vsel %vm657, %v990, 0
      %v1188 = vsel %vm657, %v991, 0
      %v1191 = vsel %vm657, %v992, 0
      %v1194 = vsel %vm657, %v993, 0
      %v1197 = vsel %vm657, %v994, 0
      %v1200 = vsel %vm657, %v995, 0
      %vm1202 = vcmask 1043456
      %v1204 = vsel %vm1202, %v1162, 0
      %1206 = vmatprep.subr.bf16.mxu0 0
      %1207 = vmatpush1.bf16.msra.mxu0 %v1204
      %1208 = vmatprep.subr.bf16.mxu0 0
      %1209 = vmatpush1.bf16.msra.mxu0 0
      %1210 = vmatprep.subr.bf16.mxu0 0
      %1211 = vmatpush1.bf16.msra.mxu0 0
      %1212 = vmatprep.subr.bf16.mxu0 0
      %1213 = vmatpush1.bf16.msra.mxu0 0
      %1214 = vmatprep.subr.bf16.mxu0 0
      %1215 = vmatpush1.bf16.msra.mxu0 0
      %1216 = vmatprep.subr.bf16.mxu0 0
      %1217 = vmatpush1.bf16.msra.mxu0 0
      %1218 = vmatprep.subr.bf16.mxu0 0
      %1219 = vmatpush1.bf16.msra.mxu0 0
      %1220 = vmatprep.subr.bf16.mxu0 0
      %1221 = vmatpush1.bf16.msra.mxu0 0
      %1222 = vmatprep.subr.bf16.mxu0 0
      %1223 = vmatpush1.bf16.msra.mxu0 0
      %1224 = vmatprep.subr.bf16.mxu0 0
      %1225 = vmatpush1.bf16.msra.mxu0 0
      %1226 = vmatprep.subr.bf16.mxu0 0
      %1227 = vmatpush1.bf16.msra.mxu0 0
      %1228 = vmatprep.subr.bf16.mxu0 0
      %1229 = vmatpush1.bf16.msra.mxu0 0
      %1230 = vmatprep.subr.bf16.mxu0 0
      %1231 = vmatpush1.bf16.msra.mxu0 0
      %1232 = vmatprep.subr.bf16.mxu0 0
      %1233 = vmatpush1.bf16.msra.mxu0 0
      %1234 = vmatprep.subr.bf16.mxu0 0
      %1235 = vmatpush1.bf16.msra.mxu0 0
      %1236 = vmatprep.subr.bf16.mxu0 0
      %1237 = vmatpush1.bf16.msra.mxu0 0
      %1238 = vmatprep.mubr.bf16.mxu0 0
      %1239 = vmatmul.mubr.bf16.gmra.mrb[0].mxu0 %v1164
      %v1240 = vpop.f32.mrb[0].mxu0
      %v1241 = vadd.f32 0.0, %v1240
      %v1242 = vpop.f32.mrb[0].mxu0
      %v1243 = vpop.f32.mrb[0].mxu0
      %v1244 = vadd.f32 0.0, %v1243
      %v1245 = vpop.f32.mrb[0].mxu0
      %1246 = vmatprep.mubr.bf16.mxu0 0
      %1247 = vmatmul.mubr.bf16.gmra.mrb[0].mxu0 %v1167
      %v1248 = vpop.f32.mrb[0].mxu0
      %v1249 = vadd.f32 0.0, %v1248
      %v1250 = vpop.f32.mrb[0].mxu0
      %v1251 = vpop.f32.mrb[0].mxu0
      %v1252 = vadd.f32 0.0, %v1251
      %v1253 = vpop.f32.mrb[0].mxu0
      %1254 = vmatprep.mubr.bf16.mxu0 0
      %1255 = vmatmul.mubr.bf16.gmra.mrb[0].mxu0 %v1170
      %v1256 = vpop.f32.mrb[0].mxu0
      %v1257 = vadd.f32 0.0, %v1256
      %v1258 = vpop.f32.mrb[0].mxu0
      %v1259 = vpop.f32.mrb[0].mxu0
      %v1260 = vadd.f32 0.0, %v1259
      %v1261 = vpop.f32.mrb[0].mxu0
      %1262 = vmatprep.mubr.bf16.mxu0 0
      %1263 = vmatmul.mubr.bf16.gmra.mrb[0].mxu0 %v1173
      %v1264 = vpop.f32.mrb[0].mxu0
      %v1265 = vadd.f32 0.0, %v1264
      %v1266 = vpop.f32.mrb[0].mxu0
      %v1267 = vpop.f32.mrb[0].mxu0
      %v1268 = vadd.f32 0.0, %v1267
      %v1269 = vpop.f32.mrb[0].mxu0
      %1270 = vmatprep.mubr.bf16.mxu0 0
      %1271 = vmatmul.mubr.bf16.gmra.mrb[0].mxu0 %v1176
      %v1272 = vpop.f32.mrb[0].mxu0
      %v1273 = vadd.f32 0.0, %v1272
      %v1274 = vpop.f32.mrb[0].mxu0
      %v1275 = vpop.f32.mrb[0].mxu0
      %v1276 = vadd.f32 0.0, %v1275
      %v1277 = vpop.f32.mrb[0].mxu0
      %1278 = vmatprep.mubr.bf16.mxu0 0
      %1279 = vmatmul.mubr.bf16.gmra.mrb[0].mxu0 %v1179
      %v1280 = vpop.f32.mrb[0].mxu0
      %v1281 = vadd.f32 0.0, %v1280
      %v1282 = vpop.f32.mrb[0].mxu0
      %v1283 = vpop.f32.mrb[0].mxu0
      %v1284 = vadd.f32 0.0, %v1283
      %v1285 = vpop.f32.mrb[0].mxu0
      %1286 = vmatprep.mubr.bf16.mxu0 0
      %1287 = vmatmul.mubr.bf16.gmra.mrb[0].mxu0 %v1182
      %v1288 = vpop.f32.mrb[0].mxu0
      %v1289 = vadd.f32 0.0, %v1288
      %v1290 = vpop.f32.mrb[0].mxu0
      %v1291 = vpop.f32.mrb[0].mxu0
      %v1292 = vadd.f32 0.0, %v1291
      %v1293 = vpop.f32.mrb[0].mxu0
      %1294 = vmatprep.mubr.bf16.mxu0 0
      %1295 = vmatmul.mubr.bf16.gmra.mrb[0].mxu0 %v1185
      %v1296 = vpop.f32.mrb[0].mxu0
      %v1297 = vadd.f32 0.0, %v1296
      %v1298 = vpop.f32.mrb[0].mxu0
      %v1299 = vpop.f32.mrb[0].mxu0
      %v1300 = vadd.f32 0.0, %v1299
      %v1301 = vpop.f32.mrb[0].mxu0
      %1302 = vmatprep.mubr.bf16.mxu0 0
      %1303 = vmatmul.mubr.bf16.gmra.mrb[0].mxu0 %v1188
      %v1304 = vpop.f32.mrb[0].mxu0
      %v1305 = vadd.f32 0.0, %v1304
      %v1306 = vpop.f32.mrb[0].mxu0
      %v1307 = vpop.f32.mrb[0].mxu0
      %v1308 = vadd.f32 0.0, %v1307
      %v1309 = vpop.f32.mrb[0].mxu0
      %1310 = vmatprep.mubr.bf16.mxu0 0
      %1311 = vmatmul.mubr.bf16.gmra.mrb[0].mxu0 %v1191
      %v1312 = vpop.f32.mrb[0].mxu0
      %v1313 = vadd.f32 0.0, %v1312
      %v1314 = vpop.f32.mrb[0].mxu0
      %v1315 = vpop.f32.mrb[0].mxu0
      %v1316 = vadd.f32 0.0, %v1315
      %v1317 = vpop.f32.mrb[0].mxu0
      %1318 = vmatprep.mubr.bf16.mxu0 0
      %1319 = vmatmul.mubr.bf16.gmra.mrb[0].mxu0 %v1194
      %v1320 = vpop.f32.mrb[0].mxu0
      %v1321 = vadd.f32 0.0, %v1320
      %v1322 = vpop.f32.mrb[0].mxu0
      %v1323 = vpop.f32.mrb[0].mxu0
      %v1324 = vadd.f32 0.0, %v1323
      %v1325 = vpop.f32.mrb[0].mxu0
      %1326 = vmatprep.mubr.bf16.mxu0 0
      %1327 = vmatmul.mubr.bf16.gmra.mrb[0].mxu0 %v1197
      %v1328 = vpop.f32.mrb[0].mxu0
      %v1329 = vadd.f32 0.0, %v1328
      %v1330 = vpop.f32.mrb[0].mxu0
      %v1331 = vpop.f32.mrb[0].mxu0
      %v1332 = vadd.f32 0.0, %v1331
      %v1333 = vpop.f32.mrb[0].mxu0
      %1334 = vmatprep.mubr.bf16.mxu0 0
      %1335 = vmatmul.mubr.bf16.gmra.mrb[0].mxu0 %v1200
      %v1336 = vpop.f32.mrb[0].mxu0
      %v1337 = vadd.f32 0.0, %v1336
      %v1338 = vpop.f32.mrb[0].mxu0
      %v1339 = vpop.f32.mrb[0].mxu0
      %v1340 = vpop.f32.mrb[0].mxu0
      %1341 = vdwg.mxu0
      %vm1342 = vcmp.gt.f32.partialorder %v1241, 0.0
      %vm1343 = vcmp.gt.f32.partialorder %v1244, 0.0
      %vm1344 = vcmp.gt.f32.partialorder %v1249, 0.0
      %vm1345 = vcmp.gt.f32.partialorder %v1252, 0.0
      %vm1346 = vcmp.gt.f32.partialorder %v1257, 0.0
      %vm1347 = vcmp.gt.f32.partialorder %v1260, 0.0
      %vm1348 = vcmp.gt.f32.partialorder %v1265, 0.0
      %vm1349 = vcmp.gt.f32.partialorder %v1268, 0.0
      %vm1350 = vcmp.gt.f32.partialorder %v1273, 0.0
      %vm1351 = vcmp.gt.f32.partialorder %v1276, 0.0
      %vm1352 = vcmp.gt.f32.partialorder %v1281, 0.0
      %vm1353 = vcmp.gt.f32.partialorder %v1284, 0.0
      %vm1354 = vcmp.gt.f32.partialorder %v1289, 0.0
      %vm1355 = vcmp.gt.f32.partialorder %v1292, 0.0
      %vm1356 = vcmp.gt.f32.partialorder %v1297, 0.0
      %vm1357 = vcmp.gt.f32.partialorder %v1300, 0.0
      %vm1358 = vcmp.gt.f32.partialorder %v1305, 0.0
      %vm1359 = vcmp.gt.f32.partialorder %v1308, 0.0
      %vm1360 = vcmp.gt.f32.partialorder %v1313, 0.0
      %vm1361 = vcmp.gt.f32.partialorder %v1316, 0.0
      %vm1362 = vcmp.gt.f32.partialorder %v1321, 0.0
      %vm1363 = vcmp.gt.f32.partialorder %v1324, 0.0
      %vm1364 = vcmp.gt.f32.partialorder %v1329, 0.0
      %vm1365 = vcmp.gt.f32.partialorder %v1332, 0.0
      %vm1366 = vcmp.gt.f32.partialorder %v1337, 0.0
      %v1367 = vsel %vm1342, %v1061, 0.0
      %v1368 = vsel %vm1343, %v1064, 0.0
      %v1369 = vsel %vm1344, %v1069, 0.0
      %v1370 = vsel %vm1345, %v1072, 0.0
      %v1371 = vsel %vm1346, %v1077, 0.0
      %v1372 = vsel %vm1347, %v1080, 0.0
      %v1373 = vsel %vm1348, %v1085, 0.0
      %v1374 = vsel %vm1349, %v1088, 0.0
      %v1375 = vsel %vm1350, %v1093, 0.0
      %v1376 = vsel %vm1351, %v1096, 0.0
      %v1377 = vsel %vm1352, %v1101, 0.0
      %v1378 = vsel %vm1353, %v1104, 0.0
      %v1379 = vsel %vm1354, %v1109, 0.0
      %v1380 = vsel %vm1355, %v1112, 0.0
      %v1381 = vsel %vm1356, %v1117, 0.0
      %v1382 = vsel %vm1357, %v1120, 0.0
      %v1383 = vsel %vm1358, %v1125, 0.0
      %v1384 = vsel %vm1359, %v1128, 0.0
      %v1385 = vsel %vm1360, %v1133, 0.0
      %v1386 = vsel %vm1361, %v1136, 0.0
      %v1387 = vsel %vm1362, %v1141, 0.0
      %v1388 = vsel %vm1363, %v1144, 0.0
      %v1389 = vsel %vm1364, %v1149, 0.0
      %v1390 = vsel %vm1365, %v1152, 0.0
      %v1391 = vsel %vm1366, %v1157, 0.0
      %v1392 = vand.u32 2147483647, %v1367
      %v1393 = vand.u32 2147483647, %v1368
      %v1394 = vand.u32 2147483647, %v1369
      %v1395 = vand.u32 2147483647, %v1370
      %v1396 = vand.u32 2147483647, %v1371
      %v1397 = vand.u32 2147483647, %v1372
      %v1398 = vand.u32 2147483647, %v1373
      %v1399 = vand.u32 2147483647, %v1374
      %v1400 = vand.u32 2147483647, %v1375
      %v1401 = vand.u32 2147483647, %v1376
      %v1402 = vand.u32 2147483647, %v1377
      %v1403 = vand.u32 2147483647, %v1378
      %v1404 = vand.u32 2147483647, %v1379
      %v1405 = vand.u32 2147483647, %v1380
      %v1406 = vand.u32 2147483647, %v1381
      %v1407 = vand.u32 2147483647, %v1382
      %v1408 = vand.u32 2147483647, %v1383
      %v1409 = vand.u32 2147483647, %v1384
      %v1410 = vand.u32 2147483647, %v1385
      %v1411 = vand.u32 2147483647, %v1386
      %v1412 = vand.u32 2147483647, %v1387
      %v1413 = vand.u32 2147483647, %v1388
      %v1414 = vand.u32 2147483647, %v1389
      %v1415 = vand.u32 2147483647, %v1390
      %v1416 = vand.u32 2147483647, %v1391
      %vm1417 = vcmask 130048
      %v1418 = vsel %vm1417, %v1392, -inf
      %1419 = vmax.xlane.f32.xlu0 %v1418
      %v1420 = vpop.xlane.xlu0 %1419
      %v1421 = vsel %vm1417, %v1393, -inf
      %1422 = vmax.xlane.f32.xlu0 %v1421
      %v1423 = vpop.xlane.xlu0 %1422
      %v1424 = vsel %vm1417, %v1394, -inf
      %1425 = vmax.xlane.f32.xlu0 %v1424
      %v1426 = vpop.xlane.xlu0 %1425
      %v1427 = vsel %vm1417, %v1395, -inf
      %1428 = vmax.xlane.f32.xlu0 %v1427
      %v1429 = vpop.xlane.xlu0 %1428
      %v1430 = vsel %vm1417, %v1396, -inf
      %1431 = vmax.xlane.f32.xlu0 %v1430
      %v1432 = vpop.xlane.xlu0 %1431
      %v1433 = vsel %vm1417, %v1397, -inf
      %1434 = vmax.xlane.f32.xlu0 %v1433
      %v1435 = vpop.xlane.xlu0 %1434
      %v1436 = vsel %vm1417, %v1398, -inf
      %1437 = vmax.xlane.f32.xlu0 %v1436
      %v1438 = vpop.xlane.xlu0 %1437
      %v1439 = vsel %vm1417, %v1399, -inf
      %1440 = vmax.xlane.f32.xlu0 %v1439
      %v1441 = vpop.xlane.xlu0 %1440
      %v1442 = vsel %vm1417, %v1400, -inf
      %1443 = vmax.xlane.f32.xlu0 %v1442
      %v1444 = vpop.xlane.xlu0 %1443
      %v1445 = vsel %vm1417, %v1401, -inf
      %1446 = vmax.xlane.f32.xlu0 %v1445
      %v1447 = vpop.xlane.xlu0 %1446
      %v1448 = vsel %vm1417, %v1402, -inf
      %1449 = vmax.xlane.f32.xlu0 %v1448
      %v1450 = vpop.xlane.xlu0 %1449
      %v1451 = vsel %vm1417, %v1403, -inf
      %1452 = vmax.xlane.f32.xlu0 %v1451
      %v1453 = vpop.xlane.xlu0 %1452
      %v1454 = vsel %vm1417, %v1404, -inf
      %1455 = vmax.xlane.f32.xlu0 %v1454
      %v1456 = vpop.xlane.xlu0 %1455
      %v1457 = vsel %vm1417, %v1405, -inf
      %1458 = vmax.xlane.f32.xlu0 %v1457
      %v1459 = vpop.xlane.xlu0 %1458
      %v1460 = vsel %vm1417, %v1406, -inf
      %1461 = vmax.xlane.f32.xlu0 %v1460
      %v1462 = vpop.xlane.xlu0 %1461
      %v1463 = vsel %vm1417, %v1407, -inf
      %1464 = vmax.xlane.f32.xlu0 %v1463
      %v1465 = vpop.xlane.xlu0 %1464
      %v1466 = vsel %vm1417, %v1408, -inf
      %1467 = vmax.xlane.f32.xlu0 %v1466
      %v1468 = vpop.xlane.xlu0 %1467
      %v1469 = vsel %vm1417, %v1409, -inf
      %1470 = vmax.xlane.f32.xlu0 %v1469
      %v1471 = vpop.xlane.xlu0 %1470
      %v1472 = vsel %vm1417, %v1410, -inf
      %1473 = vmax.xlane.f32.xlu0 %v1472
      %v1474 = vpop.xlane.xlu0 %1473
      %v1475 = vsel %vm1417, %v1411, -inf
      %1476 = vmax.xlane.f32.xlu0 %v1475
      %v1477 = vpop.xlane.xlu0 %1476
      %v1478 = vsel %vm1417, %v1412, -inf
      %1479 = vmax.xlane.f32.xlu0 %v1478
      %v1480 = vpop.xlane.xlu0 %1479
      %v1481 = vsel %vm1417, %v1413, -inf
      %1482 = vmax.xlane.f32.xlu0 %v1481
      %v1483 = vpop.xlane.xlu0 %1482
      %v1484 = vsel %vm1417, %v1414, -inf
      %1485 = vmax.xlane.f32.xlu0 %v1484
      %v1486 = vpop.xlane.xlu0 %1485
      %v1487 = vsel %vm1417, %v1415, -inf
      %1488 = vmax.xlane.f32.xlu0 %v1487
      %v1489 = vpop.xlane.xlu0 %1488
      %v1490 = vsel %vm1417, %v1416, -inf
      %1491 = vmax.xlane.f32.xlu0 %v1490
      %v1492 = vpop.xlane.xlu0 %1491
      %vm1493 = vcmp.ge.f32.partialorder %v1392, %v1420
      %vm1494 = vcmp.ge.f32.partialorder %v1393, %v1423
      %vm1495 = vcmp.ge.f32.partialorder %v1394, %v1426
      %vm1496 = vcmp.ge.f32.partialorder %v1395, %v1429
      %vm1497 = vcmp.ge.f32.partialorder %v1396, %v1432
      %vm1498 = vcmp.ge.f32.partialorder %v1397, %v1435
      %vm1499 = vcmp.ge.f32.partialorder %v1398, %v1438
      %vm1500 = vcmp.ge.f32.partialorder %v1399, %v1441
      %vm1501 = vcmp.ge.f32.partialorder %v1400, %v1444
      %vm1502 = vcmp.ge.f32.partialorder %v1401, %v1447
      %vm1503 = vcmp.ge.f32.partialorder %v1402, %v1450
      %vm1504 = vcmp.ge.f32.partialorder %v1403, %v1453
      %vm1505 = vcmp.ge.f32.partialorder %v1404, %v1456
      %vm1506 = vcmp.ge.f32.partialorder %v1405, %v1459
      %vm1507 = vcmp.ge.f32.partialorder %v1406, %v1462
      %vm1508 = vcmp.ge.f32.partialorder %v1407, %v1465
      %vm1509 = vcmp.ge.f32.partialorder %v1408, %v1468
      %vm1510 = vcmp.ge.f32.partialorder %v1409, %v1471
      %vm1511 = vcmp.ge.f32.partialorder %v1410, %v1474
      %vm1512 = vcmp.ge.f32.partialorder %v1411, %v1477
      %vm1513 = vcmp.ge.f32.partialorder %v1412, %v1480
      %vm1514 = vcmp.ge.f32.partialorder %v1413, %v1483
      %vm1515 = vcmp.ge.f32.partialorder %v1414, %v1486
      %vm1516 = vcmp.ge.f32.partialorder %v1415, %v1489
      %vm1517 = vcmp.ge.f32.partialorder %v1416, %v1492
      %v1518 = vsel %vm1493, -1.0, %v1392
      %v1519 = vsel %vm1494, -1.0, %v1393
      %v1520 = vsel %vm1495, -1.0, %v1394
      %v1521 = vsel %vm1496, -1.0, %v1395
      %v1522 = vsel %vm1497, -1.0, %v1396
      %v1523 = vsel %vm1498, -1.0, %v1397
      %v1524 = vsel %vm1499, -1.0, %v1398
      %v1525 = vsel %vm1500, -1.0, %v1399
      %v1526 = vsel %vm1501, -1.0, %v1400
      %v1527 = vsel %vm1502, -1.0, %v1401
      %v1528 = vsel %vm1503, -1.0, %v1402
      %v1529 = vsel %vm1504, -1.0, %v1403
      %v1530 = vsel %vm1505, -1.0, %v1404
      %v1531 = vsel %vm1506, -1.0, %v1405
      %v1532 = vsel %vm1507, -1.0, %v1406
      %v1533 = vsel %vm1508, -1.0, %v1407
      %v1534 = vsel %vm1509, -1.0, %v1408
      %v1535 = vsel %vm1510, -1.0, %v1409
      %v1536 = vsel %vm1511, -1.0, %v1410
      %v1537 = vsel %vm1512, -1.0, %v1411
      %v1538 = vsel %vm1513, -1.0, %v1412
      %v1539 = vsel %vm1514, -1.0, %v1413
      %v1540 = vsel %vm1515, -1.0, %v1414
      %v1541 = vsel %vm1516, -1.0, %v1415
      %v1542 = vsel %vm1517, -1.0, %v1416
      %v1543 = vsel %vm1417, %v1518, -inf
      %1544 = vmax.xlane.f32.xlu0 %v1543
      %v1545 = vpop.xlane.xlu0 %1544
      %v1546 = vsel %vm1417, %v1519, -inf
      %1547 = vmax.xlane.f32.xlu0 %v1546
      %v1548 = vpop.xlane.xlu0 %1547
      %v1549 = vsel %vm1417, %v1520, -inf
      %1550 = vmax.xlane.f32.xlu0 %v1549
      %v1551 = vpop.xlane.xlu0 %1550
      %v1552 = vsel %vm1417, %v1521, -inf
      %1553 = vmax.xlane.f32.xlu0 %v1552
      %v1554 = vpop.xlane.xlu0 %1553
      %v1555 = vsel %vm1417, %v1522, -inf
      %1556 = vmax.xlane.f32.xlu0 %v1555
      %v1557 = vpop.xlane.xlu0 %1556
      %v1558 = vsel %vm1417, %v1523, -inf
      %1559 = vmax.xlane.f32.xlu0 %v1558
      %v1560 = vpop.xlane.xlu0 %1559
      %v1561 = vsel %vm1417, %v1524, -inf
      %1562 = vmax.xlane.f32.xlu0 %v1561
      %v1563 = vpop.xlane.xlu0 %1562
      %v1564 = vsel %vm1417, %v1525, -inf
      %1565 = vmax.xlane.f32.xlu0 %v1564
      %v1566 = vpop.xlane.xlu0 %1565
      %v1567 = vsel %vm1417, %v1526, -inf
      %1568 = vmax.xlane.f32.xlu0 %v1567
      %v1569 = vpop.xlane.xlu0 %1568
      %v1570 = vsel %vm1417, %v1527, -inf
      %1571 = vmax.xlane.f32.xlu0 %v1570
      %v1572 = vpop.xlane.xlu0 %1571
      %v1573 = vsel %vm1417, %v1528, -inf
      %1574 = vmax.xlane.f32.xlu0 %v1573
      %v1575 = vpop.xlane.xlu0 %1574
      %v1576 = vsel %vm1417, %v1529, -inf
      %1577 = vmax.xlane.f32.xlu0 %v1576
      %v1578 = vpop.xlane.xlu0 %1577
      %v1579 = vsel %vm1417, %v1530, -inf
      %1580 = vmax.xlane.f32.xlu0 %v1579
      %v1581 = vpop.xlane.xlu0 %1580
      %v1582 = vsel %vm1417, %v1531, -inf
      %1583 = vmax.xlane.f32.xlu0 %v1582
      %v1584 = vpop.xlane.xlu0 %1583
      %v1585 = vsel %vm1417, %v1532, -inf
      %1586 = vmax.xlane.f32.xlu0 %v1585
      %v1587 = vpop.xlane.xlu0 %1586
      %v1588 = vsel %vm1417, %v1533, -inf
      %1589 = vmax.xlane.f32.xlu0 %v1588
      %v1590 = vpop.xlane.xlu0 %1589
      %v1591 = vsel %vm1417, %v1534, -inf
      %1592 = vmax.xlane.f32.xlu0 %v1591
      %v1593 = vpop.xlane.xlu0 %1592
      %v1594 = vsel %vm1417, %v1535, -inf
      %1595 = vmax.xlane.f32.xlu0 %v1594
      %v1596 = vpop.xlane.xlu0 %1595
      %v1597 = vsel %vm1417, %v1536, -inf
      %1598 = vmax.xlane.f32.xlu0 %v1597
      %v1599 = vpop.xlane.xlu0 %1598
      %v1600 = vsel %vm1417, %v1537, -inf
      %1601 = vmax.xlane.f32.xlu0 %v1600
      %v1602 = vpop.xlane.xlu0 %1601
      %v1603 = vsel %vm1417, %v1538, -inf
      %1604 = vmax.xlane.f32.xlu0 %v1603
      %v1605 = vpop.xlane.xlu0 %1604
      %v1606 = vsel %vm1417, %v1539, -inf
      %1607 = vmax.xlane.f32.xlu0 %v1606
      %v1608 = vpop.xlane.xlu0 %1607
      %v1609 = vsel %vm1417, %v1540, -inf
      %1610 = vmax.xlane.f32.xlu0 %v1609
      %v1611 = vpop.xlane.xlu0 %1610
      %v1612 = vsel %vm1417, %v1541, -inf
      %1613 = vmax.xlane.f32.xlu0 %v1612
      %v1614 = vpop.xlane.xlu0 %1613
      %v1615 = vsel %vm1417, %v1542, -inf
      %1616 = vmax.xlane.f32.xlu0 %v1615
      %v1617 = vpop.xlane.xlu0 %1616
      %vm1618 = vcmp.ge.f32.partialorder %v1518, %v1545
      %vm1619 = vcmp.ge.f32.partialorder %v1519, %v1548
      %vm1620 = vcmp.ge.f32.partialorder %v1520, %v1551
      %vm1621 = vcmp.ge.f32.partialorder %v1521, %v1554
      %vm1622 = vcmp.ge.f32.partialorder %v1522, %v1557
      %vm1623 = vcmp.ge.f32.partialorder %v1523, %v1560
      %vm1624 = vcmp.ge.f32.partialorder %v1524, %v1563
      %vm1625 = vcmp.ge.f32.partialorder %v1525, %v1566
      %vm1626 = vcmp.ge.f32.partialorder %v1526, %v1569
      %vm1627 = vcmp.ge.f32.partialorder %v1527, %v1572
      %vm1628 = vcmp.ge.f32.partialorder %v1528, %v1575
      %vm1629 = vcmp.ge.f32.partialorder %v1529, %v1578
      %vm1630 = vcmp.ge.f32.partialorder %v1530, %v1581
      %vm1631 = vcmp.ge.f32.partialorder %v1531, %v1584
      %vm1632 = vcmp.ge.f32.partialorder %v1532, %v1587
      %vm1633 = vcmp.ge.f32.partialorder %v1533, %v1590
      %vm1634 = vcmp.ge.f32.partialorder %v1534, %v1593
      %vm1635 = vcmp.ge.f32.partialorder %v1535, %v1596
      %vm1636 = vcmp.ge.f32.partialorder %v1536, %v1599
      %vm1637 = vcmp.ge.f32.partialorder %v1537, %v1602
      %vm1638 = vcmp.ge.f32.partialorder %v1538, %v1605
      %vm1639 = vcmp.ge.f32.partialorder %v1539, %v1608
      %vm1640 = vcmp.ge.f32.partialorder %v1540, %v1611
      %vm1641 = vcmp.ge.f32.partialorder %v1541, %v1614
      %vm1642 = vcmp.ge.f32.partialorder %v1542, %v1617
      %v1643 = vsel %vm1618, -1.0, %v1518
      %v1644 = vsel %vm1619, -1.0, %v1519
      %v1645 = vsel %vm1620, -1.0, %v1520
      %v1646 = vsel %vm1621, -1.0, %v1521
      %v1647 = vsel %vm1622, -1.0, %v1522
      %v1648 = vsel %vm1623, -1.0, %v1523
      %v1649 = vsel %vm1624, -1.0, %v1524
      %v1650 = vsel %vm1625, -1.0, %v1525
      %v1651 = vsel %vm1626, -1.0, %v1526
      %v1652 = vsel %vm1627, -1.0, %v1527
      %v1653 = vsel %vm1628, -1.0, %v1528
      %v1654 = vsel %vm1629, -1.0, %v1529
      %v1655 = vsel %vm1630, -1.0, %v1530
      %v1656 = vsel %vm1631, -1.0, %v1531
      %v1657 = vsel %vm1632, -1.0, %v1532
      %v1658 = vsel %vm1633, -1.0, %v1533
      %v1659 = vsel %vm1634, -1.0, %v1534
      %v1660 = vsel %vm1635, -1.0, %v1535
      %v1661 = vsel %vm1636, -1.0, %v1536
      %v1662 = vsel %vm1637, -1.0, %v1537
      %v1663 = vsel %vm1638, -1.0, %v1538
      %v1664 = vsel %vm1639, -1.0, %v1539
      %v1665 = vsel %vm1640, -1.0, %v1540
      %v1666 = vsel %vm1641, -1.0, %v1541
      %v1667 = vsel %vm1642, -1.0, %v1542
      %v1668 = vsel %vm1417, %v1643, -inf
      %1669 = vmax.xlane.f32.xlu0 %v1668
      %v1670 = vpop.xlane.xlu0 %1669
      %v1671 = vsel %vm1417, %v1644, -inf
      %1672 = vmax.xlane.f32.xlu0 %v1671
      %v1673 = vpop.xlane.xlu0 %1672
      %v1674 = vsel %vm1417, %v1645, -inf
      %1675 = vmax.xlane.f32.xlu0 %v1674
      %v1676 = vpop.xlane.xlu0 %1675
      %v1677 = vsel %vm1417, %v1646, -inf
      %1678 = vmax.xlane.f32.xlu0 %v1677
      %v1679 = vpop.xlane.xlu0 %1678
      %v1680 = vsel %vm1417, %v1647, -inf
      %1681 = vmax.xlane.f32.xlu0 %v1680
      %v1682 = vpop.xlane.xlu0 %1681
      %v1683 = vsel %vm1417, %v1648, -inf
      %1684 = vmax.xlane.f32.xlu0 %v1683
      %v1685 = vpop.xlane.xlu0 %1684
      %v1686 = vsel %vm1417, %v1649, -inf
      %1687 = vmax.xlane.f32.xlu0 %v1686
      %v1688 = vpop.xlane.xlu0 %1687
      %v1689 = vsel %vm1417, %v1650, -inf
      %1690 = vmax.xlane.f32.xlu0 %v1689
      %v1691 = vpop.xlane.xlu0 %1690
      %v1692 = vsel %vm1417, %v1651, -inf
      %1693 = vmax.xlane.f32.xlu0 %v1692
      %v1694 = vpop.xlane.xlu0 %1693
      %v1695 = vsel %vm1417, %v1652, -inf
      %1696 = vmax.xlane.f32.xlu0 %v1695
      %v1697 = vpop.xlane.xlu0 %1696
      %v1698 = vsel %vm1417, %v1653, -inf
      %1699 = vmax.xlane.f32.xlu0 %v1698
      %v1700 = vpop.xlane.xlu0 %1699
      %v1701 = vsel %vm1417, %v1654, -inf
      %1702 = vmax.xlane.f32.xlu0 %v1701
      %v1703 = vpop.xlane.xlu0 %1702
      %v1704 = vsel %vm1417, %v1655, -inf
      %1705 = vmax.xlane.f32.xlu0 %v1704
      %v1706 = vpop.xlane.xlu0 %1705
      %v1707 = vsel %vm1417, %v1656, -inf
      %1708 = vmax.xlane.f32.xlu0 %v1707
      %v1709 = vpop.xlane.xlu0 %1708
      %v1710 = vsel %vm1417, %v1657, -inf
      %1711 = vmax.xlane.f32.xlu0 %v1710
      %v1712 = vpop.xlane.xlu0 %1711
      %v1713 = vsel %vm1417, %v1658, -inf
      %1714 = vmax.xlane.f32.xlu0 %v1713
      %v1715 = vpop.xlane.xlu0 %1714
      %v1716 = vsel %vm1417, %v1659, -inf
      %1717 = vmax.xlane.f32.xlu0 %v1716
      %v1718 = vpop.xlane.xlu0 %1717
      %v1719 = vsel %vm1417, %v1660, -inf
      %1720 = vmax.xlane.f32.xlu0 %v1719
      %v1721 = vpop.xlane.xlu0 %1720
      %v1722 = vsel %vm1417, %v1661, -inf
      %1723 = vmax.xlane.f32.xlu0 %v1722
      %v1724 = vpop.xlane.xlu0 %1723
      %v1725 = vsel %vm1417, %v1662, -inf
      %1726 = vmax.xlane.f32.xlu0 %v1725
      %v1727 = vpop.xlane.xlu0 %1726
      %v1728 = vsel %vm1417, %v1663, -inf
      %1729 = vmax.xlane.f32.xlu0 %v1728
      %v1730 = vpop.xlane.xlu0 %1729
      %v1731 = vsel %vm1417, %v1664, -inf
      %1732 = vmax.xlane.f32.xlu0 %v1731
      %v1733 = vpop.xlane.xlu0 %1732
      %v1734 = vsel %vm1417, %v1665, -inf
      %1735 = vmax.xlane.f32.xlu0 %v1734
      %v1736 = vpop.xlane.xlu0 %1735
      %v1737 = vsel %vm1417, %v1666, -inf
      %1738 = vmax.xlane.f32.xlu0 %v1737
      %v1739 = vpop.xlane.xlu0 %1738
      %v1740 = vsel %vm1417, %v1667, -inf
      %1741 = vmax.xlane.f32.xlu0 %v1740
      %v1742 = vpop.xlane.xlu0 %1741
      %vm1743 = vcmp.ge.f32.partialorder %v1643, %v1670
      %vm1744 = vcmp.ge.f32.partialorder %v1644, %v1673
      %vm1745 = vcmp.ge.f32.partialorder %v1645, %v1676
      %vm1746 = vcmp.ge.f32.partialorder %v1646, %v1679
      %vm1747 = vcmp.ge.f32.partialorder %v1647, %v1682
      %vm1748 = vcmp.ge.f32.partialorder %v1648, %v1685
      %vm1749 = vcmp.ge.f32.partialorder %v1649, %v1688
      %vm1750 = vcmp.ge.f32.partialorder %v1650, %v1691
      %vm1751 = vcmp.ge.f32.partialorder %v1651, %v1694
      %vm1752 = vcmp.ge.f32.partialorder %v1652, %v1697
      %vm1753 = vcmp.ge.f32.partialorder %v1653, %v1700
      %vm1754 = vcmp.ge.f32.partialorder %v1654, %v1703
      %vm1755 = vcmp.ge.f32.partialorder %v1655, %v1706
      %vm1756 = vcmp.ge.f32.partialorder %v1656, %v1709
      %vm1757 = vcmp.ge.f32.partialorder %v1657, %v1712
      %vm1758 = vcmp.ge.f32.partialorder %v1658, %v1715
      %vm1759 = vcmp.ge.f32.partialorder %v1659, %v1718
      %vm1760 = vcmp.ge.f32.partialorder %v1660, %v1721
      %vm1761 = vcmp.ge.f32.partialorder %v1661, %v1724
      %vm1762 = vcmp.ge.f32.partialorder %v1662, %v1727
      %vm1763 = vcmp.ge.f32.partialorder %v1663, %v1730
      %vm1764 = vcmp.ge.f32.partialorder %v1664, %v1733
      %vm1765 = vcmp.ge.f32.partialorder %v1665, %v1736
      %vm1766 = vcmp.ge.f32.partialorder %v1666, %v1739
      %vm1767 = vcmp.ge.f32.partialorder %v1667, %v1742
      %v1768 = vsel %vm1743, -1.0, %v1643
      %v1769 = vsel %vm1744, -1.0, %v1644
      %v1770 = vsel %vm1745, -1.0, %v1645
      %v1771 = vsel %vm1746, -1.0, %v1646
      %v1772 = vsel %vm1747, -1.0, %v1647
      %v1773 = vsel %vm1748, -1.0, %v1648
      %v1774 = vsel %vm1749, -1.0, %v1649
      %v1775 = vsel %vm1750, -1.0, %v1650
      %v1776 = vsel %vm1751, -1.0, %v1651
      %v1777 = vsel %vm1752, -1.0, %v1652
      %v1778 = vsel %vm1753, -1.0, %v1653
      %v1779 = vsel %vm1754, -1.0, %v1654
      %v1780 = vsel %vm1755, -1.0, %v1655
      %v1781 = vsel %vm1756, -1.0, %v1656
      %v1782 = vsel %vm1757, -1.0, %v1657
      %v1783 = vsel %vm1758, -1.0, %v1658
      %v1784 = vsel %vm1759, -1.0, %v1659
      %v1785 = vsel %vm1760, -1.0, %v1660
      %v1786 = vsel %vm1761, -1.0, %v1661
      %v1787 = vsel %vm1762, -1.0, %v1662
      %v1788 = vsel %vm1763, -1.0, %v1663
      %v1789 = vsel %vm1764, -1.0, %v1664
      %v1790 = vsel %vm1765, -1.0, %v1665
      %v1791 = vsel %vm1766, -1.0, %v1666
      %v1792 = vsel %vm1767, -1.0, %v1667
      %v1793 = vsel %vm1417, %v1768, -inf
      %1794 = vmax.xlane.f32.xlu0 %v1793
      %v1795 = vpop.xlane.xlu0 %1794
      %v1796 = vsel %vm1417, %v1769, -inf
      %1797 = vmax.xlane.f32.xlu0 %v1796
      %v1798 = vpop.xlane.xlu0 %1797
      %v1799 = vsel %vm1417, %v1770, -inf
      %1800 = vmax.xlane.f32.xlu0 %v1799
      %v1801 = vpop.xlane.xlu0 %1800
      %v1802 = vsel %vm1417, %v1771, -inf
      %1803 = vmax.xlane.f32.xlu0 %v1802
      %v1804 = vpop.xlane.xlu0 %1803
      %v1805 = vsel %vm1417, %v1772, -inf
      %1806 = vmax.xlane.f32.xlu0 %v1805
      %v1807 = vpop.xlane.xlu0 %1806
      %v1808 = vsel %vm1417, %v1773, -inf
      %1809 = vmax.xlane.f32.xlu0 %v1808
      %v1810 = vpop.xlane.xlu0 %1809
      %v1811 = vsel %vm1417, %v1774, -inf
      %1812 = vmax.xlane.f32.xlu0 %v1811
      %v1813 = vpop.xlane.xlu0 %1812
      %v1814 = vsel %vm1417, %v1775, -inf
      %1815 = vmax.xlane.f32.xlu0 %v1814
      %v1816 = vpop.xlane.xlu0 %1815
      %v1817 = vsel %vm1417, %v1776, -inf
      %1818 = vmax.xlane.f32.xlu0 %v1817
      %v1819 = vpop.xlane.xlu0 %1818
      %v1820 = vsel %vm1417, %v1777, -inf
      %1821 = vmax.xlane.f32.xlu0 %v1820
      %v1822 = vpop.xlane.xlu0 %1821
      %v1823 = vsel %vm1417, %v1778, -inf
      %1824 = vmax.xlane.f32.xlu0 %v1823
      %v1825 = vpop.xlane.xlu0 %1824
      %v1826 = vsel %vm1417, %v1779, -inf
      %1827 = vmax.xlane.f32.xlu0 %v1826
      %v1828 = vpop.xlane.xlu0 %1827
      %v1829 = vsel %vm1417, %v1780, -inf
      %1830 = vmax.xlane.f32.xlu0 %v1829
      %v1831 = vpop.xlane.xlu0 %1830
      %v1832 = vsel %vm1417, %v1781, -inf
      %1833 = vmax.xlane.f32.xlu0 %v1832
      %v1834 = vpop.xlane.xlu0 %1833
      %v1835 = vsel %vm1417, %v1782, -inf
      %1836 = vmax.xlane.f32.xlu0 %v1835
      %v1837 = vpop.xlane.xlu0 %1836
      %v1838 = vsel %vm1417, %v1783, -inf
      %1839 = vmax.xlane.f32.xlu0 %v1838
      %v1840 = vpop.xlane.xlu0 %1839
      %v1841 = vsel %vm1417, %v1784, -inf
      %1842 = vmax.xlane.f32.xlu0 %v1841
      %v1843 = vpop.xlane.xlu0 %1842
      %v1844 = vsel %vm1417, %v1785, -inf
      %1845 = vmax.xlane.f32.xlu0 %v1844
      %v1846 = vpop.xlane.xlu0 %1845
      %v1847 = vsel %vm1417, %v1786, -inf
      %1848 = vmax.xlane.f32.xlu0 %v1847
      %v1849 = vpop.xlane.xlu0 %1848
      %v1850 = vsel %vm1417, %v1787, -inf
      %1851 = vmax.xlane.f32.xlu0 %v1850
      %v1852 = vpop.xlane.xlu0 %1851
      %v1853 = vsel %vm1417, %v1788, -inf
      %1854 = vmax.xlane.f32.xlu0 %v1853
      %v1855 = vpop.xlane.xlu0 %1854
      %v1856 = vsel %vm1417, %v1789, -inf
      %1857 = vmax.xlane.f32.xlu0 %v1856
      %v1858 = vpop.xlane.xlu0 %1857
      %v1859 = vsel %vm1417, %v1790, -inf
      %1860 = vmax.xlane.f32.xlu0 %v1859
      %v1861 = vpop.xlane.xlu0 %1860
      %v1862 = vsel %vm1417, %v1791, -inf
      %1863 = vmax.xlane.f32.xlu0 %v1862
      %v1864 = vpop.xlane.xlu0 %1863
      %v1865 = vsel %vm1417, %v1792, -inf
      %1866 = vmax.xlane.f32.xlu0 %v1865
      %v1867 = vpop.xlane.xlu0 %1866
      %vm1868 = vcmp.ge.f32.partialorder %v1392, %v1795
      %vm1869 = vcmp.ge.f32.partialorder %v1393, %v1798
      %vm1870 = vcmp.ge.f32.partialorder %v1394, %v1801
      %vm1871 = vcmp.ge.f32.partialorder %v1395, %v1804
      %vm1872 = vcmp.ge.f32.partialorder %v1396, %v1807
      %vm1873 = vcmp.ge.f32.partialorder %v1397, %v1810
      %vm1874 = vcmp.ge.f32.partialorder %v1398, %v1813
      %vm1875 = vcmp.ge.f32.partialorder %v1399, %v1816
      %vm1876 = vcmp.ge.f32.partialorder %v1400, %v1819
      %vm1877 = vcmp.ge.f32.partialorder %v1401, %v1822
      %vm1878 = vcmp.ge.f32.partialorder %v1402, %v1825
      %vm1879 = vcmp.ge.f32.partialorder %v1403, %v1828
      %vm1880 = vcmp.ge.f32.partialorder %v1404, %v1831
      %vm1881 = vcmp.ge.f32.partialorder %v1405, %v1834
      %vm1882 = vcmp.ge.f32.partialorder %v1406, %v1837
      %vm1883 = vcmp.ge.f32.partialorder %v1407, %v1840
      %vm1884 = vcmp.ge.f32.partialorder %v1408, %v1843
      %vm1885 = vcmp.ge.f32.partialorder %v1409, %v1846
      %vm1886 = vcmp.ge.f32.partialorder %v1410, %v1849
      %vm1887 = vcmp.ge.f32.partialorder %v1411, %v1852
      %vm1888 = vcmp.ge.f32.partialorder %v1412, %v1855
      %vm1889 = vcmp.ge.f32.partialorder %v1413, %v1858
      %vm1890 = vcmp.ge.f32.partialorder %v1414, %v1861
      %vm1891 = vcmp.ge.f32.partialorder %v1415, %v1864
      %vm1892 = vcmp.ge.f32.partialorder %v1416, %v1867
      %v1893 = vsel %vm1868, %v1367, 0.0
      %v1894 = vsel %vm1869, %v1368, 0.0
      %v1895 = vsel %vm1870, %v1369, 0.0
      %v1896 = vsel %vm1871, %v1370, 0.0
      %v1897 = vsel %vm1872, %v1371, 0.0
      %v1898 = vsel %vm1873, %v1372, 0.0
      %v1899 = vsel %vm1874, %v1373, 0.0
      %v1900 = vsel %vm1875, %v1374, 0.0
      %v1901 = vsel %vm1876, %v1375, 0.0
      %v1902 = vsel %vm1877, %v1376, 0.0
      %v1903 = vsel %vm1878, %v1377, 0.0
      %v1904 = vsel %vm1879, %v1378, 0.0
      %v1905 = vsel %vm1880, %v1379, 0.0
      %v1906 = vsel %vm1881, %v1380, 0.0
      %v1907 = vsel %vm1882, %v1381, 0.0
      %v1908 = vsel %vm1883, %v1382, 0.0
      %v1909 = vsel %vm1884, %v1383, 0.0
      %v1910 = vsel %vm1885, %v1384, 0.0
      %v1911 = vsel %vm1886, %v1385, 0.0
      %v1912 = vsel %vm1887, %v1386, 0.0
      %v1913 = vsel %vm1888, %v1387, 0.0
      %v1914 = vsel %vm1889, %v1388, 0.0
      %v1915 = vsel %vm1890, %v1389, 0.0
      %v1916 = vsel %vm1891, %v1390, 0.0
      %v1917 = vsel %vm1892, %v1391, 0.0
      %vm1918 = vcmp.ne.f32.partialorder %v1893, 0.0
      %vm1919 = vcmp.ne.f32.partialorder %v1894, 0.0
      %vm1920 = vcmp.ne.f32.partialorder %v1895, 0.0
      %vm1921 = vcmp.ne.f32.partialorder %v1896, 0.0
      %vm1922 = vcmp.ne.f32.partialorder %v1897, 0.0
      %vm1923 = vcmp.ne.f32.partialorder %v1898, 0.0
      %vm1924 = vcmp.ne.f32.partialorder %v1899, 0.0
      %vm1925 = vcmp.ne.f32.partialorder %v1900, 0.0
      %vm1926 = vcmp.ne.f32.partialorder %v1901, 0.0
      %vm1927 = vcmp.ne.f32.partialorder %v1902, 0.0
      %vm1928 = vcmp.ne.f32.partialorder %v1903, 0.0
      %vm1929 = vcmp.ne.f32.partialorder %v1904, 0.0
      %vm1930 = vcmp.ne.f32.partialorder %v1905, 0.0
      %vm1931 = vcmp.ne.f32.partialorder %v1906, 0.0
      %vm1932 = vcmp.ne.f32.partialorder %v1907, 0.0
      %vm1933 = vcmp.ne.f32.partialorder %v1908, 0.0
      %vm1934 = vcmp.ne.f32.partialorder %v1909, 0.0
      %vm1935 = vcmp.ne.f32.partialorder %v1910, 0.0
      %vm1936 = vcmp.ne.f32.partialorder %v1911, 0.0
      %vm1937 = vcmp.ne.f32.partialorder %v1912, 0.0
      %vm1938 = vcmp.ne.f32.partialorder %v1913, 0.0
      %vm1939 = vcmp.ne.f32.partialorder %v1914, 0.0
      %vm1940 = vcmp.ne.f32.partialorder %v1915, 0.0
      %vm1941 = vcmp.ne.f32.partialorder %v1916, 0.0
      %vm1942 = vcmp.ne.f32.partialorder %v1917, 0.0
      %v1943 = vsel %vm1918, 1, 0
      %v1944 = vsel %vm1919, 1, 0
      %v1945 = vsel %vm1920, 1, 0
      %v1946 = vsel %vm1921, 1, 0
      %v1947 = vsel %vm1922, 1, 0
      %v1948 = vsel %vm1923, 1, 0
      %v1949 = vsel %vm1924, 1, 0
      %v1950 = vsel %vm1925, 1, 0
      %v1951 = vsel %vm1926, 1, 0
      %v1952 = vsel %vm1927, 1, 0
      %v1953 = vsel %vm1928, 1, 0
      %v1954 = vsel %vm1929, 1, 0
      %v1955 = vsel %vm1930, 1, 0
      %v1956 = vsel %vm1931, 1, 0
      %v1957 = vsel %vm1932, 1, 0
      %v1958 = vsel %vm1933, 1, 0
      %v1959 = vsel %vm1934, 1, 0
      %v1960 = vsel %vm1935, 1, 0
      %v1961 = vsel %vm1936, 1, 0
      %v1962 = vsel %vm1937, 1, 0
      %v1963 = vsel %vm1938, 1, 0
      %v1964 = vsel %vm1939, 1, 0
      %v1965 = vsel %vm1940, 1, 0
      %v1966 = vsel %vm1941, 1, 0
      %v1967 = vsel %vm1942, 1, 0
      %v1968 = vcvt.s32.f32 %v1943
      %v1969 = vcvt.s32.f32 %v1944
      %v1970 = vcvt.s32.f32 %v1945
      %v1971 = vcvt.s32.f32 %v1946
      %v1972 = vcvt.s32.f32 %v1947
      %v1973 = vcvt.s32.f32 %v1948
      %v1974 = vcvt.s32.f32 %v1949
      %v1975 = vcvt.s32.f32 %v1950
      %v1976 = vcvt.s32.f32 %v1951
      %v1977 = vcvt.s32.f32 %v1952
      %v1978 = vcvt.s32.f32 %v1953
      %v1979 = vcvt.s32.f32 %v1954
      %v1980 = vcvt.s32.f32 %v1955
      %v1981 = vcvt.s32.f32 %v1956
      %v1982 = vcvt.s32.f32 %v1957
      %v1983 = vcvt.s32.f32 %v1958
      %v1984 = vcvt.s32.f32 %v1959
      %v1985 = vcvt.s32.f32 %v1960
      %v1986 = vcvt.s32.f32 %v1961
      %v1987 = vcvt.s32.f32 %v1962
      %v1988 = vcvt.s32.f32 %v1963
      %v1989 = vcvt.s32.f32 %v1964
      %v1990 = vcvt.s32.f32 %v1965
      %v1991 = vcvt.s32.f32 %v1966
      %v1992 = vcvt.s32.f32 %v1967
      %v1993 = vpack.c.bf16 %v1969, %v1968
      %v1994 = vpack.c.bf16 %v1971, %v1970
      %v1995 = vpack.c.bf16 %v1973, %v1972
      %v1996 = vpack.c.bf16 %v1975, %v1974
      %v1997 = vpack.c.bf16 %v1977, %v1976
      %v1998 = vpack.c.bf16 %v1979, %v1978
      %v1999 = vpack.c.bf16 %v1981, %v1980
      %v2000 = vpack.c.bf16 %v1983, %v1982
      %v2001 = vpack.c.bf16 %v1985, %v1984
      %v2002 = vpack.c.bf16 %v1987, %v1986
      %v2003 = vpack.c.bf16 %v1989, %v1988
      %v2004 = vpack.c.bf16 %v1991, %v1990
      %v2005 = vpack.c.bf16 %v1992, %v1992
      %v2006 = vld [vmem:[%s3] sm:$0xf]
      %v2007 = vld [vmem:[%s3 + $0x4] sm:$0xf]
      %v2008 = vld [vmem:[%s3 + $0x8] sm:$0xf]
      %v2009 = vld [vmem:[%s3 + $0xc] sm:$0xf]
      %v2010 = vld [vmem:[%s3 + $0x10] sm:$0x3]
      %v2011 = vld [vmem:[%s6] sm:$0x1]
      %v2013 = vlaneseq
      %v2014 = vshrl.u32 %v2013, 7
      %v2015 = vsub.s32 0, %v2014
      %v2016 = vrot.slane %v2011, %v2015
      %v2023 = vunpack.c.l.b16 %v2006
      %v2024 = vunpack.c.l.b16 %v2007
      %v2025 = vunpack.c.l.b16 %v2008
      %v2026 = vunpack.c.l.b16 %v2009
      %v2027 = vunpack.c.l.b16 %v2010
      %v2028 = vpack.c.b16 %v2024, %v2023
      %v2029 = vpack.c.b16 %v2026, %v2025
      %v2030 = vpack.c.b16 %v2027, %v2027
      %v2034 = vsel %vm492, %v2030, 0
      %2036 = vmatprep.subr.bf16.mxu0 0
      %2037 = vmatpush1.bf16.msra.mxu0 %v2028
      %2038 = vmatprep.subr.bf16.mxu0 0
      %2039 = vmatpush1.bf16.msra.mxu0 %v2029
      %2040 = vmatprep.subr.bf16.mxu0 0
      %2041 = vmatpush1.bf16.msra.mxu0 %v2034
      %2042 = vmatprep.subr.bf16.mxu0 0
      %2043 = vmatpush1.bf16.msra.mxu0 0
      %2044 = vmatprep.subr.bf16.mxu0 0
      %2045 = vmatpush1.bf16.msra.mxu0 0
      %2046 = vmatprep.subr.bf16.mxu0 0
      %2047 = vmatpush1.bf16.msra.mxu0 0
      %2048 = vmatprep.subr.bf16.mxu0 0
      %2049 = vmatpush1.bf16.msra.mxu0 0
      %2050 = vmatprep.subr.bf16.mxu0 0
      %2051 = vmatpush1.bf16.msra.mxu0 0
      %2052 = vmatprep.subr.bf16.mxu0 0
      %2053 = vmatpush1.bf16.msra.mxu0 0
      %2054 = vmatprep.subr.bf16.mxu0 0
      %2055 = vmatpush1.bf16.msra.mxu0 0
      %2056 = vmatprep.subr.bf16.mxu0 0
      %2057 = vmatpush1.bf16.msra.mxu0 0
      %2058 = vmatprep.subr.bf16.mxu0 0
      %2059 = vmatpush1.bf16.msra.mxu0 0
      %2060 = vmatprep.subr.bf16.mxu0 0
      %2061 = vmatpush1.bf16.msra.mxu0 0
      %2062 = vmatprep.subr.bf16.mxu0 0
      %2063 = vmatpush1.bf16.msra.mxu0 0
      %2064 = vmatprep.subr.bf16.mxu0 0
      %2065 = vmatpush1.bf16.msra.mxu0 0
      %2066 = vmatprep.subr.bf16.mxu0 0
      %2067 = vmatpush1.bf16.msra.mxu0 0
      %2068 = vmatprep.mubr.bf16.mxu0 0
      %2069 = vmatmul.mubr.bf16.gmra.mrb[0].mxu0 %v454
      %v2070 = vpop.f32.mrb[0].mxu0
      %v2071 = vadd.f32 %v2016, %v2070
      %v2072 = vpop.f32.mrb[0].mxu0
      %v2073 = vpop.f32.mrb[0].mxu0
      %v2074 = vadd.f32 %v2016, %v2073
      %v2075 = vpop.f32.mrb[0].mxu0
      %2076 = vmatprep.mubr.bf16.mxu0 0
      %2077 = vmatmul.mubr.bf16.gmra.mrb[0].mxu0 %v457
      %v2078 = vpop.f32.mrb[0].mxu0
      %v2079 = vadd.f32 %v2016, %v2078
      %v2080 = vpop.f32.mrb[0].mxu0
      %v2081 = vpop.f32.mrb[0].mxu0
      %v2082 = vadd.f32 %v2016, %v2081
      %v2083 = vpop.f32.mrb[0].mxu0
      %2084 = vmatprep.mubr.bf16.mxu0 0
      %2085 = vmatmul.mubr.bf16.gmra.mrb[0].mxu0 %v460
      %v2086 = vpop.f32.mrb[0].mxu0
      %v2087 = vadd.f32 %v2016, %v2086
      %v2088 = vpop.f32.mrb[0].mxu0
      %v2089 = vpop.f32.mrb[0].mxu0
      %v2090 = vadd.f32 %v2016, %v2089
      %v2091 = vpop.f32.mrb[0].mxu0
      %2092 = vmatprep.mubr.bf16.mxu0 0
      %2093 = vmatmul.mubr.bf16.gmra.mrb[0].mxu0 %v463
      %v2094 = vpop.f32.mrb[0].mxu0
      %v2095 = vadd.f32 %v2016, %v2094
      %v2096 = vpop.f32.mrb[0].mxu0
      %v2097 = vpop.f32.mrb[0].mxu0
      %v2098 = vadd.f32 %v2016, %v2097
      %v2099 = vpop.f32.mrb[0].mxu0
      %2100 = vmatprep.mubr.bf16.mxu0 0
      %2101 = vmatmul.mubr.bf16.gmra.mrb[0].mxu0 %v466
      %v2102 = vpop.f32.mrb[0].mxu0
      %v2103 = vadd.f32 %v2016, %v2102
      %v2104 = vpop.f32.mrb[0].mxu0
      %v2105 = vpop.f32.mrb[0].mxu0
      %v2106 = vadd.f32 %v2016, %v2105
      %v2107 = vpop.f32.mrb[0].mxu0
      %2108 = vmatprep.mubr.bf16.mxu0 0
      %2109 = vmatmul.mubr.bf16.gmra.mrb[0].mxu0 %v469
      %v2110 = vpop.f32.mrb[0].mxu0
      %v2111 = vadd.f32 %v2016, %v2110
      %v2112 = vpop.f32.mrb[0].mxu0
      %v2113 = vpop.f32.mrb[0].mxu0
      %v2114 = vadd.f32 %v2016, %v2113
      %v2115 = vpop.f32.mrb[0].mxu0
      %2116 = vmatprep.mubr.bf16.mxu0 0
      %2117 = vmatmul.mubr.bf16.gmra.mrb[0].mxu0 %v472
      %v2118 = vpop.f32.mrb[0].mxu0
      %v2119 = vadd.f32 %v2016, %v2118
      %v2120 = vpop.f32.mrb[0].mxu0
      %v2121 = vpop.f32.mrb[0].mxu0
      %v2122 = vadd.f32 %v2016, %v2121
      %v2123 = vpop.f32.mrb[0].mxu0
      %2124 = vmatprep.mubr.bf16.mxu0 0
      %2125 = vmatmul.mubr.bf16.gmra.mrb[0].mxu0 %v475
      %v2126 = vpop.f32.mrb[0].mxu0
      %v2127 = vadd.f32 %v2016, %v2126
      %v2128 = vpop.f32.mrb[0].mxu0
      %v2129 = vpop.f32.mrb[0].mxu0
      %v2130 = vadd.f32 %v2016, %v2129
      %v2131 = vpop.f32.mrb[0].mxu0
      %2132 = vmatprep.mubr.bf16.mxu0 0
      %2133 = vmatmul.mubr.bf16.gmra.mrb[0].mxu0 %v478
      %v2134 = vpop.f32.mrb[0].mxu0
      %v2135 = vadd.f32 %v2016, %v2134
      %v2136 = vpop.f32.mrb[0].mxu0
      %v2137 = vpop.f32.mrb[0].mxu0
      %v2138 = vadd.f32 %v2016, %v2137
      %v2139 = vpop.f32.mrb[0].mxu0
      %2140 = vmatprep.mubr.bf16.mxu0 0
      %2141 = vmatmul.mubr.bf16.gmra.mrb[0].mxu0 %v481
      %v2142 = vpop.f32.mrb[0].mxu0
      %v2143 = vadd.f32 %v2016, %v2142
      %v2144 = vpop.f32.mrb[0].mxu0
      %v2145 = vpop.f32.mrb[0].mxu0
      %v2146 = vadd.f32 %v2016, %v2145
      %v2147 = vpop.f32.mrb[0].mxu0
      %2148 = vmatprep.mubr.bf16.mxu0 0
      %2149 = vmatmul.mubr.bf16.gmra.mrb[0].mxu0 %v484
      %v2150 = vpop.f32.mrb[0].mxu0
      %v2151 = vadd.f32 %v2016, %v2150
      %v2152 = vpop.f32.mrb[0].mxu0
      %v2153 = vpop.f32.mrb[0].mxu0
      %v2154 = vadd.f32 %v2016, %v2153
      %v2155 = vpop.f32.mrb[0].mxu0
      %2156 = vmatprep.mubr.bf16.mxu0 0
      %2157 = vmatmul.mubr.bf16.gmra.mrb[0].mxu0 %v487
      %v2158 = vpop.f32.mrb[0].mxu0
      %v2159 = vadd.f32 %v2016, %v2158
      %v2160 = vpop.f32.mrb[0].mxu0
      %v2161 = vpop.f32.mrb[0].mxu0
      %v2162 = vadd.f32 %v2016, %v2161
      %v2163 = vpop.f32.mrb[0].mxu0
      %2164 = vmatprep.mubr.bf16.mxu0 0
      %2165 = vmatmul.mubr.bf16.gmra.mrb[0].mxu0 %v490
      %v2166 = vpop.f32.mrb[0].mxu0
      %v2167 = vadd.f32 %v2016, %v2166
      %v2168 = vpop.f32.mrb[0].mxu0
      %v2169 = vpop.f32.mrb[0].mxu0
      %v2170 = vpop.f32.mrb[0].mxu0
      %2171 = vdwg.mxu0
      %v2172 = vld [vmem:[%s8] sm:$0xf]
      %v2173 = vld [vmem:[%s8 + $0x4] sm:$0xf]
      %v2176 = vunpack.c.l.b16 %v2172
      %v2177 = vunpack.c.l.b16 %v2173
      %v2178 = vpack.c.b16 %v2177, %v2176
      %v2181 = vsel %vm1417, %v1993, 0
      %v2184 = vsel %vm1417, %v1994, 0
      %v2187 = vsel %vm1417, %v1995, 0
      %v2190 = vsel %vm1417, %v1996, 0
      %v2193 = vsel %vm1417, %v1997, 0
      %v2196 = vsel %vm1417, %v1998, 0
      %v2199 = vsel %vm1417, %v1999, 0
      %v2202 = vsel %vm1417, %v2000, 0
      %v2205 = vsel %vm1417, %v2001, 0
      %v2208 = vsel %vm1417, %v2002, 0
      %v2211 = vsel %vm1417, %v2003, 0
      %v2214 = vsel %vm1417, %v2004, 0
      %v2217 = vsel %vm1417, %v2005, 0
      %2219 = vmatprep.subr.bf16.mxu0 0
      %2220 = vmatpush1.bf16.msra.mxu0 %v2178
      %2221 = vmatprep.subr.bf16.mxu0 0
      %2222 = vmatpush1.bf16.msra.mxu0 0
      %2223 = vmatprep.subr.bf16.mxu0 0
      %2224 = vmatpush1.bf16.msra.mxu0 0
      %2225 = vmatprep.subr.bf16.mxu0 0
      %2226 = vmatpush1.bf16.msra.mxu0 0
      %2227 = vmatprep.subr.bf16.mxu0 0
      %2228 = vmatpush1.bf16.msra.mxu0 0
      %2229 = vmatprep.subr.bf16.mxu0 0
      %2230 = vmatpush1.bf16.msra.mxu0 0
      %2231 = vmatprep.subr.bf16.mxu0 0
      %2232 = vmatpush1.bf16.msra.mxu0 0
      %2233 = vmatprep.subr.bf16.mxu0 0
      %2234 = vmatpush1.bf16.msra.mxu0 0
      %2235 = vmatprep.subr.bf16.mxu0 0
      %2236 = vmatpush1.bf16.msra.mxu0 0
      %2237 = vmatprep.subr.bf16.mxu0 0
      %2238 = vmatpush1.bf16.msra.mxu0 0
      %2239 = vmatprep.subr.bf16.mxu0 0
      %2240 = vmatpush1.bf16.msra.mxu0 0
      %2241 = vmatprep.subr.bf16.mxu0 0
      %2242 = vmatpush1.bf16.msra.mxu0 0
      %2243 = vmatprep.subr.bf16.mxu0 0
      %2244 = vmatpush1.bf16.msra.mxu0 0
      %2245 = vmatprep.subr.bf16.mxu0 0
      %2246 = vmatpush1.bf16.msra.mxu0 0
      %2247 = vmatprep.subr.bf16.mxu0 0
      %2248 = vmatpush1.bf16.msra.mxu0 0
      %2249 = vmatprep.subr.bf16.mxu0 0
      %2250 = vmatpush1.bf16.msra.mxu0 0
      %2251 = vmatprep.mubr.bf16.mxu0 0
      %2252 = vmatmul.mubr.bf16.gmra.mrb[0].mxu0 %v2181
      %v2253 = vpop.f32.mrb[0].mxu0
      %v2254 = vadd.f32 0.0, %v2253
      %v2255 = vpop.f32.mrb[0].mxu0
      %v2256 = vpop.f32.mrb[0].mxu0
      %v2257 = vadd.f32 0.0, %v2256
      %v2258 = vpop.f32.mrb[0].mxu0
      %2259 = vmatprep.mubr.bf16.mxu0 0
      %2260 = vmatmul.mubr.bf16.gmra.mrb[0].mxu0 %v2184
      %v2261 = vpop.f32.mrb[0].mxu0
      %v2262 = vadd.f32 0.0, %v2261
      %v2263 = vpop.f32.mrb[0].mxu0
      %v2264 = vpop.f32.mrb[0].mxu0
      %v2265 = vadd.f32 0.0, %v2264
      %v2266 = vpop.f32.mrb[0].mxu0
      %2267 = vmatprep.mubr.bf16.mxu0 0
      %2268 = vmatmul.mubr.bf16.gmra.mrb[0].mxu0 %v2187
      %v2269 = vpop.f32.mrb[0].mxu0
      %v2270 = vadd.f32 0.0, %v2269
      %v2271 = vpop.f32.mrb[0].mxu0
      %v2272 = vpop.f32.mrb[0].mxu0
      %v2273 = vadd.f32 0.0, %v2272
      %v2274 = vpop.f32.mrb[0].mxu0
      %2275 = vmatprep.mubr.bf16.mxu0 0
      %2276 = vmatmul.mubr.bf16.gmra.mrb[0].mxu0 %v2190
      %v2277 = vpop.f32.mrb[0].mxu0
      %v2278 = vadd.f32 0.0, %v2277
      %v2279 = vpop.f32.mrb[0].mxu0
      %v2280 = vpop.f32.mrb[0].mxu0
      %v2281 = vadd.f32 0.0, %v2280
      %v2282 = vpop.f32.mrb[0].mxu0
      %2283 = vmatprep.mubr.bf16.mxu0 0
      %2284 = vmatmul.mubr.bf16.gmra.mrb[0].mxu0 %v2193
      %v2285 = vpop.f32.mrb[0].mxu0
      %v2286 = vadd.f32 0.0, %v2285
      %v2287 = vpop.f32.mrb[0].mxu0
      %v2288 = vpop.f32.mrb[0].mxu0
      %v2289 = vadd.f32 0.0, %v2288
      %v2290 = vpop.f32.mrb[0].mxu0
      %2291 = vmatprep.mubr.bf16.mxu0 0
      %2292 = vmatmul.mubr.bf16.gmra.mrb[0].mxu0 %v2196
      %v2293 = vpop.f32.mrb[0].mxu0
      %v2294 = vadd.f32 0.0, %v2293
      %v2295 = vpop.f32.mrb[0].mxu0
      %v2296 = vpop.f32.mrb[0].mxu0
      %v2297 = vadd.f32 0.0, %v2296
      %v2298 = vpop.f32.mrb[0].mxu0
      %2299 = vmatprep.mubr.bf16.mxu0 0
      %2300 = vmatmul.mubr.bf16.gmra.mrb[0].mxu0 %v2199
      %v2301 = vpop.f32.mrb[0].mxu0
      %v2302 = vadd.f32 0.0, %v2301
      %v2303 = vpop.f32.mrb[0].mxu0
      %v2304 = vpop.f32.mrb[0].mxu0
      %v2305 = vadd.f32 0.0, %v2304
      %v2306 = vpop.f32.mrb[0].mxu0
      %2307 = vmatprep.mubr.bf16.mxu0 0
      %2308 = vmatmul.mubr.bf16.gmra.mrb[0].mxu0 %v2202
      %v2309 = vpop.f32.mrb[0].mxu0
      %v2310 = vadd.f32 0.0, %v2309
      %v2311 = vpop.f32.mrb[0].mxu0
      %v2312 = vpop.f32.mrb[0].mxu0
      %v2313 = vadd.f32 0.0, %v2312
      %v2314 = vpop.f32.mrb[0].mxu0
      %2315 = vmatprep.mubr.bf16.mxu0 0
      %2316 = vmatmul.mubr.bf16.gmra.mrb[0].mxu0 %v2205
      %v2317 = vpop.f32.mrb[0].mxu0
      %v2318 = vadd.f32 0.0, %v2317
      %v2319 = vpop.f32.mrb[0].mxu0
      %v2320 = vpop.f32.mrb[0].mxu0
      %v2321 = vadd.f32 0.0, %v2320
      %v2322 = vpop.f32.mrb[0].mxu0
      %2323 = vmatprep.mubr.bf16.mxu0 0
      %2324 = vmatmul.mubr.bf16.gmra.mrb[0].mxu0 %v2208
      %v2325 = vpop.f32.mrb[0].mxu0
      %v2326 = vadd.f32 0.0, %v2325
      %v2327 = vpop.f32.mrb[0].mxu0
      %v2328 = vpop.f32.mrb[0].mxu0
      %v2329 = vadd.f32 0.0, %v2328
      %v2330 = vpop.f32.mrb[0].mxu0
      %2331 = vmatprep.mubr.bf16.mxu0 0
      %2332 = vmatmul.mubr.bf16.gmra.mrb[0].mxu0 %v2211
      %v2333 = vpop.f32.mrb[0].mxu0
      %v2334 = vadd.f32 0.0, %v2333
      %v2335 = vpop.f32.mrb[0].mxu0
      %v2336 = vpop.f32.mrb[0].mxu0
      %v2337 = vadd.f32 0.0, %v2336
      %v2338 = vpop.f32.mrb[0].mxu0
      %2339 = vmatprep.mubr.bf16.mxu0 0
      %2340 = vmatmul.mubr.bf16.gmra.mrb[0].mxu0 %v2214
      %v2341 = vpop.f32.mrb[0].mxu0
      %v2342 = vadd.f32 0.0, %v2341
      %v2343 = vpop.f32.mrb[0].mxu0
      %v2344 = vpop.f32.mrb[0].mxu0
      %v2345 = vadd.f32 0.0, %v2344
      %v2346 = vpop.f32.mrb[0].mxu0
      %2347 = vmatprep.mubr.bf16.mxu0 0
      %2348 = vmatmul.mubr.bf16.gmra.mrb[0].mxu0 %v2217
      %v2349 = vpop.f32.mrb[0].mxu0
      %v2350 = vadd.f32 0.0, %v2349
      %v2351 = vpop.f32.mrb[0].mxu0
      %v2352 = vpop.f32.mrb[0].mxu0
      %v2353 = vpop.f32.mrb[0].mxu0
      %2354 = vdwg.mxu0
      %vm2355 = vcmp.gt.f32.partialorder %v2254, 0.0
      %vm2356 = vcmp.gt.f32.partialorder %v2257, 0.0
      %vm2357 = vcmp.gt.f32.partialorder %v2262, 0.0
      %vm2358 = vcmp.gt.f32.partialorder %v2265, 0.0
      %vm2359 = vcmp.gt.f32.partialorder %v2270, 0.0
      %vm2360 = vcmp.gt.f32.partialorder %v2273, 0.0
      %vm2361 = vcmp.gt.f32.partialorder %v2278, 0.0
      %vm2362 = vcmp.gt.f32.partialorder %v2281, 0.0
      %vm2363 = vcmp.gt.f32.partialorder %v2286, 0.0
      %vm2364 = vcmp.gt.f32.partialorder %v2289, 0.0
      %vm2365 = vcmp.gt.f32.partialorder %v2294, 0.0
      %vm2366 = vcmp.gt.f32.partialorder %v2297, 0.0
      %vm2367 = vcmp.gt.f32.partialorder %v2302, 0.0
      %vm2368 = vcmp.gt.f32.partialorder %v2305, 0.0
      %vm2369 = vcmp.gt.f32.partialorder %v2310, 0.0
      %vm2370 = vcmp.gt.f32.partialorder %v2313, 0.0
      %vm2371 = vcmp.gt.f32.partialorder %v2318, 0.0
      %vm2372 = vcmp.gt.f32.partialorder %v2321, 0.0
      %vm2373 = vcmp.gt.f32.partialorder %v2326, 0.0
      %vm2374 = vcmp.gt.f32.partialorder %v2329, 0.0
      %vm2375 = vcmp.gt.f32.partialorder %v2334, 0.0
      %vm2376 = vcmp.gt.f32.partialorder %v2337, 0.0
      %vm2377 = vcmp.gt.f32.partialorder %v2342, 0.0
      %vm2378 = vcmp.gt.f32.partialorder %v2345, 0.0
      %vm2379 = vcmp.gt.f32.partialorder %v2350, 0.0
      %v2380 = vsel %vm2355, %v2071, 0.0
      %v2381 = vsel %vm2356, %v2074, 0.0
      %v2382 = vsel %vm2357, %v2079, 0.0
      %v2383 = vsel %vm2358, %v2082, 0.0
      %v2384 = vsel %vm2359, %v2087, 0.0
      %v2385 = vsel %vm2360, %v2090, 0.0
      %v2386 = vsel %vm2361, %v2095, 0.0
      %v2387 = vsel %vm2362, %v2098, 0.0
      %v2388 = vsel %vm2363, %v2103, 0.0
      %v2389 = vsel %vm2364, %v2106, 0.0
      %v2390 = vsel %vm2365, %v2111, 0.0
      %v2391 = vsel %vm2366, %v2114, 0.0
      %v2392 = vsel %vm2367, %v2119, 0.0
      %v2393 = vsel %vm2368, %v2122, 0.0
      %v2394 = vsel %vm2369, %v2127, 0.0
      %v2395 = vsel %vm2370, %v2130, 0.0
      %v2396 = vsel %vm2371, %v2135, 0.0
      %v2397 = vsel %vm2372, %v2138, 0.0
      %v2398 = vsel %vm2373, %v2143, 0.0
      %v2399 = vsel %vm2374, %v2146, 0.0
      %v2400 = vsel %vm2375, %v2151, 0.0
      %v2401 = vsel %vm2376, %v2154, 0.0
      %v2402 = vsel %vm2377, %v2159, 0.0
      %v2403 = vsel %vm2378, %v2162, 0.0
      %v2404 = vsel %vm2379, %v2167, 0.0
      %v2405 = vand.u32 2147483647, %v2380
      %v2406 = vand.u32 2147483647, %v2381
      %v2407 = vand.u32 2147483647, %v2382
      %v2408 = vand.u32 2147483647, %v2383
      %v2409 = vand.u32 2147483647, %v2384
      %v2410 = vand.u32 2147483647, %v2385
      %v2411 = vand.u32 2147483647, %v2386
      %v2412 = vand.u32 2147483647, %v2387
      %v2413 = vand.u32 2147483647, %v2388
      %v2414 = vand.u32 2147483647, %v2389
      %v2415 = vand.u32 2147483647, %v2390
      %v2416 = vand.u32 2147483647, %v2391
      %v2417 = vand.u32 2147483647, %v2392
      %v2418 = vand.u32 2147483647, %v2393
      %v2419 = vand.u32 2147483647, %v2394
      %v2420 = vand.u32 2147483647, %v2395
      %v2421 = vand.u32 2147483647, %v2396
      %v2422 = vand.u32 2147483647, %v2397
      %v2423 = vand.u32 2147483647, %v2398
      %v2424 = vand.u32 2147483647, %v2399
      %v2425 = vand.u32 2147483647, %v2400
      %v2426 = vand.u32 2147483647, %v2401
      %v2427 = vand.u32 2147483647, %v2402
      %v2428 = vand.u32 2147483647, %v2403
      %v2429 = vand.u32 2147483647, %v2404
      %vm2430 = vcmask 261120
      %v2431 = vsel %vm2430, %v2405, -inf
      %2432 = vmax.xlane.f32.xlu0 %v2431
      %v2433 = vpop.xlane.xlu0 %2432
      %v2434 = vsel %vm2430, %v2406, -inf
      %2435 = vmax.xlane.f32.xlu0 %v2434
      %v2436 = vpop.xlane.xlu0 %2435
      %v2437 = vsel %vm2430, %v2407, -inf
      %2438 = vmax.xlane.f32.xlu0 %v2437
      %v2439 = vpop.xlane.xlu0 %2438
      %v2440 = vsel %vm2430, %v2408, -inf
      %2441 = vmax.xlane.f32.xlu0 %v2440
      %v2442 = vpop.xlane.xlu0 %2441
      %v2443 = vsel %vm2430, %v2409, -inf
      %2444 = vmax.xlane.f32.xlu0 %v2443
      %v2445 = vpop.xlane.xlu0 %2444
      %v2446 = vsel %vm2430, %v2410, -inf
      %2447 = vmax.xlane.f32.xlu0 %v2446
      %v2448 = vpop.xlane.xlu0 %2447
      %v2449 = vsel %vm2430, %v2411, -inf
      %2450 = vmax.xlane.f32.xlu0 %v2449
      %v2451 = vpop.xlane.xlu0 %2450
      %v2452 = vsel %vm2430, %v2412, -inf
      %2453 = vmax.xlane.f32.xlu0 %v2452
      %v2454 = vpop.xlane.xlu0 %2453
      %v2455 = vsel %vm2430, %v2413, -inf
      %2456 = vmax.xlane.f32.xlu0 %v2455
      %v2457 = vpop.xlane.xlu0 %2456
      %v2458 = vsel %vm2430, %v2414, -inf
      %2459 = vmax.xlane.f32.xlu0 %v2458
      %v2460 = vpop.xlane.xlu0 %2459
      %v2461 = vsel %vm2430, %v2415, -inf
      %2462 = vmax.xlane.f32.xlu0 %v2461
      %v2463 = vpop.xlane.xlu0 %2462
      %v2464 = vsel %vm2430, %v2416, -inf
      %2465 = vmax.xlane.f32.xlu0 %v2464
      %v2466 = vpop.xlane.xlu0 %2465
      %v2467 = vsel %vm2430, %v2417, -inf
      %2468 = vmax.xlane.f32.xlu0 %v2467
      %v2469 = vpop.xlane.xlu0 %2468
      %v2470 = vsel %vm2430, %v2418, -inf
      %2471 = vmax.xlane.f32.xlu0 %v2470
      %v2472 = vpop.xlane.xlu0 %2471
      %v2473 = vsel %vm2430, %v2419, -inf
      %2474 = vmax.xlane.f32.xlu0 %v2473
      %v2475 = vpop.xlane.xlu0 %2474
      %v2476 = vsel %vm2430, %v2420, -inf
      %2477 = vmax.xlane.f32.xlu0 %v2476
      %v2478 = vpop.xlane.xlu0 %2477
      %v2479 = vsel %vm2430, %v2421, -inf
      %2480 = vmax.xlane.f32.xlu0 %v2479
      %v2481 = vpop.xlane.xlu0 %2480
      %v2482 = vsel %vm2430, %v2422, -inf
      %2483 = vmax.xlane.f32.xlu0 %v2482
      %v2484 = vpop.xlane.xlu0 %2483
      %v2485 = vsel %vm2430, %v2423, -inf
      %2486 = vmax.xlane.f32.xlu0 %v2485
      %v2487 = vpop.xlane.xlu0 %2486
      %v2488 = vsel %vm2430, %v2424, -inf
      %2489 = vmax.xlane.f32.xlu0 %v2488
      %v2490 = vpop.xlane.xlu0 %2489
      %v2491 = vsel %vm2430, %v2425, -inf
      %2492 = vmax.xlane.f32.xlu0 %v2491
      %v2493 = vpop.xlane.xlu0 %2492
      %v2494 = vsel %vm2430, %v2426, -inf
      %2495 = vmax.xlane.f32.xlu0 %v2494
      %v2496 = vpop.xlane.xlu0 %2495
      %v2497 = vsel %vm2430, %v2427, -inf
      %2498 = vmax.xlane.f32.xlu0 %v2497
      %v2499 = vpop.xlane.xlu0 %2498
      %v2500 = vsel %vm2430, %v2428, -inf
      %2501 = vmax.xlane.f32.xlu0 %v2500
      %v2502 = vpop.xlane.xlu0 %2501
      %v2503 = vsel %vm2430, %v2429, -inf
      %2504 = vmax.xlane.f32.xlu0 %v2503
      %v2505 = vpop.xlane.xlu0 %2504
      %vm2506 = vcmp.ge.f32.partialorder %v2405, %v2433
      %vm2507 = vcmp.ge.f32.partialorder %v2406, %v2436
      %vm2508 = vcmp.ge.f32.partialorder %v2407, %v2439
      %vm2509 = vcmp.ge.f32.partialorder %v2408, %v2442
      %vm2510 = vcmp.ge.f32.partialorder %v2409, %v2445
      %vm2511 = vcmp.ge.f32.partialorder %v2410, %v2448
      %vm2512 = vcmp.ge.f32.partialorder %v2411, %v2451
      %vm2513 = vcmp.ge.f32.partialorder %v2412, %v2454
      %vm2514 = vcmp.ge.f32.partialorder %v2413, %v2457
      %vm2515 = vcmp.ge.f32.partialorder %v2414, %v2460
      %vm2516 = vcmp.ge.f32.partialorder %v2415, %v2463
      %vm2517 = vcmp.ge.f32.partialorder %v2416, %v2466
      %vm2518 = vcmp.ge.f32.partialorder %v2417, %v2469
      %vm2519 = vcmp.ge.f32.partialorder %v2418, %v2472
      %vm2520 = vcmp.ge.f32.partialorder %v2419, %v2475
      %vm2521 = vcmp.ge.f32.partialorder %v2420, %v2478
      %vm2522 = vcmp.ge.f32.partialorder %v2421, %v2481
      %vm2523 = vcmp.ge.f32.partialorder %v2422, %v2484
      %vm2524 = vcmp.ge.f32.partialorder %v2423, %v2487
      %vm2525 = vcmp.ge.f32.partialorder %v2424, %v2490
      %vm2526 = vcmp.ge.f32.partialorder %v2425, %v2493
      %vm2527 = vcmp.ge.f32.partialorder %v2426, %v2496
      %vm2528 = vcmp.ge.f32.partialorder %v2427, %v2499
      %vm2529 = vcmp.ge.f32.partialorder %v2428, %v2502
      %vm2530 = vcmp.ge.f32.partialorder %v2429, %v2505
      %v2531 = vsel %vm2506, -1.0, %v2405
      %v2532 = vsel %vm2507, -1.0, %v2406
      %v2533 = vsel %vm2508, -1.0, %v2407
      %v2534 = vsel %vm2509, -1.0, %v2408
      %v2535 = vsel %vm2510, -1.0, %v2409
      %v2536 = vsel %vm2511, -1.0, %v2410
      %v2537 = vsel %vm2512, -1.0, %v2411
      %v2538 = vsel %vm2513, -1.0, %v2412
      %v2539 = vsel %vm2514, -1.0, %v2413
      %v2540 = vsel %vm2515, -1.0, %v2414
      %v2541 = vsel %vm2516, -1.0, %v2415
      %v2542 = vsel %vm2517, -1.0, %v2416
      %v2543 = vsel %vm2518, -1.0, %v2417
      %v2544 = vsel %vm2519, -1.0, %v2418
      %v2545 = vsel %vm2520, -1.0, %v2419
      %v2546 = vsel %vm2521, -1.0, %v2420
      %v2547 = vsel %vm2522, -1.0, %v2421
      %v2548 = vsel %vm2523, -1.0, %v2422
      %v2549 = vsel %vm2524, -1.0, %v2423
      %v2550 = vsel %vm2525, -1.0, %v2424
      %v2551 = vsel %vm2526, -1.0, %v2425
      %v2552 = vsel %vm2527, -1.0, %v2426
      %v2553 = vsel %vm2528, -1.0, %v2427
      %v2554 = vsel %vm2529, -1.0, %v2428
      %v2555 = vsel %vm2530, -1.0, %v2429
      %v2556 = vsel %vm2430, %v2531, -inf
      %2557 = vmax.xlane.f32.xlu0 %v2556
      %v2558 = vpop.xlane.xlu0 %2557
      %v2559 = vsel %vm2430, %v2532, -inf
      %2560 = vmax.xlane.f32.xlu0 %v2559
      %v2561 = vpop.xlane.xlu0 %2560
      %v2562 = vsel %vm2430, %v2533, -inf
      %2563 = vmax.xlane.f32.xlu0 %v2562
      %v2564 = vpop.xlane.xlu0 %2563
      %v2565 = vsel %vm2430, %v2534, -inf
      %2566 = vmax.xlane.f32.xlu0 %v2565
      %v2567 = vpop.xlane.xlu0 %2566
      %v2568 = vsel %vm2430, %v2535, -inf
      %2569 = vmax.xlane.f32.xlu0 %v2568
      %v2570 = vpop.xlane.xlu0 %2569
      %v2571 = vsel %vm2430, %v2536, -inf
      %2572 = vmax.xlane.f32.xlu0 %v2571
      %v2573 = vpop.xlane.xlu0 %2572
      %v2574 = vsel %vm2430, %v2537, -inf
      %2575 = vmax.xlane.f32.xlu0 %v2574
      %v2576 = vpop.xlane.xlu0 %2575
      %v2577 = vsel %vm2430, %v2538, -inf
      %2578 = vmax.xlane.f32.xlu0 %v2577
      %v2579 = vpop.xlane.xlu0 %2578
      %v2580 = vsel %vm2430, %v2539, -inf
      %2581 = vmax.xlane.f32.xlu0 %v2580
      %v2582 = vpop.xlane.xlu0 %2581
      %v2583 = vsel %vm2430, %v2540, -inf
      %2584 = vmax.xlane.f32.xlu0 %v2583
      %v2585 = vpop.xlane.xlu0 %2584
      %v2586 = vsel %vm2430, %v2541, -inf
      %2587 = vmax.xlane.f32.xlu0 %v2586
      %v2588 = vpop.xlane.xlu0 %2587
      %v2589 = vsel %vm2430, %v2542, -inf
      %2590 = vmax.xlane.f32.xlu0 %v2589
      %v2591 = vpop.xlane.xlu0 %2590
      %v2592 = vsel %vm2430, %v2543, -inf
      %2593 = vmax.xlane.f32.xlu0 %v2592
      %v2594 = vpop.xlane.xlu0 %2593
      %v2595 = vsel %vm2430, %v2544, -inf
      %2596 = vmax.xlane.f32.xlu0 %v2595
      %v2597 = vpop.xlane.xlu0 %2596
      %v2598 = vsel %vm2430, %v2545, -inf
      %2599 = vmax.xlane.f32.xlu0 %v2598
      %v2600 = vpop.xlane.xlu0 %2599
      %v2601 = vsel %vm2430, %v2546, -inf
      %2602 = vmax.xlane.f32.xlu0 %v2601
      %v2603 = vpop.xlane.xlu0 %2602
      %v2604 = vsel %vm2430, %v2547, -inf
      %2605 = vmax.xlane.f32.xlu0 %v2604
      %v2606 = vpop.xlane.xlu0 %2605
      %v2607 = vsel %vm2430, %v2548, -inf
      %2608 = vmax.xlane.f32.xlu0 %v2607
      %v2609 = vpop.xlane.xlu0 %2608
      %v2610 = vsel %vm2430, %v2549, -inf
      %2611 = vmax.xlane.f32.xlu0 %v2610
      %v2612 = vpop.xlane.xlu0 %2611
      %v2613 = vsel %vm2430, %v2550, -inf
      %2614 = vmax.xlane.f32.xlu0 %v2613
      %v2615 = vpop.xlane.xlu0 %2614
      %v2616 = vsel %vm2430, %v2551, -inf
      %2617 = vmax.xlane.f32.xlu0 %v2616
      %v2618 = vpop.xlane.xlu0 %2617
      %v2619 = vsel %vm2430, %v2552, -inf
      %2620 = vmax.xlane.f32.xlu0 %v2619
      %v2621 = vpop.xlane.xlu0 %2620
      %v2622 = vsel %vm2430, %v2553, -inf
      %2623 = vmax.xlane.f32.xlu0 %v2622
      %v2624 = vpop.xlane.xlu0 %2623
      %v2625 = vsel %vm2430, %v2554, -inf
      %2626 = vmax.xlane.f32.xlu0 %v2625
      %v2627 = vpop.xlane.xlu0 %2626
      %v2628 = vsel %vm2430, %v2555, -inf
      %2629 = vmax.xlane.f32.xlu0 %v2628
      %v2630 = vpop.xlane.xlu0 %2629
      %vm2631 = vcmp.ge.f32.partialorder %v2531, %v2558
      %vm2632 = vcmp.ge.f32.partialorder %v2532, %v2561
      %vm2633 = vcmp.ge.f32.partialorder %v2533, %v2564
      %vm2634 = vcmp.ge.f32.partialorder %v2534, %v2567
      %vm2635 = vcmp.ge.f32.partialorder %v2535, %v2570
      %vm2636 = vcmp.ge.f32.partialorder %v2536, %v2573
      %vm2637 = vcmp.ge.f32.partialorder %v2537, %v2576
      %vm2638 = vcmp.ge.f32.partialorder %v2538, %v2579
      %vm2639 = vcmp.ge.f32.partialorder %v2539, %v2582
      %vm2640 = vcmp.ge.f32.partialorder %v2540, %v2585
      %vm2641 = vcmp.ge.f32.partialorder %v2541, %v2588
      %vm2642 = vcmp.ge.f32.partialorder %v2542, %v2591
      %vm2643 = vcmp.ge.f32.partialorder %v2543, %v2594
      %vm2644 = vcmp.ge.f32.partialorder %v2544, %v2597
      %vm2645 = vcmp.ge.f32.partialorder %v2545, %v2600
      %vm2646 = vcmp.ge.f32.partialorder %v2546, %v2603
      %vm2647 = vcmp.ge.f32.partialorder %v2547, %v2606
      %vm2648 = vcmp.ge.f32.partialorder %v2548, %v2609
      %vm2649 = vcmp.ge.f32.partialorder %v2549, %v2612
      %vm2650 = vcmp.ge.f32.partialorder %v2550, %v2615
      %vm2651 = vcmp.ge.f32.partialorder %v2551, %v2618
      %vm2652 = vcmp.ge.f32.partialorder %v2552, %v2621
      %vm2653 = vcmp.ge.f32.partialorder %v2553, %v2624
      %vm2654 = vcmp.ge.f32.partialorder %v2554, %v2627
      %vm2655 = vcmp.ge.f32.partialorder %v2555, %v2630
      %v2656 = vsel %vm2631, -1.0, %v2531
      %v2657 = vsel %vm2632, -1.0, %v2532
      %v2658 = vsel %vm2633, -1.0, %v2533
      %v2659 = vsel %vm2634, -1.0, %v2534
      %v2660 = vsel %vm2635, -1.0, %v2535
      %v2661 = vsel %vm2636, -1.0, %v2536
      %v2662 = vsel %vm2637, -1.0, %v2537
      %v2663 = vsel %vm2638, -1.0, %v2538
      %v2664 = vsel %vm2639, -1.0, %v2539
      %v2665 = vsel %vm2640, -1.0, %v2540
      %v2666 = vsel %vm2641, -1.0, %v2541
      %v2667 = vsel %vm2642, -1.0, %v2542
      %v2668 = vsel %vm2643, -1.0, %v2543
      %v2669 = vsel %vm2644, -1.0, %v2544
      %v2670 = vsel %vm2645, -1.0, %v2545
      %v2671 = vsel %vm2646, -1.0, %v2546
      %v2672 = vsel %vm2647, -1.0, %v2547
      %v2673 = vsel %vm2648, -1.0, %v2548
      %v2674 = vsel %vm2649, -1.0, %v2549
      %v2675 = vsel %vm2650, -1.0, %v2550
      %v2676 = vsel %vm2651, -1.0, %v2551
      %v2677 = vsel %vm2652, -1.0, %v2552
      %v2678 = vsel %vm2653, -1.0, %v2553
      %v2679 = vsel %vm2654, -1.0, %v2554
      %v2680 = vsel %vm2655, -1.0, %v2555
      %v2681 = vsel %vm2430, %v2656, -inf
      %2682 = vmax.xlane.f32.xlu0 %v2681
      %v2683 = vpop.xlane.xlu0 %2682
      %v2684 = vsel %vm2430, %v2657, -inf
      %2685 = vmax.xlane.f32.xlu0 %v2684
      %v2686 = vpop.xlane.xlu0 %2685
      %v2687 = vsel %vm2430, %v2658, -inf
      %2688 = vmax.xlane.f32.xlu0 %v2687
      %v2689 = vpop.xlane.xlu0 %2688
      %v2690 = vsel %vm2430, %v2659, -inf
      %2691 = vmax.xlane.f32.xlu0 %v2690
      %v2692 = vpop.xlane.xlu0 %2691
      %v2693 = vsel %vm2430, %v2660, -inf
      %2694 = vmax.xlane.f32.xlu0 %v2693
      %v2695 = vpop.xlane.xlu0 %2694
      %v2696 = vsel %vm2430, %v2661, -inf
      %2697 = vmax.xlane.f32.xlu0 %v2696
      %v2698 = vpop.xlane.xlu0 %2697
      %v2699 = vsel %vm2430, %v2662, -inf
      %2700 = vmax.xlane.f32.xlu0 %v2699
      %v2701 = vpop.xlane.xlu0 %2700
      %v2702 = vsel %vm2430, %v2663, -inf
      %2703 = vmax.xlane.f32.xlu0 %v2702
      %v2704 = vpop.xlane.xlu0 %2703
      %v2705 = vsel %vm2430, %v2664, -inf
      %2706 = vmax.xlane.f32.xlu0 %v2705
      %v2707 = vpop.xlane.xlu0 %2706
      %v2708 = vsel %vm2430, %v2665, -inf
      %2709 = vmax.xlane.f32.xlu0 %v2708
      %v2710 = vpop.xlane.xlu0 %2709
      %v2711 = vsel %vm2430, %v2666, -inf
      %2712 = vmax.xlane.f32.xlu0 %v2711
      %v2713 = vpop.xlane.xlu0 %2712
      %v2714 = vsel %vm2430, %v2667, -inf
      %2715 = vmax.xlane.f32.xlu0 %v2714
      %v2716 = vpop.xlane.xlu0 %2715
      %v2717 = vsel %vm2430, %v2668, -inf
      %2718 = vmax.xlane.f32.xlu0 %v2717
      %v2719 = vpop.xlane.xlu0 %2718
      %v2720 = vsel %vm2430, %v2669, -inf
      %2721 = vmax.xlane.f32.xlu0 %v2720
      %v2722 = vpop.xlane.xlu0 %2721
      %v2723 = vsel %vm2430, %v2670, -inf
      %2724 = vmax.xlane.f32.xlu0 %v2723
      %v2725 = vpop.xlane.xlu0 %2724
      %v2726 = vsel %vm2430, %v2671, -inf
      %2727 = vmax.xlane.f32.xlu0 %v2726
      %v2728 = vpop.xlane.xlu0 %2727
      %v2729 = vsel %vm2430, %v2672, -inf
      %2730 = vmax.xlane.f32.xlu0 %v2729
      %v2731 = vpop.xlane.xlu0 %2730
      %v2732 = vsel %vm2430, %v2673, -inf
      %2733 = vmax.xlane.f32.xlu0 %v2732
      %v2734 = vpop.xlane.xlu0 %2733
      %v2735 = vsel %vm2430, %v2674, -inf
      %2736 = vmax.xlane.f32.xlu0 %v2735
      %v2737 = vpop.xlane.xlu0 %2736
      %v2738 = vsel %vm2430, %v2675, -inf
      %2739 = vmax.xlane.f32.xlu0 %v2738
      %v2740 = vpop.xlane.xlu0 %2739
      %v2741 = vsel %vm2430, %v2676, -inf
      %2742 = vmax.xlane.f32.xlu0 %v2741
      %v2743 = vpop.xlane.xlu0 %2742
      %v2744 = vsel %vm2430, %v2677, -inf
      %2745 = vmax.xlane.f32.xlu0 %v2744
      %v2746 = vpop.xlane.xlu0 %2745
      %v2747 = vsel %vm2430, %v2678, -inf
      %2748 = vmax.xlane.f32.xlu0 %v2747
      %v2749 = vpop.xlane.xlu0 %2748
      %v2750 = vsel %vm2430, %v2679, -inf
      %2751 = vmax.xlane.f32.xlu0 %v2750
      %v2752 = vpop.xlane.xlu0 %2751
      %v2753 = vsel %vm2430, %v2680, -inf
      %2754 = vmax.xlane.f32.xlu0 %v2753
      %v2755 = vpop.xlane.xlu0 %2754
      %vm2756 = vcmp.ge.f32.partialorder %v2656, %v2683
      %vm2757 = vcmp.ge.f32.partialorder %v2657, %v2686
      %vm2758 = vcmp.ge.f32.partialorder %v2658, %v2689
      %vm2759 = vcmp.ge.f32.partialorder %v2659, %v2692
      %vm2760 = vcmp.ge.f32.partialorder %v2660, %v2695
      %vm2761 = vcmp.ge.f32.partialorder %v2661, %v2698
      %vm2762 = vcmp.ge.f32.partialorder %v2662, %v2701
      %vm2763 = vcmp.ge.f32.partialorder %v2663, %v2704
      %vm2764 = vcmp.ge.f32.partialorder %v2664, %v2707
      %vm2765 = vcmp.ge.f32.partialorder %v2665, %v2710
      %vm2766 = vcmp.ge.f32.partialorder %v2666, %v2713
      %vm2767 = vcmp.ge.f32.partialorder %v2667, %v2716
      %vm2768 = vcmp.ge.f32.partialorder %v2668, %v2719
      %vm2769 = vcmp.ge.f32.partialorder %v2669, %v2722
      %vm2770 = vcmp.ge.f32.partialorder %v2670, %v2725
      %vm2771 = vcmp.ge.f32.partialorder %v2671, %v2728
      %vm2772 = vcmp.ge.f32.partialorder %v2672, %v2731
      %vm2773 = vcmp.ge.f32.partialorder %v2673, %v2734
      %vm2774 = vcmp.ge.f32.partialorder %v2674, %v2737
      %vm2775 = vcmp.ge.f32.partialorder %v2675, %v2740
      %vm2776 = vcmp.ge.f32.partialorder %v2676, %v2743
      %vm2777 = vcmp.ge.f32.partialorder %v2677, %v2746
      %vm2778 = vcmp.ge.f32.partialorder %v2678, %v2749
      %vm2779 = vcmp.ge.f32.partialorder %v2679, %v2752
      %vm2780 = vcmp.ge.f32.partialorder %v2680, %v2755
      %v2781 = vsel %vm2756, -1.0, %v2656
      %v2782 = vsel %vm2757, -1.0, %v2657
      %v2783 = vsel %vm2758, -1.0, %v2658
      %v2784 = vsel %vm2759, -1.0, %v2659
      %v2785 = vsel %vm2760, -1.0, %v2660
      %v2786 = vsel %vm2761, -1.0, %v2661
      %v2787 = vsel %vm2762, -1.0, %v2662
      %v2788 = vsel %vm2763, -1.0, %v2663
      %v2789 = vsel %vm2764, -1.0, %v2664
      %v2790 = vsel %vm2765, -1.0, %v2665
      %v2791 = vsel %vm2766, -1.0, %v2666
      %v2792 = vsel %vm2767, -1.0, %v2667
      %v2793 = vsel %vm2768, -1.0, %v2668
      %v2794 = vsel %vm2769, -1.0, %v2669
      %v2795 = vsel %vm2770, -1.0, %v2670
      %v2796 = vsel %vm2771, -1.0, %v2671
      %v2797 = vsel %vm2772, -1.0, %v2672
      %v2798 = vsel %vm2773, -1.0, %v2673
      %v2799 = vsel %vm2774, -1.0, %v2674
      %v2800 = vsel %vm2775, -1.0, %v2675
      %v2801 = vsel %vm2776, -1.0, %v2676
      %v2802 = vsel %vm2777, -1.0, %v2677
      %v2803 = vsel %vm2778, -1.0, %v2678
      %v2804 = vsel %vm2779, -1.0, %v2679
      %v2805 = vsel %vm2780, -1.0, %v2680
      %v2806 = vsel %vm2430, %v2781, -inf
      %2807 = vmax.xlane.f32.xlu0 %v2806
      %v2808 = vpop.xlane.xlu0 %2807
      %v2809 = vsel %vm2430, %v2782, -inf
      %2810 = vmax.xlane.f32.xlu0 %v2809
      %v2811 = vpop.xlane.xlu0 %2810
      %v2812 = vsel %vm2430, %v2783, -inf
      %2813 = vmax.xlane.f32.xlu0 %v2812
      %v2814 = vpop.xlane.xlu0 %2813
      %v2815 = vsel %vm2430, %v2784, -inf
      %2816 = vmax.xlane.f32.xlu0 %v2815
      %v2817 = vpop.xlane.xlu0 %2816
      %v2818 = vsel %vm2430, %v2785, -inf
      %2819 = vmax.xlane.f32.xlu0 %v2818
      %v2820 = vpop.xlane.xlu0 %2819
      %v2821 = vsel %vm2430, %v2786, -inf
      %2822 = vmax.xlane.f32.xlu0 %v2821
      %v2823 = vpop.xlane.xlu0 %2822
      %v2824 = vsel %vm2430, %v2787, -inf
      %2825 = vmax.xlane.f32.xlu0 %v2824
      %v2826 = vpop.xlane.xlu0 %2825
      %v2827 = vsel %vm2430, %v2788, -inf
      %2828 = vmax.xlane.f32.xlu0 %v2827
      %v2829 = vpop.xlane.xlu0 %2828
      %v2830 = vsel %vm2430, %v2789, -inf
      %2831 = vmax.xlane.f32.xlu0 %v2830
      %v2832 = vpop.xlane.xlu0 %2831
      %v2833 = vsel %vm2430, %v2790, -inf
      %2834 = vmax.xlane.f32.xlu0 %v2833
      %v2835 = vpop.xlane.xlu0 %2834
      %v2836 = vsel %vm2430, %v2791, -inf
      %2837 = vmax.xlane.f32.xlu0 %v2836
      %v2838 = vpop.xlane.xlu0 %2837
      %v2839 = vsel %vm2430, %v2792, -inf
      %2840 = vmax.xlane.f32.xlu0 %v2839
      %v2841 = vpop.xlane.xlu0 %2840
      %v2842 = vsel %vm2430, %v2793, -inf
      %2843 = vmax.xlane.f32.xlu0 %v2842
      %v2844 = vpop.xlane.xlu0 %2843
      %v2845 = vsel %vm2430, %v2794, -inf
      %2846 = vmax.xlane.f32.xlu0 %v2845
      %v2847 = vpop.xlane.xlu0 %2846
      %v2848 = vsel %vm2430, %v2795, -inf
      %2849 = vmax.xlane.f32.xlu0 %v2848
      %v2850 = vpop.xlane.xlu0 %2849
      %v2851 = vsel %vm2430, %v2796, -inf
      %2852 = vmax.xlane.f32.xlu0 %v2851
      %v2853 = vpop.xlane.xlu0 %2852
      %v2854 = vsel %vm2430, %v2797, -inf
      %2855 = vmax.xlane.f32.xlu0 %v2854
      %v2856 = vpop.xlane.xlu0 %2855
      %v2857 = vsel %vm2430, %v2798, -inf
      %2858 = vmax.xlane.f32.xlu0 %v2857
      %v2859 = vpop.xlane.xlu0 %2858
      %v2860 = vsel %vm2430, %v2799, -inf
      %2861 = vmax.xlane.f32.xlu0 %v2860
      %v2862 = vpop.xlane.xlu0 %2861
      %v2863 = vsel %vm2430, %v2800, -inf
      %2864 = vmax.xlane.f32.xlu0 %v2863
      %v2865 = vpop.xlane.xlu0 %2864
      %v2866 = vsel %vm2430, %v2801, -inf
      %2867 = vmax.xlane.f32.xlu0 %v2866
      %v2868 = vpop.xlane.xlu0 %2867
      %v2869 = vsel %vm2430, %v2802, -inf
      %2870 = vmax.xlane.f32.xlu0 %v2869
      %v2871 = vpop.xlane.xlu0 %2870
      %v2872 = vsel %vm2430, %v2803, -inf
      %2873 = vmax.xlane.f32.xlu0 %v2872
      %v2874 = vpop.xlane.xlu0 %2873
      %v2875 = vsel %vm2430, %v2804, -inf
      %2876 = vmax.xlane.f32.xlu0 %v2875
      %v2877 = vpop.xlane.xlu0 %2876
      %v2878 = vsel %vm2430, %v2805, -inf
      %2879 = vmax.xlane.f32.xlu0 %v2878
      %v2880 = vpop.xlane.xlu0 %2879
      %vm2881 = vcmp.ge.f32.partialorder %v2781, %v2808
      %vm2882 = vcmp.ge.f32.partialorder %v2782, %v2811
      %vm2883 = vcmp.ge.f32.partialorder %v2783, %v2814
      %vm2884 = vcmp.ge.f32.partialorder %v2784, %v2817
      %vm2885 = vcmp.ge.f32.partialorder %v2785, %v2820
      %vm2886 = vcmp.ge.f32.partialorder %v2786, %v2823
      %vm2887 = vcmp.ge.f32.partialorder %v2787, %v2826
      %vm2888 = vcmp.ge.f32.partialorder %v2788, %v2829
      %vm2889 = vcmp.ge.f32.partialorder %v2789, %v2832
      %vm2890 = vcmp.ge.f32.partialorder %v2790, %v2835
      %vm2891 = vcmp.ge.f32.partialorder %v2791, %v2838
      %vm2892 = vcmp.ge.f32.partialorder %v2792, %v2841
      %vm2893 = vcmp.ge.f32.partialorder %v2793, %v2844
      %vm2894 = vcmp.ge.f32.partialorder %v2794, %v2847
      %vm2895 = vcmp.ge.f32.partialorder %v2795, %v2850
      %vm2896 = vcmp.ge.f32.partialorder %v2796, %v2853
      %vm2897 = vcmp.ge.f32.partialorder %v2797, %v2856
      %vm2898 = vcmp.ge.f32.partialorder %v2798, %v2859
      %vm2899 = vcmp.ge.f32.partialorder %v2799, %v2862
      %vm2900 = vcmp.ge.f32.partialorder %v2800, %v2865
      %vm2901 = vcmp.ge.f32.partialorder %v2801, %v2868
      %vm2902 = vcmp.ge.f32.partialorder %v2802, %v2871
      %vm2903 = vcmp.ge.f32.partialorder %v2803, %v2874
      %vm2904 = vcmp.ge.f32.partialorder %v2804, %v2877
      %vm2905 = vcmp.ge.f32.partialorder %v2805, %v2880
      %v2906 = vsel %vm2881, -1.0, %v2781
      %v2907 = vsel %vm2882, -1.0, %v2782
      %v2908 = vsel %vm2883, -1.0, %v2783
      %v2909 = vsel %vm2884, -1.0, %v2784
      %v2910 = vsel %vm2885, -1.0, %v2785
      %v2911 = vsel %vm2886, -1.0, %v2786
      %v2912 = vsel %vm2887, -1.0, %v2787
      %v2913 = vsel %vm2888, -1.0, %v2788
      %v2914 = vsel %vm2889, -1.0, %v2789
      %v2915 = vsel %vm2890, -1.0, %v2790
      %v2916 = vsel %vm2891, -1.0, %v2791
      %v2917 = vsel %vm2892, -1.0, %v2792
      %v2918 = vsel %vm2893, -1.0, %v2793
      %v2919 = vsel %vm2894, -1.0, %v2794
      %v2920 = vsel %vm2895, -1.0, %v2795
      %v2921 = vsel %vm2896, -1.0, %v2796
      %v2922 = vsel %vm2897, -1.0, %v2797
      %v2923 = vsel %vm2898, -1.0, %v2798
      %v2924 = vsel %vm2899, -1.0, %v2799
      %v2925 = vsel %vm2900, -1.0, %v2800
      %v2926 = vsel %vm2901, -1.0, %v2801
      %v2927 = vsel %vm2902, -1.0, %v2802
      %v2928 = vsel %vm2903, -1.0, %v2803
      %v2929 = vsel %vm2904, -1.0, %v2804
      %v2930 = vsel %vm2905, -1.0, %v2805
      %v2931 = vsel %vm2430, %v2906, -inf
      %2932 = vmax.xlane.f32.xlu0 %v2931
      %v2933 = vpop.xlane.xlu0 %2932
      %v2934 = vsel %vm2430, %v2907, -inf
      %2935 = vmax.xlane.f32.xlu0 %v2934
      %v2936 = vpop.xlane.xlu0 %2935
      %v2937 = vsel %vm2430, %v2908, -inf
      %2938 = vmax.xlane.f32.xlu0 %v2937
      %v2939 = vpop.xlane.xlu0 %2938
      %v2940 = vsel %vm2430, %v2909, -inf
      %2941 = vmax.xlane.f32.xlu0 %v2940
      %v2942 = vpop.xlane.xlu0 %2941
      %v2943 = vsel %vm2430, %v2910, -inf
      %2944 = vmax.xlane.f32.xlu0 %v2943
      %v2945 = vpop.xlane.xlu0 %2944
      %v2946 = vsel %vm2430, %v2911, -inf
      %2947 = vmax.xlane.f32.xlu0 %v2946
      %v2948 = vpop.xlane.xlu0 %2947
      %v2949 = vsel %vm2430, %v2912, -inf
      %2950 = vmax.xlane.f32.xlu0 %v2949
      %v2951 = vpop.xlane.xlu0 %2950
      %v2952 = vsel %vm2430, %v2913, -inf
      %2953 = vmax.xlane.f32.xlu0 %v2952
      %v2954 = vpop.xlane.xlu0 %2953
      %v2955 = vsel %vm2430, %v2914, -inf
      %2956 = vmax.xlane.f32.xlu0 %v2955
      %v2957 = vpop.xlane.xlu0 %2956
      %v2958 = vsel %vm2430, %v2915, -inf
      %2959 = vmax.xlane.f32.xlu0 %v2958
      %v2960 = vpop.xlane.xlu0 %2959
      %v2961 = vsel %vm2430, %v2916, -inf
      %2962 = vmax.xlane.f32.xlu0 %v2961
      %v2963 = vpop.xlane.xlu0 %2962
      %v2964 = vsel %vm2430, %v2917, -inf
      %2965 = vmax.xlane.f32.xlu0 %v2964
      %v2966 = vpop.xlane.xlu0 %2965
      %v2967 = vsel %vm2430, %v2918, -inf
      %2968 = vmax.xlane.f32.xlu0 %v2967
      %v2969 = vpop.xlane.xlu0 %2968
      %v2970 = vsel %vm2430, %v2919, -inf
      %2971 = vmax.xlane.f32.xlu0 %v2970
      %v2972 = vpop.xlane.xlu0 %2971
      %v2973 = vsel %vm2430, %v2920, -inf
      %2974 = vmax.xlane.f32.xlu0 %v2973
      %v2975 = vpop.xlane.xlu0 %2974
      %v2976 = vsel %vm2430, %v2921, -inf
      %2977 = vmax.xlane.f32.xlu0 %v2976
      %v2978 = vpop.xlane.xlu0 %2977
      %v2979 = vsel %vm2430, %v2922, -inf
      %2980 = vmax.xlane.f32.xlu0 %v2979
      %v2981 = vpop.xlane.xlu0 %2980
      %v2982 = vsel %vm2430, %v2923, -inf
      %2983 = vmax.xlane.f32.xlu0 %v2982
      %v2984 = vpop.xlane.xlu0 %2983
      %v2985 = vsel %vm2430, %v2924, -inf
      %2986 = vmax.xlane.f32.xlu0 %v2985
      %v2987 = vpop.xlane.xlu0 %2986
      %v2988 = vsel %vm2430, %v2925, -inf
      %2989 = vmax.xlane.f32.xlu0 %v2988
      %v2990 = vpop.xlane.xlu0 %2989
      %v2991 = vsel %vm2430, %v2926, -inf
      %2992 = vmax.xlane.f32.xlu0 %v2991
      %v2993 = vpop.xlane.xlu0 %2992
      %v2994 = vsel %vm2430, %v2927, -inf
      %2995 = vmax.xlane.f32.xlu0 %v2994
      %v2996 = vpop.xlane.xlu0 %2995
      %v2997 = vsel %vm2430, %v2928, -inf
      %2998 = vmax.xlane.f32.xlu0 %v2997
      %v2999 = vpop.xlane.xlu0 %2998
      %v3000 = vsel %vm2430, %v2929, -inf
      %3001 = vmax.xlane.f32.xlu0 %v3000
      %v3002 = vpop.xlane.xlu0 %3001
      %v3003 = vsel %vm2430, %v2930, -inf
      %3004 = vmax.xlane.f32.xlu0 %v3003
      %v3005 = vpop.xlane.xlu0 %3004
      %vm3006 = vcmp.ge.f32.partialorder %v2906, %v2933
      %vm3007 = vcmp.ge.f32.partialorder %v2907, %v2936
      %vm3008 = vcmp.ge.f32.partialorder %v2908, %v2939
      %vm3009 = vcmp.ge.f32.partialorder %v2909, %v2942
      %vm3010 = vcmp.ge.f32.partialorder %v2910, %v2945
      %vm3011 = vcmp.ge.f32.partialorder %v2911, %v2948
      %vm3012 = vcmp.ge.f32.partialorder %v2912, %v2951
      %vm3013 = vcmp.ge.f32.partialorder %v2913, %v2954
      %vm3014 = vcmp.ge.f32.partialorder %v2914, %v2957
      %vm3015 = vcmp.ge.f32.partialorder %v2915, %v2960
      %vm3016 = vcmp.ge.f32.partialorder %v2916, %v2963
      %vm3017 = vcmp.ge.f32.partialorder %v2917, %v2966
      %vm3018 = vcmp.ge.f32.partialorder %v2918, %v2969
      %vm3019 = vcmp.ge.f32.partialorder %v2919, %v2972
      %vm3020 = vcmp.ge.f32.partialorder %v2920, %v2975
      %vm3021 = vcmp.ge.f32.partialorder %v2921, %v2978
      %vm3022 = vcmp.ge.f32.partialorder %v2922, %v2981
      %vm3023 = vcmp.ge.f32.partialorder %v2923, %v2984
      %vm3024 = vcmp.ge.f32.partialorder %v2924, %v2987
      %vm3025 = vcmp.ge.f32.partialorder %v2925, %v2990
      %vm3026 = vcmp.ge.f32.partialorder %v2926, %v2993
      %vm3027 = vcmp.ge.f32.partialorder %v2927, %v2996
      %vm3028 = vcmp.ge.f32.partialorder %v2928, %v2999
      %vm3029 = vcmp.ge.f32.partialorder %v2929, %v3002
      %vm3030 = vcmp.ge.f32.partialorder %v2930, %v3005
      %v3031 = vsel %vm3006, -1.0, %v2906
      %v3032 = vsel %vm3007, -1.0, %v2907
      %v3033 = vsel %vm3008, -1.0, %v2908
      %v3034 = vsel %vm3009, -1.0, %v2909
      %v3035 = vsel %vm3010, -1.0, %v2910
      %v3036 = vsel %vm3011, -1.0, %v2911
      %v3037 = vsel %vm3012, -1.0, %v2912
      %v3038 = vsel %vm3013, -1.0, %v2913
      %v3039 = vsel %vm3014, -1.0, %v2914
      %v3040 = vsel %vm3015, -1.0, %v2915
      %v3041 = vsel %vm3016, -1.0, %v2916
      %v3042 = vsel %vm3017, -1.0, %v2917
      %v3043 = vsel %vm3018, -1.0, %v2918
      %v3044 = vsel %vm3019, -1.0, %v2919
      %v3045 = vsel %vm3020, -1.0, %v2920
      %v3046 = vsel %vm3021, -1.0, %v2921
      %v3047 = vsel %vm3022, -1.0, %v2922
      %v3048 = vsel %vm3023, -1.0, %v2923
      %v3049 = vsel %vm3024, -1.0, %v2924
      %v3050 = vsel %vm3025, -1.0, %v2925
      %v3051 = vsel %vm3026, -1.0, %v2926
      %v3052 = vsel %vm3027, -1.0, %v2927
      %v3053 = vsel %vm3028, -1.0, %v2928
      %v3054 = vsel %vm3029, -1.0, %v2929
      %v3055 = vsel %vm3030, -1.0, %v2930
      %v3056 = vsel %vm2430, %v3031, -inf
      %3057 = vmax.xlane.f32.xlu0 %v3056
      %v3058 = vpop.xlane.xlu0 %3057
      %v3059 = vsel %vm2430, %v3032, -inf
      %3060 = vmax.xlane.f32.xlu0 %v3059
      %v3061 = vpop.xlane.xlu0 %3060
      %v3062 = vsel %vm2430, %v3033, -inf
      %3063 = vmax.xlane.f32.xlu0 %v3062
      %v3064 = vpop.xlane.xlu0 %3063
      %v3065 = vsel %vm2430, %v3034, -inf
      %3066 = vmax.xlane.f32.xlu0 %v3065
      %v3067 = vpop.xlane.xlu0 %3066
      %v3068 = vsel %vm2430, %v3035, -inf
      %3069 = vmax.xlane.f32.xlu0 %v3068
      %v3070 = vpop.xlane.xlu0 %3069
      %v3071 = vsel %vm2430, %v3036, -inf
      %3072 = vmax.xlane.f32.xlu0 %v3071
      %v3073 = vpop.xlane.xlu0 %3072
      %v3074 = vsel %vm2430, %v3037, -inf
      %3075 = vmax.xlane.f32.xlu0 %v3074
      %v3076 = vpop.xlane.xlu0 %3075
      %v3077 = vsel %vm2430, %v3038, -inf
      %3078 = vmax.xlane.f32.xlu0 %v3077
      %v3079 = vpop.xlane.xlu0 %3078
      %v3080 = vsel %vm2430, %v3039, -inf
      %3081 = vmax.xlane.f32.xlu0 %v3080
      %v3082 = vpop.xlane.xlu0 %3081
      %v3083 = vsel %vm2430, %v3040, -inf
      %3084 = vmax.xlane.f32.xlu0 %v3083
      %v3085 = vpop.xlane.xlu0 %3084
      %v3086 = vsel %vm2430, %v3041, -inf
      %3087 = vmax.xlane.f32.xlu0 %v3086
      %v3088 = vpop.xlane.xlu0 %3087
      %v3089 = vsel %vm2430, %v3042, -inf
      %3090 = vmax.xlane.f32.xlu0 %v3089
      %v3091 = vpop.xlane.xlu0 %3090
      %v3092 = vsel %vm2430, %v3043, -inf
      %3093 = vmax.xlane.f32.xlu0 %v3092
      %v3094 = vpop.xlane.xlu0 %3093
      %v3095 = vsel %vm2430, %v3044, -inf
      %3096 = vmax.xlane.f32.xlu0 %v3095
      %v3097 = vpop.xlane.xlu0 %3096
      %v3098 = vsel %vm2430, %v3045, -inf
      %3099 = vmax.xlane.f32.xlu0 %v3098
      %v3100 = vpop.xlane.xlu0 %3099
      %v3101 = vsel %vm2430, %v3046, -inf
      %3102 = vmax.xlane.f32.xlu0 %v3101
      %v3103 = vpop.xlane.xlu0 %3102
      %v3104 = vsel %vm2430, %v3047, -inf
      %3105 = vmax.xlane.f32.xlu0 %v3104
      %v3106 = vpop.xlane.xlu0 %3105
      %v3107 = vsel %vm2430, %v3048, -inf
      %3108 = vmax.xlane.f32.xlu0 %v3107
      %v3109 = vpop.xlane.xlu0 %3108
      %v3110 = vsel %vm2430, %v3049, -inf
      %3111 = vmax.xlane.f32.xlu0 %v3110
      %v3112 = vpop.xlane.xlu0 %3111
      %v3113 = vsel %vm2430, %v3050, -inf
      %3114 = vmax.xlane.f32.xlu0 %v3113
      %v3115 = vpop.xlane.xlu0 %3114
      %v3116 = vsel %vm2430, %v3051, -inf
      %3117 = vmax.xlane.f32.xlu0 %v3116
      %v3118 = vpop.xlane.xlu0 %3117
      %v3119 = vsel %vm2430, %v3052, -inf
      %3120 = vmax.xlane.f32.xlu0 %v3119
      %v3121 = vpop.xlane.xlu0 %3120
      %v3122 = vsel %vm2430, %v3053, -inf
      %3123 = vmax.xlane.f32.xlu0 %v3122
      %v3124 = vpop.xlane.xlu0 %3123
      %v3125 = vsel %vm2430, %v3054, -inf
      %3126 = vmax.xlane.f32.xlu0 %v3125
      %v3127 = vpop.xlane.xlu0 %3126
      %v3128 = vsel %vm2430, %v3055, -inf
      %3129 = vmax.xlane.f32.xlu0 %v3128
      %v3130 = vpop.xlane.xlu0 %3129
      %vm3131 = vcmp.ge.f32.partialorder %v2405, %v3058
      %vm3132 = vcmp.ge.f32.partialorder %v2406, %v3061
      %vm3133 = vcmp.ge.f32.partialorder %v2407, %v3064
      %vm3134 = vcmp.ge.f32.partialorder %v2408, %v3067
      %vm3135 = vcmp.ge.f32.partialorder %v2409, %v3070
      %vm3136 = vcmp.ge.f32.partialorder %v2410, %v3073
      %vm3137 = vcmp.ge.f32.partialorder %v2411, %v3076
      %vm3138 = vcmp.ge.f32.partialorder %v2412, %v3079
      %vm3139 = vcmp.ge.f32.partialorder %v2413, %v3082
      %vm3140 = vcmp.ge.f32.partialorder %v2414, %v3085
      %vm3141 = vcmp.ge.f32.partialorder %v2415, %v3088
      %vm3142 = vcmp.ge.f32.partialorder %v2416, %v3091
      %vm3143 = vcmp.ge.f32.partialorder %v2417, %v3094
      %vm3144 = vcmp.ge.f32.partialorder %v2418, %v3097
      %vm3145 = vcmp.ge.f32.partialorder %v2419, %v3100
      %vm3146 = vcmp.ge.f32.partialorder %v2420, %v3103
      %vm3147 = vcmp.ge.f32.partialorder %v2421, %v3106
      %vm3148 = vcmp.ge.f32.partialorder %v2422, %v3109
      %vm3149 = vcmp.ge.f32.partialorder %v2423, %v3112
      %vm3150 = vcmp.ge.f32.partialorder %v2424, %v3115
      %vm3151 = vcmp.ge.f32.partialorder %v2425, %v3118
      %vm3152 = vcmp.ge.f32.partialorder %v2426, %v3121
      %vm3153 = vcmp.ge.f32.partialorder %v2427, %v3124
      %vm3154 = vcmp.ge.f32.partialorder %v2428, %v3127
      %vm3155 = vcmp.ge.f32.partialorder %v2429, %v3130
      %v3156 = vsel %vm3131, %v2380, 0.0
      %v3157 = vsel %vm3132, %v2381, 0.0
      %v3158 = vsel %vm3133, %v2382, 0.0
      %v3159 = vsel %vm3134, %v2383, 0.0
      %v3160 = vsel %vm3135, %v2384, 0.0
      %v3161 = vsel %vm3136, %v2385, 0.0
      %v3162 = vsel %vm3137, %v2386, 0.0
      %v3163 = vsel %vm3138, %v2387, 0.0
      %v3164 = vsel %vm3139, %v2388, 0.0
      %v3165 = vsel %vm3140, %v2389, 0.0
      %v3166 = vsel %vm3141, %v2390, 0.0
      %v3167 = vsel %vm3142, %v2391, 0.0
      %v3168 = vsel %vm3143, %v2392, 0.0
      %v3169 = vsel %vm3144, %v2393, 0.0
      %v3170 = vsel %vm3145, %v2394, 0.0
      %v3171 = vsel %vm3146, %v2395, 0.0
      %v3172 = vsel %vm3147, %v2396, 0.0
      %v3173 = vsel %vm3148, %v2397, 0.0
      %v3174 = vsel %vm3149, %v2398, 0.0
      %v3175 = vsel %vm3150, %v2399, 0.0
      %v3176 = vsel %vm3151, %v2400, 0.0
      %v3177 = vsel %vm3152, %v2401, 0.0
      %v3178 = vsel %vm3153, %v2402, 0.0
      %v3179 = vsel %vm3154, %v2403, 0.0
      %v3180 = vsel %vm3155, %v2404, 0.0
      %3206 = vrot.lane.b32.xlu0 %v1893, 8
      %v3207 = vpop.permute.xlu0 %3206
      %3208 = vrot.lane.b32.xlu0 %v1894, 8
      %v3209 = vpop.permute.xlu0 %3208
      %3210 = vrot.lane.b32.xlu0 %v1895, 8
      %v3211 = vpop.permute.xlu0 %3210
      %3212 = vrot.lane.b32.xlu0 %v1896, 8
      %v3213 = vpop.permute.xlu0 %3212
      %3214 = vrot.lane.b32.xlu0 %v1897, 8
      %v3215 = vpop.permute.xlu0 %3214
      %3216 = vrot.lane.b32.xlu0 %v1898, 8
      %v3217 = vpop.permute.xlu0 %3216
      %3218 = vrot.lane.b32.xlu0 %v1899, 8
      %v3219 = vpop.permute.xlu0 %3218
      %3220 = vrot.lane.b32.xlu0 %v1900, 8
      %v3221 = vpop.permute.xlu0 %3220
      %3222 = vrot.lane.b32.xlu0 %v1901, 8
      %v3223 = vpop.permute.xlu0 %3222
      %3224 = vrot.lane.b32.xlu0 %v1902, 8
      %v3225 = vpop.permute.xlu0 %3224
      %3226 = vrot.lane.b32.xlu0 %v1903, 8
      %v3227 = vpop.permute.xlu0 %3226
      %3228 = vrot.lane.b32.xlu0 %v1904, 8
      %v3229 = vpop.permute.xlu0 %3228
      %3230 = vrot.lane.b32.xlu0 %v1905, 8
      %v3231 = vpop.permute.xlu0 %3230
      %3232 = vrot.lane.b32.xlu0 %v1906, 8
      %v3233 = vpop.permute.xlu0 %3232
      %3234 = vrot.lane.b32.xlu0 %v1907, 8
      %v3235 = vpop.permute.xlu0 %3234
      %3236 = vrot.lane.b32.xlu0 %v1908, 8
      %v3237 = vpop.permute.xlu0 %3236
      %3238 = vrot.lane.b32.xlu0 %v1909, 8
      %v3239 = vpop.permute.xlu0 %3238
      %3240 = vrot.lane.b32.xlu0 %v1910, 8
      %v3241 = vpop.permute.xlu0 %3240
      %3242 = vrot.lane.b32.xlu0 %v1911, 8
      %v3243 = vpop.permute.xlu0 %3242
      %3244 = vrot.lane.b32.xlu0 %v1912, 8
      %v3245 = vpop.permute.xlu0 %3244
      %3246 = vrot.lane.b32.xlu0 %v1913, 8
      %v3247 = vpop.permute.xlu0 %3246
      %3248 = vrot.lane.b32.xlu0 %v1914, 8
      %v3249 = vpop.permute.xlu0 %3248
      %3250 = vrot.lane.b32.xlu0 %v1915, 8
      %v3251 = vpop.permute.xlu0 %3250
      %3252 = vrot.lane.b32.xlu0 %v1916, 8
      %v3253 = vpop.permute.xlu0 %3252
      %3254 = vrot.lane.b32.xlu0 %v1917, 8
      %v3255 = vpop.permute.xlu0 %3254
      %3306 = vrot.lane.b32.xlu0 %v3156, 24
      %v3307 = vpop.permute.xlu0 %3306
      %3308 = vrot.lane.b32.xlu0 %v3157, 24
      %v3309 = vpop.permute.xlu0 %3308
      %3310 = vrot.lane.b32.xlu0 %v3158, 24
      %v3311 = vpop.permute.xlu0 %3310
      %3312 = vrot.lane.b32.xlu0 %v3159, 24
      %v3313 = vpop.permute.xlu0 %3312
      %3314 = vrot.lane.b32.xlu0 %v3160, 24
      %v3315 = vpop.permute.xlu0 %3314
      %3316 = vrot.lane.b32.xlu0 %v3161, 24
      %v3317 = vpop.permute.xlu0 %3316
      %3318 = vrot.lane.b32.xlu0 %v3162, 24
      %v3319 = vpop.permute.xlu0 %3318
      %3320 = vrot.lane.b32.xlu0 %v3163, 24
      %v3321 = vpop.permute.xlu0 %3320
      %3322 = vrot.lane.b32.xlu0 %v3164, 24
      %v3323 = vpop.permute.xlu0 %3322
      %3324 = vrot.lane.b32.xlu0 %v3165, 24
      %v3325 = vpop.permute.xlu0 %3324
      %3326 = vrot.lane.b32.xlu0 %v3166, 24
      %v3327 = vpop.permute.xlu0 %3326
      %3328 = vrot.lane.b32.xlu0 %v3167, 24
      %v3329 = vpop.permute.xlu0 %3328
      %3330 = vrot.lane.b32.xlu0 %v3168, 24
      %v3331 = vpop.permute.xlu0 %3330
      %3332 = vrot.lane.b32.xlu0 %v3169, 24
      %v3333 = vpop.permute.xlu0 %3332
      %3334 = vrot.lane.b32.xlu0 %v3170, 24
      %v3335 = vpop.permute.xlu0 %3334
      %3336 = vrot.lane.b32.xlu0 %v3171, 24
      %v3337 = vpop.permute.xlu0 %3336
      %3338 = vrot.lane.b32.xlu0 %v3172, 24
      %v3339 = vpop.permute.xlu0 %3338
      %3340 = vrot.lane.b32.xlu0 %v3173, 24
      %v3341 = vpop.permute.xlu0 %3340
      %3342 = vrot.lane.b32.xlu0 %v3174, 24
      %v3343 = vpop.permute.xlu0 %3342
      %3344 = vrot.lane.b32.xlu0 %v3175, 24
      %v3345 = vpop.permute.xlu0 %3344
      %3346 = vrot.lane.b32.xlu0 %v3176, 24
      %v3347 = vpop.permute.xlu0 %3346
      %3348 = vrot.lane.b32.xlu0 %v3177, 24
      %v3349 = vpop.permute.xlu0 %3348
      %3350 = vrot.lane.b32.xlu0 %v3178, 24
      %v3351 = vpop.permute.xlu0 %3350
      %3352 = vrot.lane.b32.xlu0 %v3179, 24
      %v3353 = vpop.permute.xlu0 %3352
      %3354 = vrot.lane.b32.xlu0 %v3180, 24
      %v3355 = vpop.permute.xlu0 %3354
      %v3381 = vsel %vm657, %v883, %v3207
      %v3382 = vsel %vm657, %v884, %v3209
      %v3383 = vsel %vm657, %v885, %v3211
      %v3384 = vsel %vm657, %v886, %v3213
      %v3385 = vsel %vm657, %v887, %v3215
      %v3386 = vsel %vm657, %v888, %v3217
      %v3387 = vsel %vm657, %v889, %v3219
      %v3388 = vsel %vm657, %v890, %v3221
      %v3389 = vsel %vm657, %v891, %v3223
      %v3390 = vsel %vm657, %v892, %v3225
      %v3391 = vsel %vm657, %v893, %v3227
      %v3392 = vsel %vm657, %v894, %v3229
      %v3393 = vsel %vm657, %v895, %v3231
      %v3394 = vsel %vm657, %v896, %v3233
      %v3395 = vsel %vm657, %v897, %v3235
      %v3396 = vsel %vm657, %v898, %v3237
      %v3397 = vsel %vm657, %v899, %v3239
      %v3398 = vsel %vm657, %v900, %v3241
      %v3399 = vsel %vm657, %v901, %v3243
      %v3400 = vsel %vm657, %v902, %v3245
      %v3401 = vsel %vm657, %v903, %v3247
      %v3402 = vsel %vm657, %v904, %v3249
      %v3403 = vsel %vm657, %v905, %v3251
      %v3404 = vsel %vm657, %v906, %v3253
      %v3405 = vsel %vm657, %v907, %v3255
      %vm3406 = vcmask 195584
      %v3407 = vsel %vm3406, %v3381, %v3307
      %v3408 = vsel %vm3406, %v3382, %v3309
      %v3409 = vsel %vm3406, %v3383, %v3311
      %v3410 = vsel %vm3406, %v3384, %v3313
      %v3411 = vsel %vm3406, %v3385, %v3315
      %v3412 = vsel %vm3406, %v3386, %v3317
      %v3413 = vsel %vm3406, %v3387, %v3319
      %v3414 = vsel %vm3406, %v3388, %v3321
      %v3415 = vsel %vm3406, %v3389, %v3323
      %v3416 = vsel %vm3406, %v3390, %v3325
      %v3417 = vsel %vm3406, %v3391, %v3327
      %v3418 = vsel %vm3406, %v3392, %v3329
      %v3419 = vsel %vm3406, %v3393, %v3331
      %v3420 = vsel %vm3406, %v3394, %v3333
      %v3421 = vsel %vm3406, %v3395, %v3335
      %v3422 = vsel %vm3406, %v3396, %v3337
      %v3423 = vsel %vm3406, %v3397, %v3339
      %v3424 = vsel %vm3406, %v3398, %v3341
      %v3425 = vsel %vm3406, %v3399, %v3343
      %v3426 = vsel %vm3406, %v3400, %v3345
      %v3427 = vsel %vm3406, %v3401, %v3347
      %v3428 = vsel %vm3406, %v3402, %v3349
      %v3429 = vsel %vm3406, %v3403, %v3351
      %v3430 = vsel %vm3406, %v3404, %v3353
      %v3431 = vsel %vm3406, %v3405, %v3355
      %vm3432 = vcmask 457728
      %3433 = vst.msk [vmem:[%s334] sm:$0xff] %vm3432, %v3407
      %3434 = vst.msk [vmem:[%s334 + $0x8] sm:$0xff] %vm3432, %v3408
      %3435 = vst.msk [vmem:[%s334 + $0x10] sm:$0xff] %vm3432, %v3409
      %3436 = vst.msk [vmem:[%s334 + $0x18] sm:$0xff] %vm3432, %v3410
      %3437 = vst.msk [vmem:[%s334 + $0x20] sm:$0xff] %vm3432, %v3411
      %3438 = vst.msk [vmem:[%s334 + $0x28] sm:$0xff] %vm3432, %v3412
      %3439 = vst.msk [vmem:[%s334 + $0x30] sm:$0xff] %vm3432, %v3413
      %3440 = vst.msk [vmem:[%s334 + $0x38] sm:$0xff] %vm3432, %v3414
      %3441 = vst.msk [vmem:[%s334 + $0x40] sm:$0xff] %vm3432, %v3415
      %3442 = vst.msk [vmem:[%s334 + $0x48] sm:$0xff] %vm3432, %v3416
      %3443 = vst.msk [vmem:[%s334 + $0x50] sm:$0xff] %vm3432, %v3417
      %3444 = vst.msk [vmem:[%s334 + $0x58] sm:$0xff] %vm3432, %v3418
      %3445 = vst.msk [vmem:[%s334 + $0x60] sm:$0xff] %vm3432, %v3419
      %3446 = vst.msk [vmem:[%s334 + $0x68] sm:$0xff] %vm3432, %v3420
      %3447 = vst.msk [vmem:[%s334 + $0x70] sm:$0xff] %vm3432, %v3421
      %3448 = vst.msk [vmem:[%s334 + $0x78] sm:$0xff] %vm3432, %v3422
      %3449 = vst.msk [vmem:[%s334 + $0x80] sm:$0xff] %vm3432, %v3423
      %3450 = vst.msk [vmem:[%s334 + $0x88] sm:$0xff] %vm3432, %v3424
      %3451 = vst.msk [vmem:[%s334 + $0x90] sm:$0xff] %vm3432, %v3425
      %3452 = vst.msk [vmem:[%s334 + $0x98] sm:$0xff] %vm3432, %v3426
      %3453 = vst.msk [vmem:[%s334 + $0xa0] sm:$0xff] %vm3432, %v3427
      %3454 = vst.msk [vmem:[%s334 + $0xa8] sm:$0xff] %vm3432, %v3428
      %3455 = vst.msk [vmem:[%s334 + $0xb0] sm:$0xff] %vm3432, %v3429
      %3456 = vst.msk [vmem:[%s334 + $0xb8] sm:$0xff] %vm3432, %v3430
      %3457 = vst.msk [vmem:[%s334 + $0xc0] sm:$0xff] %vm3432, %v3431
      %s3458 = smul.u32 25, %s20
      %p3459 = scmp.lt.s32.totalorder %s3458, 49
      %s3460 = scalar_select %p3459, %s3458, 49
      %s3461 = smul.addr %s3460, 8
      %s3462 = scalar_lea.vmem %s9, %s3461
      // Predicated region
      $region57: #{tpu_custom_call.1} parent=55 // pred_check
        %p3463 = pneg %p232
      $region58: #{tpu_custom_call.1} parent=55 // pred_check_branch
        %3465 = sbr.rel (%p3463) target = $region60
      $region59: #{tpu_custom_call.1} parent=55 // pred_region
        %s3466 = smul.u32 25, %s20
      $region60: #{tpu_custom_call.1} parent=55 // pred_fallthru
        _
    $region56: #{tpu_custom_call.1} parent=5 // pred_fallthru
      _
    %p3467 = scmp.le.s32.totalorder 2, %s15
    // Predicated region
    $region61: #{tpu_custom_call.1} parent=5 // pred_check
      %p3468 = pneg %p3467
    $region62: #{tpu_custom_call.1} parent=5 // pred_check_branch
      %3470 = sbr.rel (%p3468) target = $region64
    $region63: #{tpu_custom_call.1} parent=5 // pred_region
      %s3471 = ssub.s32 %s15, 2
      // Predicated region
      $region65: #{tpu_custom_call.1} parent=63 // pred_check
        %p3472 = pneg %p238
      $region66: #{tpu_custom_call.1} parent=63 // pred_check_branch
        %3474 = sbr.rel (%p3472) target = $region68
      $region67: #{tpu_custom_call.1} parent=63 // pred_region
        %s3475 = smul.u32 25, %s21
        %p3476 = scmp.lt.s32.totalorder %s3475, 49
        %s3477 = scalar_select %p3476, %s3475, 49
        %s3478 = smul.addr %s3477, 8
        %s3479 = scalar_lea.vmem %s9, %s3478
      $region68: #{tpu_custom_call.1} parent=63 // pred_fallthru
        _
    $region64: #{tpu_custom_call.1} parent=5 // pred_fallthru
      _
  $region6: #{tpu_custom_call.1} parent=0 // loop_footer
    %s19 = sadd.s32 1, %s15
  $region7: #{tpu_custom_call.1} parent=0 // loop_footer_branch
    %14 = sbr.rel target = $region3
  $region8: #{tpu_custom_call.1} parent=0 // loop_exit
    _

</llo_original>
